<compile_context>
chip_gen: v6e
topology: v6e:2x2x1
jax: 0.10.0
libtpu: 0.0.40
codegen_flags: <defaults>
</compile_context>

<pallas_src>
import functools

import jax
import jax.numpy as jnp
from jax import lax
from jax.experimental import pallas as pl
from jax.experimental.pallas import tpu as pltpu

N_HEADS = 8
HEAD_DIM = 64
D_MODEL = N_HEADS * HEAD_DIM  # 512


def _partial_t5_kernel(h_ref, w_ref, b_ref, scores_ref, v_ref):
    # h_ref:      (tb*S, 512)     bf16  -- batch-tile of flattened hidden states
    # w_ref:      (512, 1536)     bf16  -- fused [Wq | Wk | Wv]
    # b_ref:      (1, 1536)       f32   -- fused [bq | bk | bv]
    # scores_ref: (tb, 8, S, S)   out
    # v_ref:      (tb*S, 512)     out   -- lane-dense value slab (head split done in wrapper)
    tb, _, s, _ = scores_ref.shape
    d = D_MODEL

    # Single fused QKV projection on the MXU (bf16 x bf16, f32 accumulation), one bias add.
    qkv = jnp.dot(h_ref[...], w_ref[...],
                  preferred_element_type=jnp.float32) + b_ref[...]        # (tb*S, 1536) f32

    # Lane-dense value store: one unmasked 512-lane slab store.
    v_ref[...] = qkv[:, 2 * d:].astype(v_ref.dtype)

    # Per-head scores, batched over the whole batch tile with a single dot_general per head
    # (flash-attention style 'bqd,bkd->bqk': contraction on the last dim, no transposes),
    # bf16 MXU operands, and one (tb, S, S) store per head.
    # TODO(synk): for S < 128 a lane-dense (tb, H*S*S) score slab would avoid masked vst
    # lanes, but the required (tb,H,S,S)->(tb,H*S*S) lane-merging relayout has shaky Mosaic
    # reshape support; at small S the score writeback is only a few KiB, so we keep the
    # natural layout (already lane-dense for S >= 128) and a single store per head.
    for hd in range(N_HEADS):
        lo = hd * HEAD_DIM
        q_h = qkv[:, lo:lo + HEAD_DIM].astype(jnp.bfloat16).reshape(tb, s, HEAD_DIM)
        k_h = qkv[:, d + lo:d + lo + HEAD_DIM].astype(jnp.bfloat16).reshape(tb, s, HEAD_DIM)
        s_h = lax.dot_general(
            q_h, k_h,
            dimension_numbers=(((2,), (2,)), ((0,), (0,))),
            preferred_element_type=jnp.float32)                           # (tb, S, S)
        scores_ref[:, hd, :, :] = s_h.astype(scores_ref.dtype)


@functools.partial(jax.jit, static_argnames=("batch_tile", "out_dtype"))
def partial_t5_forward(hidden_states, wq, bq, wk, bk, wv, bv, *,
                       batch_tile=None, out_dtype=jnp.float32):
    """hidden_states: (B, S, 512) f32.  wq/wk/wv: (512, 512) in (in, out) layout."""
    B, S, D = hidden_states.shape
    assert D == D_MODEL

    if batch_tile is None:
        # Target ~512 MXU rows (tb*S) per grid step (256-wide v6e/v7x MXU), but keep
        # grid = B // tb >= 2 whenever B >= 2 so both v7x TensorCores get grid work.
        min_grid = 2 if B >= 2 else 1
        target_rows = 512
        batch_tile = 1
        for t in range(1, B + 1):
            if B % t == 0 and t * S <= max(S, target_rows) and B // t >= min_grid:
                batch_tile = t
    tb = batch_tile
    assert B % tb == 0
    assert (tb * S) % 8 == 0, "batch_tile * seq_len must be a multiple of 8 (sublane tile)"
    grid = (B // tb,)

    # Fused bf16 weights, flattened bf16 activations (M = B*S rows on the MXU).
    h_flat = hidden_states.reshape(B * S, D).astype(jnp.bfloat16)
    w_fused = jnp.concatenate([wq, wk, wv], axis=1).astype(jnp.bfloat16)     # (512, 1536)
    b_fused = jnp.concatenate([bq, bk, bv]).reshape(1, 3 * D).astype(jnp.float32)

    out_shapes = (
        jax.ShapeDtypeStruct((B, N_HEADS, S, S), out_dtype),
        jax.ShapeDtypeStruct((B * S, D), out_dtype),
    )

    # Explicit VMEM budget from the actual (double-buffered) block sizes, clamped to the
    # v7x physical limit (64 MiB) so the same setting is safe on v5e/v6e/v7x.
    out_isz = jnp.dtype(out_dtype).itemsize
    blk_bytes = (
        2 * (tb * S * D) * 2                      # hidden block (bf16), double-buffered
        + 2 * (D * 3 * D) * 2                     # fused weights (bf16, constant index_map)
        + 2 * (3 * D) * 4                         # fused bias
        + 2 * (tb * N_HEADS * S * S) * out_isz    # scores block
        + 2 * (tb * S * D) * out_isz              # value slab block
    )
    vmem_limit = int(min(max(blk_bytes + (8 << 20), 32 << 20), 64 << 20))
    # TODO(synk): for large S the scores block (tb*8*S*S bytes, double-buffered) needs a
    # query-block grid axis to stay inside v7x's 64 MiB VMEM; not needed at these shapes.

    scores, v_flat = pl.pallas_call(
        _partial_t5_kernel,
        out_shape=out_shapes,
        grid_spec=pltpu.PrefetchScalarGridSpec(
            num_scalar_prefetch=0,
            grid=grid,
            in_specs=[
                pl.BlockSpec((tb * S, D), lambda i: (i, 0)),        # hidden (flattened)
                pl.BlockSpec((D, 3 * D), lambda i: (0, 0)),         # fused Wqkv (constant)
                pl.BlockSpec((1, 3 * D), lambda i: (0, 0)),         # fused bias (constant)
            ],
            out_specs=[
                pl.BlockSpec((tb, N_HEADS, S, S), lambda i: (i, 0, 0, 0)),
                pl.BlockSpec((tb * S, D), lambda i: (i, 0)),
            ],
        ),
        compiler_params=pltpu.CompilerParams(
            dimension_semantics=("parallel",),
            vmem_limit_bytes=vmem_limit),
    )(h_flat, w_fused, b_fused)

    # Cheap wrapper-side head split / transpose for value_states -> (B, 8, S, 64).
    values = jnp.transpose(v_flat.reshape(B, S, N_HEADS, HEAD_DIM), (0, 2, 1, 3))
    return scores, values


def _reference(hidden_states, wq, bq, wk, bk, wv, bv):
    """Pure-JAX reference mirroring the PyTorch forward with the same precision policy
    (bf16 matmul inputs, f32 accumulation)."""
    B, S, _ = hidden_states.shape
    hb = hidden_states.astype(jnp.bfloat16)

    def proj(w, b):
        y = jnp.dot(hb, w.astype(jnp.bfloat16),
                    preferred_element_type=jnp.float32) + b
        return jnp.transpose(y.reshape(B, S, N_HEADS, HEAD_DIM), (0, 2, 1, 3))

    q = proj(wq, bq)
    k = proj(wk, bk)
    v = proj(wv, bv)
    scores = jnp.einsum("bhqd,bhkd->bhqk",
                        q.astype(jnp.bfloat16), k.astype(jnp.bfloat16),
                        preferred_element_type=jnp.float32)
    return scores, v


if __name__ == "__main__":
    B, S = 2, 8

    key = jax.random.PRNGKey(0)
    ks = jax.random.split(key, 7)
    # Deterministic parameter init (nn.Linear-like uniform scale), (in, out) layout.
    scale = 1.0 / (D_MODEL ** 0.5)
    wq = jax.random.uniform(ks[0], (D_MODEL, D_MODEL), jnp.float32, -scale, scale)
    wk = jax.random.uniform(ks[1], (D_MODEL, D_MODEL), jnp.float32, -scale, scale)
    wv = jax.random.uniform(ks[2], (D_MODEL, D_MODEL), jnp.float32, -scale, scale)
    bq = jax.random.uniform(ks[3], (D_MODEL,), jnp.float32, -scale, scale)
    bk = jax.random.uniform(ks[4], (D_MODEL,), jnp.float32, -scale, scale)
    bv = jax.random.uniform(ks[5], (D_MODEL,), jnp.float32, -scale, scale)

    hidden_states = jax.random.normal(ks[6], (B, S, D_MODEL), jnp.float32)

    scores, values = partial_t5_forward(hidden_states, wq, bq, wk, bk, wv, bv)
    jax.block_until_ready((scores, values))

    ref_scores, ref_values = _reference(hidden_states, wq, bq, wk, bk, wv, bv)
    assert scores.shape == (B, N_HEADS, S, S)
    assert values.shape == (B, N_HEADS, S, HEAD_DIM)
    assert jnp.allclose(scores, ref_scores, atol=5e-2, rtol=5e-2)
    assert jnp.allclose(values, ref_values, atol=5e-2, rtol=5e-2)

    print("KERNEL_OK")
</pallas_src>

<mosaic_0001>
module attributes {stable_mosaic.version = 11 : i64} {
  func.func @_partial_t5_kernel(%arg0: i32, %arg1: memref<8x512xbf16, #tpu.memory_space<vmem>>, %arg2: memref<512x1536xbf16, #tpu.memory_space<vmem>>, %arg3: memref<1x1536xf32, #tpu.memory_space<vmem>>, %arg4: memref<1x8x8x8xf32, #tpu.memory_space<vmem>>, %arg5: memref<8x512xf32, #tpu.memory_space<vmem>>) attributes {dimension_semantics = [#tpu.dimension_semantics<parallel>], iteration_bounds = array<i64: 2>, scalar_prefetch = 0 : i64, scratch_operands = 0 : i64, tpu.core_type = #tpu.core_type<tc>, window_params = [{transform_indices = @transform_0, window_bounds = array<i64: 8, 512>}, {pipeline_mode = #tpu.pipeline_mode<synchronous>, transform_indices = @transform_1, window_bounds = array<i64: 512, 1536>}, {pipeline_mode = #tpu.pipeline_mode<synchronous>, transform_indices = @transform_2, window_bounds = array<i64: 1, 1536>}, {transform_indices = @transform_3, window_bounds = array<i64: 1, 8, 8, 8>}, {transform_indices = @transform_4, window_bounds = array<i64: 8, 512>}]} {
    %c0 = arith.constant 0 : index
    %c0_0 = arith.constant 0 : index
    %0 = vector.load %arg1[%c0, %c0_0] : memref<8x512xbf16, #tpu.memory_space<vmem>>, vector<8x512xbf16>
    %c0_1 = arith.constant 0 : index
    %c0_2 = arith.constant 0 : index
    %1 = vector.load %arg2[%c0_1, %c0_2] : memref<512x1536xbf16, #tpu.memory_space<vmem>>, vector<512x1536xbf16>
    %cst = arith.constant dense<0.000000e+00> : vector<8x1536xf32>
    %2 = tpu.matmul %0, %1, %cst {dimension_numbers = #tpu.dot_dimension_numbers<[1], [0], [0], [1], [0, 0, 1, 1], [], []>} : vector<8x512xbf16>, vector<512x1536xbf16>, vector<8x1536xf32> -> vector<8x1536xf32>
    %c0_3 = arith.constant 0 : index
    %c0_4 = arith.constant 0 : index
    %3 = vector.load %arg3[%c0_3, %c0_4] : memref<1x1536xf32, #tpu.memory_space<vmem>>, vector<1x1536xf32>
    %4 = vector.broadcast %3 : vector<1x1536xf32> to vector<8x1536xf32>
    %5 = arith.addf %2, %4 : vector<8x1536xf32>
    %6 = vector.extract_strided_slice %5 {offsets = [0, 1024], sizes = [8, 512], strides = [1, 1]} : vector<8x1536xf32> to vector<8x512xf32>
    %c0_5 = arith.constant 0 : index
    %c0_6 = arith.constant 0 : index
    %7 = vector.load %arg5[%c0_5, %c0_6] : memref<8x512xf32, #tpu.memory_space<vmem>>, vector<8x512xf32>
    tpu.vector_store %arg5[%c0_5, %c0_6], %6 {strides = array<i32>} : memref<8x512xf32, #tpu.memory_space<vmem>>, vector<8x512xf32>,
    %8 = vector.extract_strided_slice %5 {offsets = [0, 0], sizes = [8, 64], strides = [1, 1]} : vector<8x1536xf32> to vector<8x64xf32>
    %9 = arith.truncf %8 : vector<8x64xf32> to vector<8x64xbf16>
    %10 = vector.shape_cast %9 : vector<8x64xbf16> to vector<1x8x64xbf16>
    %11 = vector.extract_strided_slice %5 {offsets = [0, 512], sizes = [8, 64], strides = [1, 1]} : vector<8x1536xf32> to vector<8x64xf32>
    %12 = arith.truncf %11 : vector<8x64xf32> to vector<8x64xbf16>
    %13 = vector.shape_cast %12 : vector<8x64xbf16> to vector<1x8x64xbf16>
    %cst_7 = arith.constant dense<0.000000e+00> : vector<1x8x8xf32>
    %14 = tpu.matmul %10, %13, %cst_7 {dimension_numbers = #tpu.dot_dimension_numbers<[2], [2], [1], [1], [0, 0, 0, 1, 1, 1], [0], [0]>} : vector<1x8x64xbf16>, vector<1x8x64xbf16>, vector<1x8x8xf32> -> vector<1x8x8xf32>
    %c0_8 = arith.constant 0 : index
    %c0_9 = arith.constant 0 : index
    %c0_10 = arith.constant 0 : index
    %c0_11 = arith.constant 0 : index
    %15 = vector.load %arg4[%c0_8, %c0_9, %c0_10, %c0_11] : memref<1x8x8x8xf32, #tpu.memory_space<vmem>>, vector<1x1x8x8xf32>
    %16 = vector.shape_cast %15 : vector<1x1x8x8xf32> to vector<1x8x8xf32>
    %17 = vector.shape_cast %14 : vector<1x8x8xf32> to vector<1x1x8x8xf32>
    tpu.vector_store %arg4[%c0_8, %c0_9, %c0_10, %c0_11], %17 {strides = array<i32>} : memref<1x8x8x8xf32, #tpu.memory_space<vmem>>, vector<1x1x8x8xf32>,
    %18 = vector.extract_strided_slice %5 {offsets = [0, 64], sizes = [8, 64], strides = [1, 1]} : vector<8x1536xf32> to vector<8x64xf32>
    %19 = arith.truncf %18 : vector<8x64xf32> to vector<8x64xbf16>
    %20 = vector.shape_cast %19 : vector<8x64xbf16> to vector<1x8x64xbf16>
    %21 = vector.extract_strided_slice %5 {offsets = [0, 576], sizes = [8, 64], strides = [1, 1]} : vector<8x1536xf32> to vector<8x64xf32>
    %22 = arith.truncf %21 : vector<8x64xf32> to vector<8x64xbf16>
    %23 = vector.shape_cast %22 : vector<8x64xbf16> to vector<1x8x64xbf16>
    %cst_12 = arith.constant dense<0.000000e+00> : vector<1x8x8xf32>
    %24 = tpu.matmul %20, %23, %cst_12 {dimension_numbers = #tpu.dot_dimension_numbers<[2], [2], [1], [1], [0, 0, 0, 1, 1, 1], [0], [0]>} : vector<1x8x64xbf16>, vector<1x8x64xbf16>, vector<1x8x8xf32> -> vector<1x8x8xf32>
    %c0_13 = arith.constant 0 : index
    %c1 = arith.constant 1 : index
    %c0_14 = arith.constant 0 : index
    %c0_15 = arith.constant 0 : index
    %25 = vector.load %arg4[%c0_13, %c1, %c0_14, %c0_15] : memref<1x8x8x8xf32, #tpu.memory_space<vmem>>, vector<1x1x8x8xf32>
    %26 = vector.shape_cast %25 : vector<1x1x8x8xf32> to vector<1x8x8xf32>
    %27 = vector.shape_cast %24 : vector<1x8x8xf32> to vector<1x1x8x8xf32>
    tpu.vector_store %arg4[%c0_13, %c1, %c0_14, %c0_15], %27 {strides = array<i32>} : memref<1x8x8x8xf32, #tpu.memory_space<vmem>>, vector<1x1x8x8xf32>,
    %28 = vector.extract_strided_slice %5 {offsets = [0, 128], sizes = [8, 64], strides = [1, 1]} : vector<8x1536xf32> to vector<8x64xf32>
    %29 = arith.truncf %28 : vector<8x64xf32> to vector<8x64xbf16>
    %30 = vector.shape_cast %29 : vector<8x64xbf16> to vector<1x8x64xbf16>
    %31 = vector.extract_strided_slice %5 {offsets = [0, 640], sizes = [8, 64], strides = [1, 1]} : vector<8x1536xf32> to vector<8x64xf32>
    %32 = arith.truncf %31 : vector<8x64xf32> to vector<8x64xbf16>
    %33 = vector.shape_cast %32 : vector<8x64xbf16> to vector<1x8x64xbf16>
    %cst_16 = arith.constant dense<0.000000e+00> : vector<1x8x8xf32>
    %34 = tpu.matmul %30, %33, %cst_16 {dimension_numbers = #tpu.dot_dimension_numbers<[2], [2], [1], [1], [0, 0, 0, 1, 1, 1], [0], [0]>} : vector<1x8x64xbf16>, vector<1x8x64xbf16>, vector<1x8x8xf32> -> vector<1x8x8xf32>
    %c0_17 = arith.constant 0 : index
    %c2 = arith.constant 2 : index
    %c0_18 = arith.constant 0 : index
    %c0_19 = arith.constant 0 : index
    %35 = vector.load %arg4[%c0_17, %c2, %c0_18, %c0_19] : memref<1x8x8x8xf32, #tpu.memory_space<vmem>>, vector<1x1x8x8xf32>
    %36 = vector.shape_cast %35 : vector<1x1x8x8xf32> to vector<1x8x8xf32>
    %37 = vector.shape_cast %34 : vector<1x8x8xf32> to vector<1x1x8x8xf32>
    tpu.vector_store %arg4[%c0_17, %c2, %c0_18, %c0_19], %37 {strides = array<i32>} : memref<1x8x8x8xf32, #tpu.memory_space<vmem>>, vector<1x1x8x8xf32>,
    %38 = vector.extract_strided_slice %5 {offsets = [0, 192], sizes = [8, 64], strides = [1, 1]} : vector<8x1536xf32> to vector<8x64xf32>
    %39 = arith.truncf %38 : vector<8x64xf32> to vector<8x64xbf16>
    %40 = vector.shape_cast %39 : vector<8x64xbf16> to vector<1x8x64xbf16>
    %41 = vector.extract_strided_slice %5 {offsets = [0, 704], sizes = [8, 64], strides = [1, 1]} : vector<8x1536xf32> to vector<8x64xf32>
    %42 = arith.truncf %41 : vector<8x64xf32> to vector<8x64xbf16>
    %43 = vector.shape_cast %42 : vector<8x64xbf16> to vector<1x8x64xbf16>
    %cst_20 = arith.constant dense<0.000000e+00> : vector<1x8x8xf32>
    %44 = tpu.matmul %40, %43, %cst_20 {dimension_numbers = #tpu.dot_dimension_numbers<[2], [2], [1], [1], [0, 0, 0, 1, 1, 1], [0], [0]>} : vector<1x8x64xbf16>, vector<1x8x64xbf16>, vector<1x8x8xf32> -> vector<1x8x8xf32>
    %c0_21 = arith.constant 0 : index
    %c3 = arith.constant 3 : index
    %c0_22 = arith.constant 0 : index
    %c0_23 = arith.constant 0 : index
    %45 = vector.load %arg4[%c0_21, %c3, %c0_22, %c0_23] : memref<1x8x8x8xf32, #tpu.memory_space<vmem>>, vector<1x1x8x8xf32>
    %46 = vector.shape_cast %45 : vector<1x1x8x8xf32> to vector<1x8x8xf32>
    %47 = vector.shape_cast %44 : vector<1x8x8xf32> to vector<1x1x8x8xf32>
    tpu.vector_store %arg4[%c0_21, %c3, %c0_22, %c0_23], %47 {strides = array<i32>} : memref<1x8x8x8xf32, #tpu.memory_space<vmem>>, vector<1x1x8x8xf32>,
    %48 = vector.extract_strided_slice %5 {offsets = [0, 256], sizes = [8, 64], strides = [1, 1]} : vector<8x1536xf32> to vector<8x64xf32>
    %49 = arith.truncf %48 : vector<8x64xf32> to vector<8x64xbf16>
    %50 = vector.shape_cast %49 : vector<8x64xbf16> to vector<1x8x64xbf16>
    %51 = vector.extract_strided_slice %5 {offsets = [0, 768], sizes = [8, 64], strides = [1, 1]} : vector<8x1536xf32> to vector<8x64xf32>
    %52 = arith.truncf %51 : vector<8x64xf32> to vector<8x64xbf16>
    %53 = vector.shape_cast %52 : vector<8x64xbf16> to vector<1x8x64xbf16>
    %cst_24 = arith.constant dense<0.000000e+00> : vector<1x8x8xf32>
    %54 = tpu.matmul %50, %53, %cst_24 {dimension_numbers = #tpu.dot_dimension_numbers<[2], [2], [1], [1], [0, 0, 0, 1, 1, 1], [0], [0]>} : vector<1x8x64xbf16>, vector<1x8x64xbf16>, vector<1x8x8xf32> -> vector<1x8x8xf32>
    %c0_25 = arith.constant 0 : index
    %c4 = arith.constant 4 : index
    %c0_26 = arith.constant 0 : index
    %c0_27 = arith.constant 0 : index
    %55 = vector.load %arg4[%c0_25, %c4, %c0_26, %c0_27] : memref<1x8x8x8xf32, #tpu.memory_space<vmem>>, vector<1x1x8x8xf32>
    %56 = vector.shape_cast %55 : vector<1x1x8x8xf32> to vector<1x8x8xf32>
    %57 = vector.shape_cast %54 : vector<1x8x8xf32> to vector<1x1x8x8xf32>
    tpu.vector_store %arg4[%c0_25, %c4, %c0_26, %c0_27], %57 {strides = array<i32>} : memref<1x8x8x8xf32, #tpu.memory_space<vmem>>, vector<1x1x8x8xf32>,
    %58 = vector.extract_strided_slice %5 {offsets = [0, 320], sizes = [8, 64], strides = [1, 1]} : vector<8x1536xf32> to vector<8x64xf32>
    %59 = arith.truncf %58 : vector<8x64xf32> to vector<8x64xbf16>
    %60 = vector.shape_cast %59 : vector<8x64xbf16> to vector<1x8x64xbf16>
    %61 = vector.extract_strided_slice %5 {offsets = [0, 832], sizes = [8, 64], strides = [1, 1]} : vector<8x1536xf32> to vector<8x64xf32>
    %62 = arith.truncf %61 : vector<8x64xf32> to vector<8x64xbf16>
    %63 = vector.shape_cast %62 : vector<8x64xbf16> to vector<1x8x64xbf16>
    %cst_28 = arith.constant dense<0.000000e+00> : vector<1x8x8xf32>
    %64 = tpu.matmul %60, %63, %cst_28 {dimension_numbers = #tpu.dot_dimension_numbers<[2], [2], [1], [1], [0, 0, 0, 1, 1, 1], [0], [0]>} : vector<1x8x64xbf16>, vector<1x8x64xbf16>, vector<1x8x8xf32> -> vector<1x8x8xf32>
    %c0_29 = arith.constant 0 : index
    %c5 = arith.constant 5 : index
    %c0_30 = arith.constant 0 : index
    %c0_31 = arith.constant 0 : index
    %65 = vector.load %arg4[%c0_29, %c5, %c0_30, %c0_31] : memref<1x8x8x8xf32, #tpu.memory_space<vmem>>, vector<1x1x8x8xf32>
    %66 = vector.shape_cast %65 : vector<1x1x8x8xf32> to vector<1x8x8xf32>
    %67 = vector.shape_cast %64 : vector<1x8x8xf32> to vector<1x1x8x8xf32>
    tpu.vector_store %arg4[%c0_29, %c5, %c0_30, %c0_31], %67 {strides = array<i32>} : memref<1x8x8x8xf32, #tpu.memory_space<vmem>>, vector<1x1x8x8xf32>,
    %68 = vector.extract_strided_slice %5 {offsets = [0, 384], sizes = [8, 64], strides = [1, 1]} : vector<8x1536xf32> to vector<8x64xf32>
    %69 = arith.truncf %68 : vector<8x64xf32> to vector<8x64xbf16>
    %70 = vector.shape_cast %69 : vector<8x64xbf16> to vector<1x8x64xbf16>
    %71 = vector.extract_strided_slice %5 {offsets = [0, 896], sizes = [8, 64], strides = [1, 1]} : vector<8x1536xf32> to vector<8x64xf32>
    %72 = arith.truncf %71 : vector<8x64xf32> to vector<8x64xbf16>
    %73 = vector.shape_cast %72 : vector<8x64xbf16> to vector<1x8x64xbf16>
    %cst_32 = arith.constant dense<0.000000e+00> : vector<1x8x8xf32>
    %74 = tpu.matmul %70, %73, %cst_32 {dimension_numbers = #tpu.dot_dimension_numbers<[2], [2], [1], [1], [0, 0, 0, 1, 1, 1], [0], [0]>} : vector<1x8x64xbf16>, vector<1x8x64xbf16>, vector<1x8x8xf32> -> vector<1x8x8xf32>
    %c0_33 = arith.constant 0 : index
    %c6 = arith.constant 6 : index
    %c0_34 = arith.constant 0 : index
    %c0_35 = arith.constant 0 : index
    %75 = vector.load %arg4[%c0_33, %c6, %c0_34, %c0_35] : memref<1x8x8x8xf32, #tpu.memory_space<vmem>>, vector<1x1x8x8xf32>
    %76 = vector.shape_cast %75 : vector<1x1x8x8xf32> to vector<1x8x8xf32>
    %77 = vector.shape_cast %74 : vector<1x8x8xf32> to vector<1x1x8x8xf32>
    tpu.vector_store %arg4[%c0_33, %c6, %c0_34, %c0_35], %77 {strides = array<i32>} : memref<1x8x8x8xf32, #tpu.memory_space<vmem>>, vector<1x1x8x8xf32>,
    %78 = vector.extract_strided_slice %5 {offsets = [0, 448], sizes = [8, 64], strides = [1, 1]} : vector<8x1536xf32> to vector<8x64xf32>
    %79 = arith.truncf %78 : vector<8x64xf32> to vector<8x64xbf16>
    %80 = vector.shape_cast %79 : vector<8x64xbf16> to vector<1x8x64xbf16>
    %81 = vector.extract_strided_slice %5 {offsets = [0, 960], sizes = [8, 64], strides = [1, 1]} : vector<8x1536xf32> to vector<8x64xf32>
    %82 = arith.truncf %81 : vector<8x64xf32> to vector<8x64xbf16>
    %83 = vector.shape_cast %82 : vector<8x64xbf16> to vector<1x8x64xbf16>
    %cst_36 = arith.constant dense<0.000000e+00> : vector<1x8x8xf32>
    %84 = tpu.matmul %80, %83, %cst_36 {dimension_numbers = #tpu.dot_dimension_numbers<[2], [2], [1], [1], [0, 0, 0, 1, 1, 1], [0], [0]>} : vector<1x8x64xbf16>, vector<1x8x64xbf16>, vector<1x8x8xf32> -> vector<1x8x8xf32>
    %c0_37 = arith.constant 0 : index
    %c7 = arith.constant 7 : index
    %c0_38 = arith.constant 0 : index
    %c0_39 = arith.constant 0 : index
    %85 = vector.load %arg4[%c0_37, %c7, %c0_38, %c0_39] : memref<1x8x8x8xf32, #tpu.memory_space<vmem>>, vector<1x1x8x8xf32>
    %86 = vector.shape_cast %85 : vector<1x1x8x8xf32> to vector<1x8x8xf32>
    %87 = vector.shape_cast %84 : vector<1x8x8xf32> to vector<1x1x8x8xf32>
    tpu.vector_store %arg4[%c0_37, %c7, %c0_38, %c0_39], %87 {strides = array<i32>} : memref<1x8x8x8xf32, #tpu.memory_space<vmem>>, vector<1x1x8x8xf32>,
    return
  }
  func.func @transform_0(%arg0: i32) -> (i32, i32) {
    %c0_i32 = arith.constant 0 : i32
    %c0_i32_0 = arith.constant 0 : i32
    return %arg0, %c0_i32 : i32, i32
  }
  func.func @transform_1(%arg0: i32) -> (i32, i32) {
    %c0_i32 = arith.constant 0 : i32
    %c0_i32_0 = arith.constant 0 : i32
    %c0_i32_1 = arith.constant 0 : i32
    return %c0_i32, %c0_i32_0 : i32, i32
  }
  func.func @transform_2(%arg0: i32) -> (i32, i32) {
    %c0_i32 = arith.constant 0 : i32
    %c0_i32_0 = arith.constant 0 : i32
    %c0_i32_1 = arith.constant 0 : i32
    return %c0_i32, %c0_i32_0 : i32, i32
  }
  func.func @transform_3(%arg0: i32) -> (i32, i32, i32, i32) {
    %c0_i32 = arith.constant 0 : i32
    %c0_i32_0 = arith.constant 0 : i32
    %c0_i32_1 = arith.constant 0 : i32
    %c0_i32_2 = arith.constant 0 : i32
    return %arg0, %c0_i32, %c0_i32_0, %c0_i32_1 : i32, i32, i32, i32
  }
  func.func @transform_4(%arg0: i32) -> (i32, i32) {
    %c0_i32 = arith.constant 0 : i32
    %c0_i32_0 = arith.constant 0 : i32
    return %arg0, %c0_i32 : i32, i32
  }
}

</mosaic_0001>

<llo_original>
// kernel: partial_t5_forward.1
$region0: #{partial_t5_forward.1}
  #allocation0 [shape = 'u32[]', space=smem, size = 0x4, offset = 0x4, fixed_abs, tag = 'smem constant byte address 0x4 - core index']
  #allocation1 [shape = 'u32[144,128]{1,0:T(1,128)}', space=vmem, size = 0x12000, scoped, tag = 'internal scratch']
  %s0 = inlined_call_operand.vmem [shape: bf16[16,512], index: 0, kind: input, shape index: {}]
  %s1 = inlined_call_operand.vmem [shape: bf16[512,1536], index: 1, kind: input, shape index: {}]
  %s2 = inlined_call_operand.vmem [shape: f32[1,1536], index: 2, kind: input, shape index: {}]
  %s3 = inlined_call_operand.hbm [shape: f32[2,8,8,8], index: 3, kind: output, shape index: {0}]
  %s4 = inlined_call_operand.vmem [shape: f32[16,512], index: 4, kind: output, shape index: {1}]
  %5 = xla_tuple %s3, %s4
  %s6 = sld [smem:[#allocation0]]
  $region53: #{partial_t5_forward.1} parent=0
    _
  %s8 = ssub.s32 1, %s6
  %s9 = scalar_select 0, %s8, %s6
  $region1: #{partial_t5_forward.1} parent=0
    #allocation2 [shape = 'u8[65536]{0}', space=vmem, size = 0x10000, scoped, tag = 'output window, operand 0']
    #allocation3 [shape = 's32[2]{0}', space=sflag, size = 0x8, scoped, tag = 'scoped memory for partial_t5_forward.1']
    %10 = vsyncpa [#allocation3], 0
    %s11 = scalar_lea.sflag [#allocation3], 1
    %12 = vsyncpa %s11, 0
    loop: start=0, step=1, limit=4
    $region2: #{partial_t5_forward.1} parent=1 // loop_pre_header
      _
    $region3: #{partial_t5_forward.1} parent=1 // loop_header
      %s14 = sphi 0, %s18
      %p15 = scmp.ge.s32.totalorder %s14, 4
      %s24 = sphi 0, %s26
      %s27 = sphi 0, %s24
      %s28 = sphi 0, %s27
      %s44 = sphi 0, %s28
      %s48 = sphi 0, %s48
      %s50 = sphi 0, %s48
      %s51 = sphi 0, %s50
      %s65 = sphi 0, %s51
      %s69 = sphi 0, %s69
      %s71 = sphi 0, %s69
      %s72 = sphi 0, %s71
      %s86 = sphi 0, %s72
      %s92 = sphi 0, %s94
      %s95 = sphi 0, %s92
      %s96 = sphi 0, %s95
      %s112 = sphi 0, %s96
      %s118 = sphi 0, %s120
      %s121 = sphi 0, %s118
      %s122 = sphi 0, %s121
      %s138 = sphi 0, %s122
    $region4: #{partial_t5_forward.1} parent=1 // loop_header_branch
      %17 = sbr.rel (%p15) target = $region8
    $region5: #{partial_t5_forward.1} parent=1 // loop_body
      %s19 = ssub.s32 %s14, 1
      %s20 = ssub.s32 %s14, 2
      %s21 = sadd.s32 %s14, 1
      %s22 = ssub.s32 %s14, %s21
      %p23 = scmp.eq.s32.totalorder %s22, 0
      %s25 = sadd.s32 %s24, 1
      %s26 = scalar_select %p23, %s24, %s25
      %p29 = pneg %p23
      %p30 = scmp.eq.s32.totalorder %s14, 1
      %p31 = por %p29, %p30
      %p32 = scmp.ne.s32.totalorder %s24, %s27
      %p33 = scmp.eq.s32.totalorder %s14, 0
      %p34 = por %p32, %p33
      %p35 = scmp.ne.s32.totalorder %s24, %s27
      %p36 = scmp.eq.s32.totalorder %s19, 1
      %p37 = por %p35, %p36
      %p38 = scmp.ne.s32.totalorder %s27, %s28
      %p39 = scmp.eq.s32.totalorder %s19, 0
      %p40 = por %p38, %p39
      %p41 = scmp.ne.s32.totalorder %s27, %s28
      %p42 = scmp.eq.s32.totalorder %s20, 1
      %p43 = por %p41, %p42
      %p45 = scmp.ne.s32.totalorder %s28, %s44
      %p46 = scmp.eq.s32.totalorder %s20, 0
      %p47 = por %p45, %p46
      %s49 = sadd.s32 %s48, 1
      %p52 = scmp.eq.s32.totalorder %s14, 1
      %p53 = scmp.ne.s32.totalorder %s48, %s50
      %p54 = scmp.eq.s32.totalorder %s14, 0
      %p55 = por %p53, %p54
      %p56 = scmp.ne.s32.totalorder %s48, %s50
      %p57 = scmp.eq.s32.totalorder %s19, 1
      %p58 = por %p56, %p57
      %p59 = scmp.ne.s32.totalorder %s50, %s51
      %p60 = scmp.eq.s32.totalorder %s19, 0
      %p61 = por %p59, %p60
      %p62 = scmp.ne.s32.totalorder %s50, %s51
      %p63 = scmp.eq.s32.totalorder %s20, 1
      %p64 = por %p62, %p63
      %p66 = scmp.ne.s32.totalorder %s51, %s65
      %p67 = scmp.eq.s32.totalorder %s20, 0
      %p68 = por %p66, %p67
      %s70 = sadd.s32 %s69, 1
      %p73 = scmp.eq.s32.totalorder %s14, 1
      %p74 = scmp.ne.s32.totalorder %s69, %s71
      %p75 = scmp.eq.s32.totalorder %s14, 0
      %p76 = por %p74, %p75
      %p77 = scmp.ne.s32.totalorder %s69, %s71
      %p78 = scmp.eq.s32.totalorder %s19, 1
      %p79 = por %p77, %p78
      %p80 = scmp.ne.s32.totalorder %s71, %s72
      %p81 = scmp.eq.s32.totalorder %s19, 0
      %p82 = por %p80, %p81
      %p83 = scmp.ne.s32.totalorder %s71, %s72
      %p84 = scmp.eq.s32.totalorder %s20, 1
      %p85 = por %p83, %p84
      %p87 = scmp.ne.s32.totalorder %s72, %s86
      %p88 = scmp.eq.s32.totalorder %s20, 0
      %p89 = por %p87, %p88
      %s90 = ssub.s32 %s14, %s21
      %p91 = scmp.eq.s32.totalorder %s90, 0
      %s93 = sadd.s32 %s92, 1
      %s94 = scalar_select %p91, %s92, %s93
      %p97 = pneg %p91
      %p98 = scmp.eq.s32.totalorder %s14, 1
      %p99 = por %p97, %p98
      %p100 = scmp.ne.s32.totalorder %s92, %s95
      %p101 = scmp.eq.s32.totalorder %s14, 0
      %p102 = por %p100, %p101
      %p103 = scmp.ne.s32.totalorder %s92, %s95
      %p104 = scmp.eq.s32.totalorder %s19, 1
      %p105 = por %p103, %p104
      %p106 = scmp.ne.s32.totalorder %s95, %s96
      %p107 = scmp.eq.s32.totalorder %s19, 0
      %p108 = por %p106, %p107
      %p109 = scmp.ne.s32.totalorder %s95, %s96
      %p110 = scmp.eq.s32.totalorder %s20, 1
      %p111 = por %p109, %p110
      %p113 = scmp.ne.s32.totalorder %s96, %s112
      %p114 = scmp.eq.s32.totalorder %s20, 0
      %p115 = por %p113, %p114
      %s116 = ssub.s32 %s14, %s21
      %p117 = scmp.eq.s32.totalorder %s116, 0
      %s119 = sadd.s32 %s118, 1
      %s120 = scalar_select %p117, %s118, %s119
      %p123 = pneg %p117
      %p124 = scmp.eq.s32.totalorder %s14, 1
      %p125 = por %p123, %p124
      %p126 = scmp.ne.s32.totalorder %s118, %s121
      %p127 = scmp.eq.s32.totalorder %s14, 0
      %p128 = por %p126, %p127
      %p129 = scmp.ne.s32.totalorder %s118, %s121
      %p130 = scmp.eq.s32.totalorder %s19, 1
      %p131 = por %p129, %p130
      %p132 = scmp.ne.s32.totalorder %s121, %s122
      %p133 = scmp.eq.s32.totalorder %s19, 0
      %p134 = por %p132, %p133
      %p135 = scmp.ne.s32.totalorder %s121, %s122
      %p136 = scmp.eq.s32.totalorder %s20, 1
      %p137 = por %p135, %p136
      %p139 = scmp.ne.s32.totalorder %s122, %s138
      %p140 = scmp.eq.s32.totalorder %s20, 0
      %p141 = por %p139, %p140
      %p142 = scmp.le.s32.totalorder 1, %s14
      %p143 = scmp.lt.s32.totalorder %s14, 3
      %p144 = pnand %p142, %p143
      %p145 = pneg %p144
      // Predicated region
      $region9: #{partial_t5_forward.1} parent=5 // pred_check
        _
      $region10: #{partial_t5_forward.1} parent=5 // pred_check_branch
        %147 = sbr.rel (%p144) target = $region12
      $region11: #{partial_t5_forward.1} parent=5 // pred_region
        %s148 = ssub.s32 %s14, 1
        // Predicated region
        $region13: #{partial_t5_forward.1} parent=11 // pred_check
          %p149 = pneg %p61
        $region14: #{partial_t5_forward.1} parent=11 // pred_check_branch
          %151 = sbr.rel (%p149) target = $region16
        $region15: #{partial_t5_forward.1} parent=11 // pred_region
          _
        $region16: #{partial_t5_forward.1} parent=11 // pred_fallthru
          _
        // Predicated region
        $region17: #{partial_t5_forward.1} parent=11 // pred_check
          %p152 = pneg %p82
        $region18: #{partial_t5_forward.1} parent=11 // pred_check_branch
          %154 = sbr.rel (%p152) target = $region20
        $region19: #{partial_t5_forward.1} parent=11 // pred_region
          _
        $region20: #{partial_t5_forward.1} parent=11 // pred_fallthru
          _
      $region12: #{partial_t5_forward.1} parent=5 // pred_fallthru
        _
      %p155 = scmp.lt.s32.totalorder %s14, 2
      // Predicated region
      $region21: #{partial_t5_forward.1} parent=5 // pred_check
        %p156 = pneg %p155
      $region22: #{partial_t5_forward.1} parent=5 // pred_check_branch
        %158 = sbr.rel (%p156) target = $region24
      $region23: #{partial_t5_forward.1} parent=5 // pred_region
        // Predicated region
        $region25: #{partial_t5_forward.1} parent=23 // pred_check
          %p159 = pneg %p34
        $region26: #{partial_t5_forward.1} parent=23 // pred_check_branch
          %161 = sbr.rel (%p159) target = $region28
        $region27: #{partial_t5_forward.1} parent=23 // pred_region
          %p162 = scmp.lt.s32.totalorder %s14, 1
          %s163 = scalar_select %p162, %s14, 1
          %s164 = smul.addr %s163, 4
          %s165 = smul.addr %s164, 4
          %s166 = scalar_lea.vmem %s0, %s165
        $region28: #{partial_t5_forward.1} parent=23 // pred_fallthru
          _
      $region24: #{partial_t5_forward.1} parent=5 // pred_fallthru
        _
      %p167 = scmp.le.s32.totalorder 1, %s14
      %p168 = scmp.lt.s32.totalorder %s14, 3
      %p169 = pnand %p167, %p168
      %p170 = pneg %p169
      // Predicated region
      $region29: #{partial_t5_forward.1} parent=5 // pred_check
        _
      $region30: #{partial_t5_forward.1} parent=5 // pred_check_branch
        %172 = sbr.rel (%p169) target = $region32
      $region31: #{partial_t5_forward.1} parent=5 // pred_region
        %s173 = ssub.s32 %s14, 1
        %p174 = scmp.lt.s32.totalorder %s19, 1
        %s175 = scalar_select %p174, %s19, 1
        %s176 = smul.addr %s175, 4
        %s177 = smul.addr %s176, 4
        %s178 = scalar_lea.vmem %s0, %s177
        %p179 = pneg %p40
        %p180 = pneg %p37
        %p181 = pneg %p61
        %p182 = pneg %p58
        %p183 = pneg %p82
        %p184 = pneg %p79
        %p185 = pneg %p108
        %p186 = pneg %p105
        %s187 = sand.u32 %s95, 1
        %s188 = scalar_lea.sflag [#allocation3], %s187
        %s189 = sand.u32 %s95, 1
        %s190 = smul.addr %s189, 64
        %s191 = scalar_lea.vmem [#allocation2], %s190
        %p192 = pneg %p134
        %p193 = pneg %p131
        %p194 = scmp.lt.s32.totalorder %s19, 1
        %s195 = scalar_select %p194, %s19, 1
        %s196 = smul.addr %s195, 4
        %s197 = smul.addr %s196, 8
        %s198 = scalar_lea.vmem %s4, %s197
        %p199 = scmp.lt.s32.totalorder %s19, 1
        %s200 = scalar_select %p199, %s19, 1
        %s201 = smul.addr %s200, 4
        %s202 = smul.addr %s201, 4
        %s203 = scalar_lea.vmem %s0, %s202
        %p204 = scmp.lt.s32.totalorder %s19, 1
        %s205 = scalar_select %p204, %s19, 1
        %s206 = smul.addr %s205, 4
        %s207 = smul.addr %s206, 8
        %s208 = scalar_lea.vmem %s4, %s207
        %v210 = vld [vmem:[%s203] sm:$0xff]
        %v211 = vld [vmem:[%s203 + $0x8] sm:$0xff]
        %v212 = vld [vmem:[%s1] sm:$0xff]
        %v213 = vld [vmem:[%s1 + $0x8] sm:$0xff]
        %v214 = vld [vmem:[%s1 + $0x10] sm:$0xff]
        %v215 = vld [vmem:[%s1 + $0x18] sm:$0xff]
        %v216 = vld [vmem:[%s1 + $0x20] sm:$0xff]
        %v217 = vld [vmem:[%s1 + $0x28] sm:$0xff]
        %v218 = vld [vmem:[%s1 + $0x30] sm:$0xff]
        %v219 = vld [vmem:[%s1 + $0x38] sm:$0xff]
        %v220 = vld [vmem:[%s1 + $0x40] sm:$0xff]
        %v221 = vld [vmem:[%s1 + $0x48] sm:$0xff]
        %v222 = vld [vmem:[%s1 + $0x50] sm:$0xff]
        %v223 = vld [vmem:[%s1 + $0x58] sm:$0xff]
        %v224 = vld [vmem:[%s1 + $0x60] sm:$0xff]
        %v225 = vld [vmem:[%s1 + $0x68] sm:$0xff]
        %v226 = vld [vmem:[%s1 + $0x70] sm:$0xff]
        %v227 = vld [vmem:[%s1 + $0x78] sm:$0xff]
        %v228 = vld [vmem:[%s1 + $0x80] sm:$0xff]
        %v229 = vld [vmem:[%s1 + $0x88] sm:$0xff]
        %v230 = vld [vmem:[%s1 + $0x90] sm:$0xff]
        %v231 = vld [vmem:[%s1 + $0x98] sm:$0xff]
        %v232 = vld [vmem:[%s1 + $0xa0] sm:$0xff]
        %v233 = vld [vmem:[%s1 + $0xa8] sm:$0xff]
        %v234 = vld [vmem:[%s1 + $0xb0] sm:$0xff]
        %v235 = vld [vmem:[%s1 + $0xb8] sm:$0xff]
        %v236 = vld [vmem:[%s1 + $0xc0] sm:$0xff]
        %v237 = vld [vmem:[%s1 + $0xc8] sm:$0xff]
        %v238 = vld [vmem:[%s1 + $0xd0] sm:$0xff]
        %v239 = vld [vmem:[%s1 + $0xd8] sm:$0xff]
        %v240 = vld [vmem:[%s1 + $0xe0] sm:$0xff]
        %v241 = vld [vmem:[%s1 + $0xe8] sm:$0xff]
        %v242 = vld [vmem:[%s1 + $0xf0] sm:$0xff]
        %v243 = vld [vmem:[%s1 + $0xf8] sm:$0xff]
        %v244 = vld [vmem:[%s1 + $0x100] sm:$0xff]
        %v245 = vld [vmem:[%s1 + $0x108] sm:$0xff]
        %v246 = vld [vmem:[%s1 + $0x110] sm:$0xff]
        %v247 = vld [vmem:[%s1 + $0x118] sm:$0xff]
        %v248 = vld [vmem:[%s1 + $0x120] sm:$0xff]
        %v249 = vld [vmem:[%s1 + $0x128] sm:$0xff]
        %v250 = vld [vmem:[%s1 + $0x130] sm:$0xff]
        %v251 = vld [vmem:[%s1 + $0x138] sm:$0xff]
        %v252 = vld [vmem:[%s1 + $0x140] sm:$0xff]
        %v253 = vld [vmem:[%s1 + $0x148] sm:$0xff]
        %v254 = vld [vmem:[%s1 + $0x150] sm:$0xff]
        %v255 = vld [vmem:[%s1 + $0x158] sm:$0xff]
        %v256 = vld [vmem:[%s1 + $0x160] sm:$0xff]
        %v257 = vld [vmem:[%s1 + $0x168] sm:$0xff]
        %v258 = vld [vmem:[%s1 + $0x170] sm:$0xff]
        %v259 = vld [vmem:[%s1 + $0x178] sm:$0xff]
        %v260 = vld [vmem:[%s1 + $0x180] sm:$0xff]
        %v261 = vld [vmem:[%s1 + $0x188] sm:$0xff]
        %v262 = vld [vmem:[%s1 + $0x190] sm:$0xff]
        %v263 = vld [vmem:[%s1 + $0x198] sm:$0xff]
        %v264 = vld [vmem:[%s1 + $0x1a0] sm:$0xff]
        %v265 = vld [vmem:[%s1 + $0x1a8] sm:$0xff]
        %v266 = vld [vmem:[%s1 + $0x1b0] sm:$0xff]
        %v267 = vld [vmem:[%s1 + $0x1b8] sm:$0xff]
        %v268 = vld [vmem:[%s1 + $0x1c0] sm:$0xff]
        %v269 = vld [vmem:[%s1 + $0x1c8] sm:$0xff]
        %v270 = vld [vmem:[%s1 + $0x1d0] sm:$0xff]
        %v271 = vld [vmem:[%s1 + $0x1d8] sm:$0xff]
        %v272 = vld [vmem:[%s1 + $0x1e0] sm:$0xff]
        %v273 = vld [vmem:[%s1 + $0x1e8] sm:$0xff]
        %v274 = vld [vmem:[%s1 + $0x1f0] sm:$0xff]
        %v275 = vld [vmem:[%s1 + $0x1f8] sm:$0xff]
        %v276 = vld [vmem:[%s1 + $0x200] sm:$0xff]
        %v277 = vld [vmem:[%s1 + $0x208] sm:$0xff]
        %v278 = vld [vmem:[%s1 + $0x210] sm:$0xff]
        %v279 = vld [vmem:[%s1 + $0x218] sm:$0xff]
        %v280 = vld [vmem:[%s1 + $0x220] sm:$0xff]
        %v281 = vld [vmem:[%s1 + $0x228] sm:$0xff]
        %v282 = vld [vmem:[%s1 + $0x230] sm:$0xff]
        %v283 = vld [vmem:[%s1 + $0x238] sm:$0xff]
        %v284 = vld [vmem:[%s1 + $0x240] sm:$0xff]
        %v285 = vld [vmem:[%s1 + $0x248] sm:$0xff]
        %v286 = vld [vmem:[%s1 + $0x250] sm:$0xff]
        %v287 = vld [vmem:[%s1 + $0x258] sm:$0xff]
        %v288 = vld [vmem:[%s1 + $0x260] sm:$0xff]
        %v289 = vld [vmem:[%s1 + $0x268] sm:$0xff]
        %v290 = vld [vmem:[%s1 + $0x270] sm:$0xff]
        %v291 = vld [vmem:[%s1 + $0x278] sm:$0xff]
        %v292 = vld [vmem:[%s1 + $0x280] sm:$0xff]
        %v293 = vld [vmem:[%s1 + $0x288] sm:$0xff]
        %v294 = vld [vmem:[%s1 + $0x290] sm:$0xff]
        %v295 = vld [vmem:[%s1 + $0x298] sm:$0xff]
        %v296 = vld [vmem:[%s1 + $0x2a0] sm:$0xff]
        %v297 = vld [vmem:[%s1 + $0x2a8] sm:$0xff]
        %v298 = vld [vmem:[%s1 + $0x2b0] sm:$0xff]
        %v299 = vld [vmem:[%s1 + $0x2b8] sm:$0xff]
        %v300 = vld [vmem:[%s1 + $0x2c0] sm:$0xff]
        %v301 = vld [vmem:[%s1 + $0x2c8] sm:$0xff]
        %v302 = vld [vmem:[%s1 + $0x2d0] sm:$0xff]
        %v303 = vld [vmem:[%s1 + $0x2d8] sm:$0xff]
        %v304 = vld [vmem:[%s1 + $0x2e0] sm:$0xff]
        %v305 = vld [vmem:[%s1 + $0x2e8] sm:$0xff]
        %v306 = vld [vmem:[%s1 + $0x2f0] sm:$0xff]
        %v307 = vld [vmem:[%s1 + $0x2f8] sm:$0xff]
        %v308 = vld [vmem:[%s1 + $0x300] sm:$0xff]
        %v309 = vld [vmem:[%s1 + $0x308] sm:$0xff]
        %v310 = vld [vmem:[%s1 + $0x310] sm:$0xff]
        %v311 = vld [vmem:[%s1 + $0x318] sm:$0xff]
        %v312 = vld [vmem:[%s1 + $0x320] sm:$0xff]
        %v313 = vld [vmem:[%s1 + $0x328] sm:$0xff]
        %v314 = vld [vmem:[%s1 + $0x330] sm:$0xff]
        %v315 = vld [vmem:[%s1 + $0x338] sm:$0xff]
        %v316 = vld [vmem:[%s1 + $0x340] sm:$0xff]
        %v317 = vld [vmem:[%s1 + $0x348] sm:$0xff]
        %v318 = vld [vmem:[%s1 + $0x350] sm:$0xff]
        %v319 = vld [vmem:[%s1 + $0x358] sm:$0xff]
        %v320 = vld [vmem:[%s1 + $0x360] sm:$0xff]
        %v321 = vld [vmem:[%s1 + $0x368] sm:$0xff]
        %v322 = vld [vmem:[%s1 + $0x370] sm:$0xff]
        %v323 = vld [vmem:[%s1 + $0x378] sm:$0xff]
        %v324 = vld [vmem:[%s1 + $0x380] sm:$0xff]
        %v325 = vld [vmem:[%s1 + $0x388] sm:$0xff]
        %v326 = vld [vmem:[%s1 + $0x390] sm:$0xff]
        %v327 = vld [vmem:[%s1 + $0x398] sm:$0xff]
        %v328 = vld [vmem:[%s1 + $0x3a0] sm:$0xff]
        %v329 = vld [vmem:[%s1 + $0x3a8] sm:$0xff]
        %v330 = vld [vmem:[%s1 + $0x3b0] sm:$0xff]
        %v331 = vld [vmem:[%s1 + $0x3b8] sm:$0xff]
        %v332 = vld [vmem:[%s1 + $0x3c0] sm:$0xff]
        %v333 = vld [vmem:[%s1 + $0x3c8] sm:$0xff]
        %v334 = vld [vmem:[%s1 + $0x3d0] sm:$0xff]
        %v335 = vld [vmem:[%s1 + $0x3d8] sm:$0xff]
        %v336 = vld [vmem:[%s1 + $0x3e0] sm:$0xff]
        %v337 = vld [vmem:[%s1 + $0x3e8] sm:$0xff]
        %v338 = vld [vmem:[%s1 + $0x3f0] sm:$0xff]
        %v339 = vld [vmem:[%s1 + $0x3f8] sm:$0xff]
        %v340 = vld [vmem:[%s1 + $0x400] sm:$0xff]
        %v341 = vld [vmem:[%s1 + $0x408] sm:$0xff]
        %v342 = vld [vmem:[%s1 + $0x410] sm:$0xff]
        %v343 = vld [vmem:[%s1 + $0x418] sm:$0xff]
        %v344 = vld [vmem:[%s1 + $0x420] sm:$0xff]
        %v345 = vld [vmem:[%s1 + $0x428] sm:$0xff]
        %v346 = vld [vmem:[%s1 + $0x430] sm:$0xff]
        %v347 = vld [vmem:[%s1 + $0x438] sm:$0xff]
        %v348 = vld [vmem:[%s1 + $0x440] sm:$0xff]
        %v349 = vld [vmem:[%s1 + $0x448] sm:$0xff]
        %v350 = vld [vmem:[%s1 + $0x450] sm:$0xff]
        %v351 = vld [vmem:[%s1 + $0x458] sm:$0xff]
        %v352 = vld [vmem:[%s1 + $0x460] sm:$0xff]
        %v353 = vld [vmem:[%s1 + $0x468] sm:$0xff]
        %v354 = vld [vmem:[%s1 + $0x470] sm:$0xff]
        %v355 = vld [vmem:[%s1 + $0x478] sm:$0xff]
        %v356 = vld [vmem:[%s1 + $0x480] sm:$0xff]
        %v357 = vld [vmem:[%s1 + $0x488] sm:$0xff]
        %v358 = vld [vmem:[%s1 + $0x490] sm:$0xff]
        %v359 = vld [vmem:[%s1 + $0x498] sm:$0xff]
        %v360 = vld [vmem:[%s1 + $0x4a0] sm:$0xff]
        %v361 = vld [vmem:[%s1 + $0x4a8] sm:$0xff]
        %v362 = vld [vmem:[%s1 + $0x4b0] sm:$0xff]
        %v363 = vld [vmem:[%s1 + $0x4b8] sm:$0xff]
        %v364 = vld [vmem:[%s1 + $0x4c0] sm:$0xff]
        %v365 = vld [vmem:[%s1 + $0x4c8] sm:$0xff]
        %v366 = vld [vmem:[%s1 + $0x4d0] sm:$0xff]
        %v367 = vld [vmem:[%s1 + $0x4d8] sm:$0xff]
        %v368 = vld [vmem:[%s1 + $0x4e0] sm:$0xff]
        %v369 = vld [vmem:[%s1 + $0x4e8] sm:$0xff]
        %v370 = vld [vmem:[%s1 + $0x4f0] sm:$0xff]
        %v371 = vld [vmem:[%s1 + $0x4f8] sm:$0xff]
        %v372 = vld [vmem:[%s1 + $0x500] sm:$0xff]
        %v373 = vld [vmem:[%s1 + $0x508] sm:$0xff]
        %v374 = vld [vmem:[%s1 + $0x510] sm:$0xff]
        %v375 = vld [vmem:[%s1 + $0x518] sm:$0xff]
        %v376 = vld [vmem:[%s1 + $0x520] sm:$0xff]
        %v377 = vld [vmem:[%s1 + $0x528] sm:$0xff]
        %v378 = vld [vmem:[%s1 + $0x530] sm:$0xff]
        %v379 = vld [vmem:[%s1 + $0x538] sm:$0xff]
        %v380 = vld [vmem:[%s1 + $0x540] sm:$0xff]
        %v381 = vld [vmem:[%s1 + $0x548] sm:$0xff]
        %v382 = vld [vmem:[%s1 + $0x550] sm:$0xff]
        %v383 = vld [vmem:[%s1 + $0x558] sm:$0xff]
        %v384 = vld [vmem:[%s1 + $0x560] sm:$0xff]
        %v385 = vld [vmem:[%s1 + $0x568] sm:$0xff]
        %v386 = vld [vmem:[%s1 + $0x570] sm:$0xff]
        %v387 = vld [vmem:[%s1 + $0x578] sm:$0xff]
        %v388 = vld [vmem:[%s1 + $0x580] sm:$0xff]
        %v389 = vld [vmem:[%s1 + $0x588] sm:$0xff]
        %v390 = vld [vmem:[%s1 + $0x590] sm:$0xff]
        %v391 = vld [vmem:[%s1 + $0x598] sm:$0xff]
        %v392 = vld [vmem:[%s1 + $0x5a0] sm:$0xff]
        %v393 = vld [vmem:[%s1 + $0x5a8] sm:$0xff]
        %v394 = vld [vmem:[%s1 + $0x5b0] sm:$0xff]
        %v395 = vld [vmem:[%s1 + $0x5b8] sm:$0xff]
        %v396 = vld [vmem:[%s1 + $0x5c0] sm:$0xff]
        %v397 = vld [vmem:[%s1 + $0x5c8] sm:$0xff]
        %v398 = vld [vmem:[%s1 + $0x5d0] sm:$0xff]
        %v399 = vld [vmem:[%s1 + $0x5d8] sm:$0xff]
        %v400 = vld [vmem:[%s1 + $0x5e0] sm:$0xff]
        %v401 = vld [vmem:[%s1 + $0x5e8] sm:$0xff]
        %v402 = vld [vmem:[%s1 + $0x5f0] sm:$0xff]
        %v403 = vld [vmem:[%s1 + $0x5f8] sm:$0xff]
        %v404 = vld [vmem:[%s1 + $0x600] sm:$0xff]
        %v405 = vld [vmem:[%s1 + $0x608] sm:$0xff]
        %v406 = vld [vmem:[%s1 + $0x610] sm:$0xff]
        %v407 = vld [vmem:[%s1 + $0x618] sm:$0xff]
        %v408 = vld [vmem:[%s1 + $0x620] sm:$0xff]
        %v409 = vld [vmem:[%s1 + $0x628] sm:$0xff]
        %v410 = vld [vmem:[%s1 + $0x630] sm:$0xff]
        %v411 = vld [vmem:[%s1 + $0x638] sm:$0xff]
        %v412 = vld [vmem:[%s1 + $0x640] sm:$0xff]
        %v413 = vld [vmem:[%s1 + $0x648] sm:$0xff]
        %v414 = vld [vmem:[%s1 + $0x650] sm:$0xff]
        %v415 = vld [vmem:[%s1 + $0x658] sm:$0xff]
        %v416 = vld [vmem:[%s1 + $0x660] sm:$0xff]
        %v417 = vld [vmem:[%s1 + $0x668] sm:$0xff]
        %v418 = vld [vmem:[%s1 + $0x670] sm:$0xff]
        %v419 = vld [vmem:[%s1 + $0x678] sm:$0xff]
        %v420 = vld [vmem:[%s1 + $0x680] sm:$0xff]
        %v421 = vld [vmem:[%s1 + $0x688] sm:$0xff]
        %v422 = vld [vmem:[%s1 + $0x690] sm:$0xff]
        %v423 = vld [vmem:[%s1 + $0x698] sm:$0xff]
        %v424 = vld [vmem:[%s1 + $0x6a0] sm:$0xff]
        %v425 = vld [vmem:[%s1 + $0x6a8] sm:$0xff]
        %v426 = vld [vmem:[%s1 + $0x6b0] sm:$0xff]
        %v427 = vld [vmem:[%s1 + $0x6b8] sm:$0xff]
        %v428 = vld [vmem:[%s1 + $0x6c0] sm:$0xff]
        %v429 = vld [vmem:[%s1 + $0x6c8] sm:$0xff]
        %v430 = vld [vmem:[%s1 + $0x6d0] sm:$0xff]
        %v431 = vld [vmem:[%s1 + $0x6d8] sm:$0xff]
        %v432 = vld [vmem:[%s1 + $0x6e0] sm:$0xff]
        %v433 = vld [vmem:[%s1 + $0x6e8] sm:$0xff]
        %v434 = vld [vmem:[%s1 + $0x6f0] sm:$0xff]
        %v435 = vld [vmem:[%s1 + $0x6f8] sm:$0xff]
        %v436 = vld [vmem:[%s1 + $0x700] sm:$0xff]
        %v437 = vld [vmem:[%s1 + $0x708] sm:$0xff]
        %v438 = vld [vmem:[%s1 + $0x710] sm:$0xff]
        %v439 = vld [vmem:[%s1 + $0x718] sm:$0xff]
        %v440 = vld [vmem:[%s1 + $0x720] sm:$0xff]
        %v441 = vld [vmem:[%s1 + $0x728] sm:$0xff]
        %v442 = vld [vmem:[%s1 + $0x730] sm:$0xff]
        %v443 = vld [vmem:[%s1 + $0x738] sm:$0xff]
        %v444 = vld [vmem:[%s1 + $0x740] sm:$0xff]
        %v445 = vld [vmem:[%s1 + $0x748] sm:$0xff]
        %v446 = vld [vmem:[%s1 + $0x750] sm:$0xff]
        %v447 = vld [vmem:[%s1 + $0x758] sm:$0xff]
        %v448 = vld [vmem:[%s1 + $0x760] sm:$0xff]
        %v449 = vld [vmem:[%s1 + $0x768] sm:$0xff]
        %v450 = vld [vmem:[%s1 + $0x770] sm:$0xff]
        %v451 = vld [vmem:[%s1 + $0x778] sm:$0xff]
        %v452 = vld [vmem:[%s1 + $0x780] sm:$0xff]
        %v453 = vld [vmem:[%s1 + $0x788] sm:$0xff]
        %v454 = vld [vmem:[%s1 + $0x790] sm:$0xff]
        %v455 = vld [vmem:[%s1 + $0x798] sm:$0xff]
        %v456 = vld [vmem:[%s1 + $0x7a0] sm:$0xff]
        %v457 = vld [vmem:[%s1 + $0x7a8] sm:$0xff]
        %v458 = vld [vmem:[%s1 + $0x7b0] sm:$0xff]
        %v459 = vld [vmem:[%s1 + $0x7b8] sm:$0xff]
        %v460 = vld [vmem:[%s1 + $0x7c0] sm:$0xff]
        %v461 = vld [vmem:[%s1 + $0x7c8] sm:$0xff]
        %v462 = vld [vmem:[%s1 + $0x7d0] sm:$0xff]
        %v463 = vld [vmem:[%s1 + $0x7d8] sm:$0xff]
        %v464 = vld [vmem:[%s1 + $0x7e0] sm:$0xff]
        %v465 = vld [vmem:[%s1 + $0x7e8] sm:$0xff]
        %v466 = vld [vmem:[%s1 + $0x7f0] sm:$0xff]
        %v467 = vld [vmem:[%s1 + $0x7f8] sm:$0xff]
        %v468 = vld [vmem:[%s1 + $0x800] sm:$0xff]
        %v469 = vld [vmem:[%s1 + $0x808] sm:$0xff]
        %v470 = vld [vmem:[%s1 + $0x810] sm:$0xff]
        %v471 = vld [vmem:[%s1 + $0x818] sm:$0xff]
        %v472 = vld [vmem:[%s1 + $0x820] sm:$0xff]
        %v473 = vld [vmem:[%s1 + $0x828] sm:$0xff]
        %v474 = vld [vmem:[%s1 + $0x830] sm:$0xff]
        %v475 = vld [vmem:[%s1 + $0x838] sm:$0xff]
        %v476 = vld [vmem:[%s1 + $0x840] sm:$0xff]
        %v477 = vld [vmem:[%s1 + $0x848] sm:$0xff]
        %v478 = vld [vmem:[%s1 + $0x850] sm:$0xff]
        %v479 = vld [vmem:[%s1 + $0x858] sm:$0xff]
        %v480 = vld [vmem:[%s1 + $0x860] sm:$0xff]
        %v481 = vld [vmem:[%s1 + $0x868] sm:$0xff]
        %v482 = vld [vmem:[%s1 + $0x870] sm:$0xff]
        %v483 = vld [vmem:[%s1 + $0x878] sm:$0xff]
        %v484 = vld [vmem:[%s1 + $0x880] sm:$0xff]
        %v485 = vld [vmem:[%s1 + $0x888] sm:$0xff]
        %v486 = vld [vmem:[%s1 + $0x890] sm:$0xff]
        %v487 = vld [vmem:[%s1 + $0x898] sm:$0xff]
        %v488 = vld [vmem:[%s1 + $0x8a0] sm:$0xff]
        %v489 = vld [vmem:[%s1 + $0x8a8] sm:$0xff]
        %v490 = vld [vmem:[%s1 + $0x8b0] sm:$0xff]
        %v491 = vld [vmem:[%s1 + $0x8b8] sm:$0xff]
        %v492 = vld [vmem:[%s1 + $0x8c0] sm:$0xff]
        %v493 = vld [vmem:[%s1 + $0x8c8] sm:$0xff]
        %v494 = vld [vmem:[%s1 + $0x8d0] sm:$0xff]
        %v495 = vld [vmem:[%s1 + $0x8d8] sm:$0xff]
        %v496 = vld [vmem:[%s1 + $0x8e0] sm:$0xff]
        %v497 = vld [vmem:[%s1 + $0x8e8] sm:$0xff]
        %v498 = vld [vmem:[%s1 + $0x8f0] sm:$0xff]
        %v499 = vld [vmem:[%s1 + $0x8f8] sm:$0xff]
        %v500 = vld [vmem:[%s1 + $0x900] sm:$0xff]
        %v501 = vld [vmem:[%s1 + $0x908] sm:$0xff]
        %v502 = vld [vmem:[%s1 + $0x910] sm:$0xff]
        %v503 = vld [vmem:[%s1 + $0x918] sm:$0xff]
        %v504 = vld [vmem:[%s1 + $0x920] sm:$0xff]
        %v505 = vld [vmem:[%s1 + $0x928] sm:$0xff]
        %v506 = vld [vmem:[%s1 + $0x930] sm:$0xff]
        %v507 = vld [vmem:[%s1 + $0x938] sm:$0xff]
        %v508 = vld [vmem:[%s1 + $0x940] sm:$0xff]
        %v509 = vld [vmem:[%s1 + $0x948] sm:$0xff]
        %v510 = vld [vmem:[%s1 + $0x950] sm:$0xff]
        %v511 = vld [vmem:[%s1 + $0x958] sm:$0xff]
        %v512 = vld [vmem:[%s1 + $0x960] sm:$0xff]
        %v513 = vld [vmem:[%s1 + $0x968] sm:$0xff]
        %v514 = vld [vmem:[%s1 + $0x970] sm:$0xff]
        %v515 = vld [vmem:[%s1 + $0x978] sm:$0xff]
        %v516 = vld [vmem:[%s1 + $0x980] sm:$0xff]
        %v517 = vld [vmem:[%s1 + $0x988] sm:$0xff]
        %v518 = vld [vmem:[%s1 + $0x990] sm:$0xff]
        %v519 = vld [vmem:[%s1 + $0x998] sm:$0xff]
        %v520 = vld [vmem:[%s1 + $0x9a0] sm:$0xff]
        %v521 = vld [vmem:[%s1 + $0x9a8] sm:$0xff]
        %v522 = vld [vmem:[%s1 + $0x9b0] sm:$0xff]
        %v523 = vld [vmem:[%s1 + $0x9b8] sm:$0xff]
        %v524 = vld [vmem:[%s1 + $0x9c0] sm:$0xff]
        %v525 = vld [vmem:[%s1 + $0x9c8] sm:$0xff]
        %v526 = vld [vmem:[%s1 + $0x9d0] sm:$0xff]
        %v527 = vld [vmem:[%s1 + $0x9d8] sm:$0xff]
        %v528 = vld [vmem:[%s1 + $0x9e0] sm:$0xff]
        %v529 = vld [vmem:[%s1 + $0x9e8] sm:$0xff]
        %v530 = vld [vmem:[%s1 + $0x9f0] sm:$0xff]
        %v531 = vld [vmem:[%s1 + $0x9f8] sm:$0xff]
        %v532 = vld [vmem:[%s1 + $0xa00] sm:$0xff]
        %v533 = vld [vmem:[%s1 + $0xa08] sm:$0xff]
        %v534 = vld [vmem:[%s1 + $0xa10] sm:$0xff]
        %v535 = vld [vmem:[%s1 + $0xa18] sm:$0xff]
        %v536 = vld [vmem:[%s1 + $0xa20] sm:$0xff]
        %v537 = vld [vmem:[%s1 + $0xa28] sm:$0xff]
        %v538 = vld [vmem:[%s1 + $0xa30] sm:$0xff]
        %v539 = vld [vmem:[%s1 + $0xa38] sm:$0xff]
        %v540 = vld [vmem:[%s1 + $0xa40] sm:$0xff]
        %v541 = vld [vmem:[%s1 + $0xa48] sm:$0xff]
        %v542 = vld [vmem:[%s1 + $0xa50] sm:$0xff]
        %v543 = vld [vmem:[%s1 + $0xa58] sm:$0xff]
        %v544 = vld [vmem:[%s1 + $0xa60] sm:$0xff]
        %v545 = vld [vmem:[%s1 + $0xa68] sm:$0xff]
        %v546 = vld [vmem:[%s1 + $0xa70] sm:$0xff]
        %v547 = vld [vmem:[%s1 + $0xa78] sm:$0xff]
        %v548 = vld [vmem:[%s1 + $0xa80] sm:$0xff]
        %v549 = vld [vmem:[%s1 + $0xa88] sm:$0xff]
        %v550 = vld [vmem:[%s1 + $0xa90] sm:$0xff]
        %v551 = vld [vmem:[%s1 + $0xa98] sm:$0xff]
        %v552 = vld [vmem:[%s1 + $0xaa0] sm:$0xff]
        %v553 = vld [vmem:[%s1 + $0xaa8] sm:$0xff]
        %v554 = vld [vmem:[%s1 + $0xab0] sm:$0xff]
        %v555 = vld [vmem:[%s1 + $0xab8] sm:$0xff]
        %v556 = vld [vmem:[%s1 + $0xac0] sm:$0xff]
        %v557 = vld [vmem:[%s1 + $0xac8] sm:$0xff]
        %v558 = vld [vmem:[%s1 + $0xad0] sm:$0xff]
        %v559 = vld [vmem:[%s1 + $0xad8] sm:$0xff]
        %v560 = vld [vmem:[%s1 + $0xae0] sm:$0xff]
        %v561 = vld [vmem:[%s1 + $0xae8] sm:$0xff]
        %v562 = vld [vmem:[%s1 + $0xaf0] sm:$0xff]
        %v563 = vld [vmem:[%s1 + $0xaf8] sm:$0xff]
        %v564 = vld [vmem:[%s1 + $0xb00] sm:$0xff]
        %v565 = vld [vmem:[%s1 + $0xb08] sm:$0xff]
        %v566 = vld [vmem:[%s1 + $0xb10] sm:$0xff]
        %v567 = vld [vmem:[%s1 + $0xb18] sm:$0xff]
        %v568 = vld [vmem:[%s1 + $0xb20] sm:$0xff]
        %v569 = vld [vmem:[%s1 + $0xb28] sm:$0xff]
        %v570 = vld [vmem:[%s1 + $0xb30] sm:$0xff]
        %v571 = vld [vmem:[%s1 + $0xb38] sm:$0xff]
        %v572 = vld [vmem:[%s1 + $0xb40] sm:$0xff]
        %v573 = vld [vmem:[%s1 + $0xb48] sm:$0xff]
        %v574 = vld [vmem:[%s1 + $0xb50] sm:$0xff]
        %v575 = vld [vmem:[%s1 + $0xb58] sm:$0xff]
        %v576 = vld [vmem:[%s1 + $0xb60] sm:$0xff]
        %v577 = vld [vmem:[%s1 + $0xb68] sm:$0xff]
        %v578 = vld [vmem:[%s1 + $0xb70] sm:$0xff]
        %v579 = vld [vmem:[%s1 + $0xb78] sm:$0xff]
        %v580 = vld [vmem:[%s1 + $0xb80] sm:$0xff]
        %v581 = vld [vmem:[%s1 + $0xb88] sm:$0xff]
        %v582 = vld [vmem:[%s1 + $0xb90] sm:$0xff]
        %v583 = vld [vmem:[%s1 + $0xb98] sm:$0xff]
        %v584 = vld [vmem:[%s1 + $0xba0] sm:$0xff]
        %v585 = vld [vmem:[%s1 + $0xba8] sm:$0xff]
        %v586 = vld [vmem:[%s1 + $0xbb0] sm:$0xff]
        %v587 = vld [vmem:[%s1 + $0xbb8] sm:$0xff]
        %v588 = vld [vmem:[%s1 + $0xbc0] sm:$0xff]
        %v589 = vld [vmem:[%s1 + $0xbc8] sm:$0xff]
        %v590 = vld [vmem:[%s1 + $0xbd0] sm:$0xff]
        %v591 = vld [vmem:[%s1 + $0xbd8] sm:$0xff]
        %v592 = vld [vmem:[%s1 + $0xbe0] sm:$0xff]
        %v593 = vld [vmem:[%s1 + $0xbe8] sm:$0xff]
        %v594 = vld [vmem:[%s1 + $0xbf0] sm:$0xff]
        %v595 = vld [vmem:[%s1 + $0xbf8] sm:$0xff]
        %v596 = vld [vmem:[%s2] sm:$0xff]
        %v597 = vld [vmem:[%s2 + $0x8] sm:$0xf]
        %v600 = vlaneseq
        %v601 = vshrl.u32 %v600, 7
        %v602 = vsub.s32 0, %v601
        %v603 = vrot.slane %v596, %v602
        %v604 = vlaneseq
        %v605 = vshrl.u32 %v604, 7
        %v606 = vsub.s32 1, %v605
        %v607 = vrot.slane %v596, %v606
        %v608 = vlaneseq
        %v609 = vshrl.u32 %v608, 7
        %v610 = vsub.s32 2, %v609
        %v611 = vrot.slane %v596, %v610
        %v612 = vlaneseq
        %v613 = vshrl.u32 %v612, 7
        %v614 = vsub.s32 3, %v613
        %v615 = vrot.slane %v596, %v614
        %v616 = vlaneseq
        %v617 = vshrl.u32 %v616, 7
        %v618 = vsub.s32 4, %v617
        %v619 = vrot.slane %v596, %v618
        %v620 = vlaneseq
        %v621 = vshrl.u32 %v620, 7
        %v622 = vsub.s32 5, %v621
        %v623 = vrot.slane %v596, %v622
        %v624 = vlaneseq
        %v625 = vshrl.u32 %v624, 7
        %v626 = vsub.s32 6, %v625
        %v627 = vrot.slane %v596, %v626
        %v628 = vlaneseq
        %v629 = vshrl.u32 %v628, 7
        %v630 = vsub.s32 7, %v629
        %v631 = vrot.slane %v596, %v630
        %v632 = vlaneseq
        %v633 = vshrl.u32 %v632, 7
        %v634 = vsub.s32 0, %v633
        %v635 = vrot.slane %v597, %v634
        %v636 = vlaneseq
        %v637 = vshrl.u32 %v636, 7
        %v638 = vsub.s32 1, %v637
        %v639 = vrot.slane %v597, %v638
        %v640 = vlaneseq
        %v641 = vshrl.u32 %v640, 7
        %v642 = vsub.s32 2, %v641
        %v643 = vrot.slane %v597, %v642
        %v644 = vlaneseq
        %v645 = vshrl.u32 %v644, 7
        %v646 = vsub.s32 3, %v645
        %v647 = vrot.slane %v597, %v646
        %v662 = vunpack.c.l.b16 %v210
        %v663 = vunpack.c.h.b16 %v210
        %v664 = vunpack.c.l.b16 %v211
        %v665 = vunpack.c.h.b16 %v211
        %v666 = vpack.c.b16 %v662, %v662
        %v667 = vpack.c.b16 %v663, %v663
        %v668 = vpack.c.b16 %v664, %v664
        %v669 = vpack.c.b16 %v665, %v665
        %v1058 = vunpack.c.l.b16 %v212
        %v1059 = vunpack.c.h.b16 %v212
        %v1060 = vunpack.c.l.b16 %v213
        %v1061 = vunpack.c.h.b16 %v213
        %v1062 = vunpack.c.l.b16 %v214
        %v1063 = vunpack.c.h.b16 %v214
        %v1064 = vunpack.c.l.b16 %v215
        %v1065 = vunpack.c.h.b16 %v215
        %v1066 = vunpack.c.l.b16 %v216
        %v1067 = vunpack.c.h.b16 %v216
        %v1068 = vunpack.c.l.b16 %v217
        %v1069 = vunpack.c.h.b16 %v217
        %v1070 = vunpack.c.l.b16 %v218
        %v1071 = vunpack.c.h.b16 %v218
        %v1072 = vunpack.c.l.b16 %v219
        %v1073 = vunpack.c.h.b16 %v219
        %v1074 = vunpack.c.l.b16 %v220
        %v1075 = vunpack.c.h.b16 %v220
        %v1076 = vunpack.c.l.b16 %v221
        %v1077 = vunpack.c.h.b16 %v221
        %v1078 = vunpack.c.l.b16 %v222
        %v1079 = vunpack.c.h.b16 %v222
        %v1080 = vunpack.c.l.b16 %v223
        %v1081 = vunpack.c.h.b16 %v223
        %v1082 = vunpack.c.l.b16 %v224
        %v1083 = vunpack.c.h.b16 %v224
        %v1084 = vunpack.c.l.b16 %v225
        %v1085 = vunpack.c.h.b16 %v225
        %v1086 = vunpack.c.l.b16 %v226
        %v1087 = vunpack.c.h.b16 %v226
        %v1088 = vunpack.c.l.b16 %v227
        %v1089 = vunpack.c.h.b16 %v227
        %v1090 = vunpack.c.l.b16 %v228
        %v1091 = vunpack.c.h.b16 %v228
        %v1092 = vunpack.c.l.b16 %v229
        %v1093 = vunpack.c.h.b16 %v229
        %v1094 = vunpack.c.l.b16 %v230
        %v1095 = vunpack.c.h.b16 %v230
        %v1096 = vunpack.c.l.b16 %v231
        %v1097 = vunpack.c.h.b16 %v231
        %v1098 = vunpack.c.l.b16 %v232
        %v1099 = vunpack.c.h.b16 %v232
        %v1100 = vunpack.c.l.b16 %v233
        %v1101 = vunpack.c.h.b16 %v233
        %v1102 = vunpack.c.l.b16 %v234
        %v1103 = vunpack.c.h.b16 %v234
        %v1104 = vunpack.c.l.b16 %v235
        %v1105 = vunpack.c.h.b16 %v235
        %v1106 = vunpack.c.l.b16 %v236
        %v1107 = vunpack.c.h.b16 %v236
        %v1108 = vunpack.c.l.b16 %v237
        %v1109 = vunpack.c.h.b16 %v237
        %v1110 = vunpack.c.l.b16 %v238
        %v1111 = vunpack.c.h.b16 %v238
        %v1112 = vunpack.c.l.b16 %v239
        %v1113 = vunpack.c.h.b16 %v239
        %v1114 = vunpack.c.l.b16 %v240
        %v1115 = vunpack.c.h.b16 %v240
        %v1116 = vunpack.c.l.b16 %v241
        %v1117 = vunpack.c.h.b16 %v241
        %v1118 = vunpack.c.l.b16 %v242
        %v1119 = vunpack.c.h.b16 %v242
        %v1120 = vunpack.c.l.b16 %v243
        %v1121 = vunpack.c.h.b16 %v243
        %v1122 = vunpack.c.l.b16 %v244
        %v1123 = vunpack.c.h.b16 %v244
        %v1124 = vunpack.c.l.b16 %v245
        %v1125 = vunpack.c.h.b16 %v245
        %v1126 = vunpack.c.l.b16 %v246
        %v1127 = vunpack.c.h.b16 %v246
        %v1128 = vunpack.c.l.b16 %v247
        %v1129 = vunpack.c.h.b16 %v247
        %v1130 = vunpack.c.l.b16 %v248
        %v1131 = vunpack.c.h.b16 %v248
        %v1132 = vunpack.c.l.b16 %v249
        %v1133 = vunpack.c.h.b16 %v249
        %v1134 = vunpack.c.l.b16 %v250
        %v1135 = vunpack.c.h.b16 %v250
        %v1136 = vunpack.c.l.b16 %v251
        %v1137 = vunpack.c.h.b16 %v251
        %v1138 = vunpack.c.l.b16 %v252
        %v1139 = vunpack.c.h.b16 %v252
        %v1140 = vunpack.c.l.b16 %v253
        %v1141 = vunpack.c.h.b16 %v253
        %v1142 = vunpack.c.l.b16 %v254
        %v1143 = vunpack.c.h.b16 %v254
        %v1144 = vunpack.c.l.b16 %v255
        %v1145 = vunpack.c.h.b16 %v255
        %v1146 = vunpack.c.l.b16 %v256
        %v1147 = vunpack.c.h.b16 %v256
        %v1148 = vunpack.c.l.b16 %v257
        %v1149 = vunpack.c.h.b16 %v257
        %v1150 = vunpack.c.l.b16 %v258
        %v1151 = vunpack.c.h.b16 %v258
        %v1152 = vunpack.c.l.b16 %v259
        %v1153 = vunpack.c.h.b16 %v259
        %v1154 = vunpack.c.l.b16 %v260
        %v1155 = vunpack.c.h.b16 %v260
        %v1156 = vunpack.c.l.b16 %v261
        %v1157 = vunpack.c.h.b16 %v261
        %v1158 = vunpack.c.l.b16 %v262
        %v1159 = vunpack.c.h.b16 %v262
        %v1160 = vunpack.c.l.b16 %v263
        %v1161 = vunpack.c.h.b16 %v263
        %v1162 = vunpack.c.l.b16 %v264
        %v1163 = vunpack.c.h.b16 %v264
        %v1164 = vunpack.c.l.b16 %v265
        %v1165 = vunpack.c.h.b16 %v265
        %v1166 = vunpack.c.l.b16 %v266
        %v1167 = vunpack.c.h.b16 %v266
        %v1168 = vunpack.c.l.b16 %v267
        %v1169 = vunpack.c.h.b16 %v267
        %v1170 = vunpack.c.l.b16 %v268
        %v1171 = vunpack.c.h.b16 %v268
        %v1172 = vunpack.c.l.b16 %v269
        %v1173 = vunpack.c.h.b16 %v269
        %v1174 = vunpack.c.l.b16 %v270
        %v1175 = vunpack.c.h.b16 %v270
        %v1176 = vunpack.c.l.b16 %v271
        %v1177 = vunpack.c.h.b16 %v271
        %v1178 = vunpack.c.l.b16 %v272
        %v1179 = vunpack.c.h.b16 %v272
        %v1180 = vunpack.c.l.b16 %v273
        %v1181 = vunpack.c.h.b16 %v273
        %v1182 = vunpack.c.l.b16 %v274
        %v1183 = vunpack.c.h.b16 %v274
        %v1184 = vunpack.c.l.b16 %v275
        %v1185 = vunpack.c.h.b16 %v275
        %v1186 = vunpack.c.l.b16 %v276
        %v1187 = vunpack.c.h.b16 %v276
        %v1188 = vunpack.c.l.b16 %v277
        %v1189 = vunpack.c.h.b16 %v277
        %v1190 = vunpack.c.l.b16 %v278
        %v1191 = vunpack.c.h.b16 %v278
        %v1192 = vunpack.c.l.b16 %v279
        %v1193 = vunpack.c.h.b16 %v279
        %v1194 = vunpack.c.l.b16 %v280
        %v1195 = vunpack.c.h.b16 %v280
        %v1196 = vunpack.c.l.b16 %v281
        %v1197 = vunpack.c.h.b16 %v281
        %v1198 = vunpack.c.l.b16 %v282
        %v1199 = vunpack.c.h.b16 %v282
        %v1200 = vunpack.c.l.b16 %v283
        %v1201 = vunpack.c.h.b16 %v283
        %v1202 = vunpack.c.l.b16 %v284
        %v1203 = vunpack.c.h.b16 %v284
        %v1204 = vunpack.c.l.b16 %v285
        %v1205 = vunpack.c.h.b16 %v285
        %v1206 = vunpack.c.l.b16 %v286
        %v1207 = vunpack.c.h.b16 %v286
        %v1208 = vunpack.c.l.b16 %v287
        %v1209 = vunpack.c.h.b16 %v287
        %v1210 = vunpack.c.l.b16 %v288
        %v1211 = vunpack.c.h.b16 %v288
        %v1212 = vunpack.c.l.b16 %v289
        %v1213 = vunpack.c.h.b16 %v289
        %v1214 = vunpack.c.l.b16 %v290
        %v1215 = vunpack.c.h.b16 %v290
        %v1216 = vunpack.c.l.b16 %v291
        %v1217 = vunpack.c.h.b16 %v291
        %v1218 = vunpack.c.l.b16 %v292
        %v1219 = vunpack.c.h.b16 %v292
        %v1220 = vunpack.c.l.b16 %v293
        %v1221 = vunpack.c.h.b16 %v293
        %v1222 = vunpack.c.l.b16 %v294
        %v1223 = vunpack.c.h.b16 %v294
        %v1224 = vunpack.c.l.b16 %v295
        %v1225 = vunpack.c.h.b16 %v295
        %v1226 = vunpack.c.l.b16 %v296
        %v1227 = vunpack.c.h.b16 %v296
        %v1228 = vunpack.c.l.b16 %v297
        %v1229 = vunpack.c.h.b16 %v297
        %v1230 = vunpack.c.l.b16 %v298
        %v1231 = vunpack.c.h.b16 %v298
        %v1232 = vunpack.c.l.b16 %v299
        %v1233 = vunpack.c.h.b16 %v299
        %v1234 = vunpack.c.l.b16 %v300
        %v1235 = vunpack.c.h.b16 %v300
        %v1236 = vunpack.c.l.b16 %v301
        %v1237 = vunpack.c.h.b16 %v301
        %v1238 = vunpack.c.l.b16 %v302
        %v1239 = vunpack.c.h.b16 %v302
        %v1240 = vunpack.c.l.b16 %v303
        %v1241 = vunpack.c.h.b16 %v303
        %v1242 = vunpack.c.l.b16 %v304
        %v1243 = vunpack.c.h.b16 %v304
        %v1244 = vunpack.c.l.b16 %v305
        %v1245 = vunpack.c.h.b16 %v305
        %v1246 = vunpack.c.l.b16 %v306
        %v1247 = vunpack.c.h.b16 %v306
        %v1248 = vunpack.c.l.b16 %v307
        %v1249 = vunpack.c.h.b16 %v307
        %v1250 = vunpack.c.l.b16 %v308
        %v1251 = vunpack.c.h.b16 %v308
        %v1252 = vunpack.c.l.b16 %v309
        %v1253 = vunpack.c.h.b16 %v309
        %v1254 = vunpack.c.l.b16 %v310
        %v1255 = vunpack.c.h.b16 %v310
        %v1256 = vunpack.c.l.b16 %v311
        %v1257 = vunpack.c.h.b16 %v311
        %v1258 = vunpack.c.l.b16 %v312
        %v1259 = vunpack.c.h.b16 %v312
        %v1260 = vunpack.c.l.b16 %v313
        %v1261 = vunpack.c.h.b16 %v313
        %v1262 = vunpack.c.l.b16 %v314
        %v1263 = vunpack.c.h.b16 %v314
        %v1264 = vunpack.c.l.b16 %v315
        %v1265 = vunpack.c.h.b16 %v315
        %v1266 = vunpack.c.l.b16 %v316
        %v1267 = vunpack.c.h.b16 %v316
        %v1268 = vunpack.c.l.b16 %v317
        %v1269 = vunpack.c.h.b16 %v317
        %v1270 = vunpack.c.l.b16 %v318
        %v1271 = vunpack.c.h.b16 %v318
        %v1272 = vunpack.c.l.b16 %v319
        %v1273 = vunpack.c.h.b16 %v319
        %v1274 = vunpack.c.l.b16 %v320
        %v1275 = vunpack.c.h.b16 %v320
        %v1276 = vunpack.c.l.b16 %v321
        %v1277 = vunpack.c.h.b16 %v321
        %v1278 = vunpack.c.l.b16 %v322
        %v1279 = vunpack.c.h.b16 %v322
        %v1280 = vunpack.c.l.b16 %v323
        %v1281 = vunpack.c.h.b16 %v323
        %v1282 = vunpack.c.l.b16 %v324
        %v1283 = vunpack.c.h.b16 %v324
        %v1284 = vunpack.c.l.b16 %v325
        %v1285 = vunpack.c.h.b16 %v325
        %v1286 = vunpack.c.l.b16 %v326
        %v1287 = vunpack.c.h.b16 %v326
        %v1288 = vunpack.c.l.b16 %v327
        %v1289 = vunpack.c.h.b16 %v327
        %v1290 = vunpack.c.l.b16 %v328
        %v1291 = vunpack.c.h.b16 %v328
        %v1292 = vunpack.c.l.b16 %v329
        %v1293 = vunpack.c.h.b16 %v329
        %v1294 = vunpack.c.l.b16 %v330
        %v1295 = vunpack.c.h.b16 %v330
        %v1296 = vunpack.c.l.b16 %v331
        %v1297 = vunpack.c.h.b16 %v331
        %v1298 = vunpack.c.l.b16 %v332
        %v1299 = vunpack.c.h.b16 %v332
        %v1300 = vunpack.c.l.b16 %v333
        %v1301 = vunpack.c.h.b16 %v333
        %v1302 = vunpack.c.l.b16 %v334
        %v1303 = vunpack.c.h.b16 %v334
        %v1304 = vunpack.c.l.b16 %v335
        %v1305 = vunpack.c.h.b16 %v335
        %v1306 = vunpack.c.l.b16 %v336
        %v1307 = vunpack.c.h.b16 %v336
        %v1308 = vunpack.c.l.b16 %v337
        %v1309 = vunpack.c.h.b16 %v337
        %v1310 = vunpack.c.l.b16 %v338
        %v1311 = vunpack.c.h.b16 %v338
        %v1312 = vunpack.c.l.b16 %v339
        %v1313 = vunpack.c.h.b16 %v339
        %v1314 = vunpack.c.l.b16 %v340
        %v1315 = vunpack.c.h.b16 %v340
        %v1316 = vunpack.c.l.b16 %v341
        %v1317 = vunpack.c.h.b16 %v341
        %v1318 = vunpack.c.l.b16 %v342
        %v1319 = vunpack.c.h.b16 %v342
        %v1320 = vunpack.c.l.b16 %v343
        %v1321 = vunpack.c.h.b16 %v343
        %v1322 = vunpack.c.l.b16 %v344
        %v1323 = vunpack.c.h.b16 %v344
        %v1324 = vunpack.c.l.b16 %v345
        %v1325 = vunpack.c.h.b16 %v345
        %v1326 = vunpack.c.l.b16 %v346
        %v1327 = vunpack.c.h.b16 %v346
        %v1328 = vunpack.c.l.b16 %v347
        %v1329 = vunpack.c.h.b16 %v347
        %v1330 = vunpack.c.l.b16 %v348
        %v1331 = vunpack.c.h.b16 %v348
        %v1332 = vunpack.c.l.b16 %v349
        %v1333 = vunpack.c.h.b16 %v349
        %v1334 = vunpack.c.l.b16 %v350
        %v1335 = vunpack.c.h.b16 %v350
        %v1336 = vunpack.c.l.b16 %v351
        %v1337 = vunpack.c.h.b16 %v351
        %v1338 = vunpack.c.l.b16 %v352
        %v1339 = vunpack.c.h.b16 %v352
        %v1340 = vunpack.c.l.b16 %v353
        %v1341 = vunpack.c.h.b16 %v353
        %v1342 = vunpack.c.l.b16 %v354
        %v1343 = vunpack.c.h.b16 %v354
        %v1344 = vunpack.c.l.b16 %v355
        %v1345 = vunpack.c.h.b16 %v355
        %v1346 = vunpack.c.l.b16 %v356
        %v1347 = vunpack.c.h.b16 %v356
        %v1348 = vunpack.c.l.b16 %v357
        %v1349 = vunpack.c.h.b16 %v357
        %v1350 = vunpack.c.l.b16 %v358
        %v1351 = vunpack.c.h.b16 %v358
        %v1352 = vunpack.c.l.b16 %v359
        %v1353 = vunpack.c.h.b16 %v359
        %v1354 = vunpack.c.l.b16 %v360
        %v1355 = vunpack.c.h.b16 %v360
        %v1356 = vunpack.c.l.b16 %v361
        %v1357 = vunpack.c.h.b16 %v361
        %v1358 = vunpack.c.l.b16 %v362
        %v1359 = vunpack.c.h.b16 %v362
        %v1360 = vunpack.c.l.b16 %v363
        %v1361 = vunpack.c.h.b16 %v363
        %v1362 = vunpack.c.l.b16 %v364
        %v1363 = vunpack.c.h.b16 %v364
        %v1364 = vunpack.c.l.b16 %v365
        %v1365 = vunpack.c.h.b16 %v365
        %v1366 = vunpack.c.l.b16 %v366
        %v1367 = vunpack.c.h.b16 %v366
        %v1368 = vunpack.c.l.b16 %v367
        %v1369 = vunpack.c.h.b16 %v367
        %v1370 = vunpack.c.l.b16 %v368
        %v1371 = vunpack.c.h.b16 %v368
        %v1372 = vunpack.c.l.b16 %v369
        %v1373 = vunpack.c.h.b16 %v369
        %v1374 = vunpack.c.l.b16 %v370
        %v1375 = vunpack.c.h.b16 %v370
        %v1376 = vunpack.c.l.b16 %v371
        %v1377 = vunpack.c.h.b16 %v371
        %v1378 = vunpack.c.l.b16 %v372
        %v1379 = vunpack.c.h.b16 %v372
        %v1380 = vunpack.c.l.b16 %v373
        %v1381 = vunpack.c.h.b16 %v373
        %v1382 = vunpack.c.l.b16 %v374
        %v1383 = vunpack.c.h.b16 %v374
        %v1384 = vunpack.c.l.b16 %v375
        %v1385 = vunpack.c.h.b16 %v375
        %v1386 = vunpack.c.l.b16 %v376
        %v1387 = vunpack.c.h.b16 %v376
        %v1388 = vunpack.c.l.b16 %v377
        %v1389 = vunpack.c.h.b16 %v377
        %v1390 = vunpack.c.l.b16 %v378
        %v1391 = vunpack.c.h.b16 %v378
        %v1392 = vunpack.c.l.b16 %v379
        %v1393 = vunpack.c.h.b16 %v379
        %v1394 = vunpack.c.l.b16 %v380
        %v1395 = vunpack.c.h.b16 %v380
        %v1396 = vunpack.c.l.b16 %v381
        %v1397 = vunpack.c.h.b16 %v381
        %v1398 = vunpack.c.l.b16 %v382
        %v1399 = vunpack.c.h.b16 %v382
        %v1400 = vunpack.c.l.b16 %v383
        %v1401 = vunpack.c.h.b16 %v383
        %v1402 = vunpack.c.l.b16 %v384
        %v1403 = vunpack.c.h.b16 %v384
        %v1404 = vunpack.c.l.b16 %v385
        %v1405 = vunpack.c.h.b16 %v385
        %v1406 = vunpack.c.l.b16 %v386
        %v1407 = vunpack.c.h.b16 %v386
        %v1408 = vunpack.c.l.b16 %v387
        %v1409 = vunpack.c.h.b16 %v387
        %v1410 = vunpack.c.l.b16 %v388
        %v1411 = vunpack.c.h.b16 %v388
        %v1412 = vunpack.c.l.b16 %v389
        %v1413 = vunpack.c.h.b16 %v389
        %v1414 = vunpack.c.l.b16 %v390
        %v1415 = vunpack.c.h.b16 %v390
        %v1416 = vunpack.c.l.b16 %v391
        %v1417 = vunpack.c.h.b16 %v391
        %v1418 = vunpack.c.l.b16 %v392
        %v1419 = vunpack.c.h.b16 %v392
        %v1420 = vunpack.c.l.b16 %v393
        %v1421 = vunpack.c.h.b16 %v393
        %v1422 = vunpack.c.l.b16 %v394
        %v1423 = vunpack.c.h.b16 %v394
        %v1424 = vunpack.c.l.b16 %v395
        %v1425 = vunpack.c.h.b16 %v395
        %v1426 = vunpack.c.l.b16 %v396
        %v1427 = vunpack.c.h.b16 %v396
        %v1428 = vunpack.c.l.b16 %v397
        %v1429 = vunpack.c.h.b16 %v397
        %v1430 = vunpack.c.l.b16 %v398
        %v1431 = vunpack.c.h.b16 %v398
        %v1432 = vunpack.c.l.b16 %v399
        %v1433 = vunpack.c.h.b16 %v399
        %v1434 = vunpack.c.l.b16 %v400
        %v1435 = vunpack.c.h.b16 %v400
        %v1436 = vunpack.c.l.b16 %v401
        %v1437 = vunpack.c.h.b16 %v401
        %v1438 = vunpack.c.l.b16 %v402
        %v1439 = vunpack.c.h.b16 %v402
        %v1440 = vunpack.c.l.b16 %v403
        %v1441 = vunpack.c.h.b16 %v403
        %v1442 = vunpack.c.l.b16 %v404
        %v1443 = vunpack.c.h.b16 %v404
        %v1444 = vunpack.c.l.b16 %v405
        %v1445 = vunpack.c.h.b16 %v405
        %v1446 = vunpack.c.l.b16 %v406
        %v1447 = vunpack.c.h.b16 %v406
        %v1448 = vunpack.c.l.b16 %v407
        %v1449 = vunpack.c.h.b16 %v407
        %v1450 = vunpack.c.l.b16 %v408
        %v1451 = vunpack.c.h.b16 %v408
        %v1452 = vunpack.c.l.b16 %v409
        %v1453 = vunpack.c.h.b16 %v409
        %v1454 = vunpack.c.l.b16 %v410
        %v1455 = vunpack.c.h.b16 %v410
        %v1456 = vunpack.c.l.b16 %v411
        %v1457 = vunpack.c.h.b16 %v411
        %v1458 = vunpack.c.l.b16 %v412
        %v1459 = vunpack.c.h.b16 %v412
        %v1460 = vunpack.c.l.b16 %v413
        %v1461 = vunpack.c.h.b16 %v413
        %v1462 = vunpack.c.l.b16 %v414
        %v1463 = vunpack.c.h.b16 %v414
        %v1464 = vunpack.c.l.b16 %v415
        %v1465 = vunpack.c.h.b16 %v415
        %v1466 = vunpack.c.l.b16 %v416
        %v1467 = vunpack.c.h.b16 %v416
        %v1468 = vunpack.c.l.b16 %v417
        %v1469 = vunpack.c.h.b16 %v417
        %v1470 = vunpack.c.l.b16 %v418
        %v1471 = vunpack.c.h.b16 %v418
        %v1472 = vunpack.c.l.b16 %v419
        %v1473 = vunpack.c.h.b16 %v419
        %v1474 = vunpack.c.l.b16 %v420
        %v1475 = vunpack.c.h.b16 %v420
        %v1476 = vunpack.c.l.b16 %v421
        %v1477 = vunpack.c.h.b16 %v421
        %v1478 = vunpack.c.l.b16 %v422
        %v1479 = vunpack.c.h.b16 %v422
        %v1480 = vunpack.c.l.b16 %v423
        %v1481 = vunpack.c.h.b16 %v423
        %v1482 = vunpack.c.l.b16 %v424
        %v1483 = vunpack.c.h.b16 %v424
        %v1484 = vunpack.c.l.b16 %v425
        %v1485 = vunpack.c.h.b16 %v425
        %v1486 = vunpack.c.l.b16 %v426
        %v1487 = vunpack.c.h.b16 %v426
        %v1488 = vunpack.c.l.b16 %v427
        %v1489 = vunpack.c.h.b16 %v427
        %v1490 = vunpack.c.l.b16 %v428
        %v1491 = vunpack.c.h.b16 %v428
        %v1492 = vunpack.c.l.b16 %v429
        %v1493 = vunpack.c.h.b16 %v429
        %v1494 = vunpack.c.l.b16 %v430
        %v1495 = vunpack.c.h.b16 %v430
        %v1496 = vunpack.c.l.b16 %v431
        %v1497 = vunpack.c.h.b16 %v431
        %v1498 = vunpack.c.l.b16 %v432
        %v1499 = vunpack.c.h.b16 %v432
        %v1500 = vunpack.c.l.b16 %v433
        %v1501 = vunpack.c.h.b16 %v433
        %v1502 = vunpack.c.l.b16 %v434
        %v1503 = vunpack.c.h.b16 %v434
        %v1504 = vunpack.c.l.b16 %v435
        %v1505 = vunpack.c.h.b16 %v435
        %v1506 = vunpack.c.l.b16 %v436
        %v1507 = vunpack.c.h.b16 %v436
        %v1508 = vunpack.c.l.b16 %v437
        %v1509 = vunpack.c.h.b16 %v437
        %v1510 = vunpack.c.l.b16 %v438
        %v1511 = vunpack.c.h.b16 %v438
        %v1512 = vunpack.c.l.b16 %v439
        %v1513 = vunpack.c.h.b16 %v439
        %v1514 = vunpack.c.l.b16 %v440
        %v1515 = vunpack.c.h.b16 %v440
        %v1516 = vunpack.c.l.b16 %v441
        %v1517 = vunpack.c.h.b16 %v441
        %v1518 = vunpack.c.l.b16 %v442
        %v1519 = vunpack.c.h.b16 %v442
        %v1520 = vunpack.c.l.b16 %v443
        %v1521 = vunpack.c.h.b16 %v443
        %v1522 = vunpack.c.l.b16 %v444
        %v1523 = vunpack.c.h.b16 %v444
        %v1524 = vunpack.c.l.b16 %v445
        %v1525 = vunpack.c.h.b16 %v445
        %v1526 = vunpack.c.l.b16 %v446
        %v1527 = vunpack.c.h.b16 %v446
        %v1528 = vunpack.c.l.b16 %v447
        %v1529 = vunpack.c.h.b16 %v447
        %v1530 = vunpack.c.l.b16 %v448
        %v1531 = vunpack.c.h.b16 %v448
        %v1532 = vunpack.c.l.b16 %v449
        %v1533 = vunpack.c.h.b16 %v449
        %v1534 = vunpack.c.l.b16 %v450
        %v1535 = vunpack.c.h.b16 %v450
        %v1536 = vunpack.c.l.b16 %v451
        %v1537 = vunpack.c.h.b16 %v451
        %v1538 = vunpack.c.l.b16 %v452
        %v1539 = vunpack.c.h.b16 %v452
        %v1540 = vunpack.c.l.b16 %v453
        %v1541 = vunpack.c.h.b16 %v453
        %v1542 = vunpack.c.l.b16 %v454
        %v1543 = vunpack.c.h.b16 %v454
        %v1544 = vunpack.c.l.b16 %v455
        %v1545 = vunpack.c.h.b16 %v455
        %v1546 = vunpack.c.l.b16 %v456
        %v1547 = vunpack.c.h.b16 %v456
        %v1548 = vunpack.c.l.b16 %v457
        %v1549 = vunpack.c.h.b16 %v457
        %v1550 = vunpack.c.l.b16 %v458
        %v1551 = vunpack.c.h.b16 %v458
        %v1552 = vunpack.c.l.b16 %v459
        %v1553 = vunpack.c.h.b16 %v459
        %v1554 = vunpack.c.l.b16 %v460
        %v1555 = vunpack.c.h.b16 %v460
        %v1556 = vunpack.c.l.b16 %v461
        %v1557 = vunpack.c.h.b16 %v461
        %v1558 = vunpack.c.l.b16 %v462
        %v1559 = vunpack.c.h.b16 %v462
        %v1560 = vunpack.c.l.b16 %v463
        %v1561 = vunpack.c.h.b16 %v463
        %v1562 = vunpack.c.l.b16 %v464
        %v1563 = vunpack.c.h.b16 %v464
        %v1564 = vunpack.c.l.b16 %v465
        %v1565 = vunpack.c.h.b16 %v465
        %v1566 = vunpack.c.l.b16 %v466
        %v1567 = vunpack.c.h.b16 %v466
        %v1568 = vunpack.c.l.b16 %v467
        %v1569 = vunpack.c.h.b16 %v467
        %v1570 = vunpack.c.l.b16 %v468
        %v1571 = vunpack.c.h.b16 %v468
        %v1572 = vunpack.c.l.b16 %v469
        %v1573 = vunpack.c.h.b16 %v469
        %v1574 = vunpack.c.l.b16 %v470
        %v1575 = vunpack.c.h.b16 %v470
        %v1576 = vunpack.c.l.b16 %v471
        %v1577 = vunpack.c.h.b16 %v471
        %v1578 = vunpack.c.l.b16 %v472
        %v1579 = vunpack.c.h.b16 %v472
        %v1580 = vunpack.c.l.b16 %v473
        %v1581 = vunpack.c.h.b16 %v473
        %v1582 = vunpack.c.l.b16 %v474
        %v1583 = vunpack.c.h.b16 %v474
        %v1584 = vunpack.c.l.b16 %v475
        %v1585 = vunpack.c.h.b16 %v475
        %v1586 = vunpack.c.l.b16 %v476
        %v1587 = vunpack.c.h.b16 %v476
        %v1588 = vunpack.c.l.b16 %v477
        %v1589 = vunpack.c.h.b16 %v477
        %v1590 = vunpack.c.l.b16 %v478
        %v1591 = vunpack.c.h.b16 %v478
        %v1592 = vunpack.c.l.b16 %v479
        %v1593 = vunpack.c.h.b16 %v479
        %v1594 = vunpack.c.l.b16 %v480
        %v1595 = vunpack.c.h.b16 %v480
        %v1596 = vunpack.c.l.b16 %v481
        %v1597 = vunpack.c.h.b16 %v481
        %v1598 = vunpack.c.l.b16 %v482
        %v1599 = vunpack.c.h.b16 %v482
        %v1600 = vunpack.c.l.b16 %v483
        %v1601 = vunpack.c.h.b16 %v483
        %v1602 = vunpack.c.l.b16 %v484
        %v1603 = vunpack.c.h.b16 %v484
        %v1604 = vunpack.c.l.b16 %v485
        %v1605 = vunpack.c.h.b16 %v485
        %v1606 = vunpack.c.l.b16 %v486
        %v1607 = vunpack.c.h.b16 %v486
        %v1608 = vunpack.c.l.b16 %v487
        %v1609 = vunpack.c.h.b16 %v487
        %v1610 = vunpack.c.l.b16 %v488
        %v1611 = vunpack.c.h.b16 %v488
        %v1612 = vunpack.c.l.b16 %v489
        %v1613 = vunpack.c.h.b16 %v489
        %v1614 = vunpack.c.l.b16 %v490
        %v1615 = vunpack.c.h.b16 %v490
        %v1616 = vunpack.c.l.b16 %v491
        %v1617 = vunpack.c.h.b16 %v491
        %v1618 = vunpack.c.l.b16 %v492
        %v1619 = vunpack.c.h.b16 %v492
        %v1620 = vunpack.c.l.b16 %v493
        %v1621 = vunpack.c.h.b16 %v493
        %v1622 = vunpack.c.l.b16 %v494
        %v1623 = vunpack.c.h.b16 %v494
        %v1624 = vunpack.c.l.b16 %v495
        %v1625 = vunpack.c.h.b16 %v495
        %v1626 = vunpack.c.l.b16 %v496
        %v1627 = vunpack.c.h.b16 %v496
        %v1628 = vunpack.c.l.b16 %v497
        %v1629 = vunpack.c.h.b16 %v497
        %v1630 = vunpack.c.l.b16 %v498
        %v1631 = vunpack.c.h.b16 %v498
        %v1632 = vunpack.c.l.b16 %v499
        %v1633 = vunpack.c.h.b16 %v499
        %v1634 = vunpack.c.l.b16 %v500
        %v1635 = vunpack.c.h.b16 %v500
        %v1636 = vunpack.c.l.b16 %v501
        %v1637 = vunpack.c.h.b16 %v501
        %v1638 = vunpack.c.l.b16 %v502
        %v1639 = vunpack.c.h.b16 %v502
        %v1640 = vunpack.c.l.b16 %v503
        %v1641 = vunpack.c.h.b16 %v503
        %v1642 = vunpack.c.l.b16 %v504
        %v1643 = vunpack.c.h.b16 %v504
        %v1644 = vunpack.c.l.b16 %v505
        %v1645 = vunpack.c.h.b16 %v505
        %v1646 = vunpack.c.l.b16 %v506
        %v1647 = vunpack.c.h.b16 %v506
        %v1648 = vunpack.c.l.b16 %v507
        %v1649 = vunpack.c.h.b16 %v507
        %v1650 = vunpack.c.l.b16 %v508
        %v1651 = vunpack.c.h.b16 %v508
        %v1652 = vunpack.c.l.b16 %v509
        %v1653 = vunpack.c.h.b16 %v509
        %v1654 = vunpack.c.l.b16 %v510
        %v1655 = vunpack.c.h.b16 %v510
        %v1656 = vunpack.c.l.b16 %v511
        %v1657 = vunpack.c.h.b16 %v511
        %v1658 = vunpack.c.l.b16 %v512
        %v1659 = vunpack.c.h.b16 %v512
        %v1660 = vunpack.c.l.b16 %v513
        %v1661 = vunpack.c.h.b16 %v513
        %v1662 = vunpack.c.l.b16 %v514
        %v1663 = vunpack.c.h.b16 %v514
        %v1664 = vunpack.c.l.b16 %v515
        %v1665 = vunpack.c.h.b16 %v515
        %v1666 = vunpack.c.l.b16 %v516
        %v1667 = vunpack.c.h.b16 %v516
        %v1668 = vunpack.c.l.b16 %v517
        %v1669 = vunpack.c.h.b16 %v517
        %v1670 = vunpack.c.l.b16 %v518
        %v1671 = vunpack.c.h.b16 %v518
        %v1672 = vunpack.c.l.b16 %v519
        %v1673 = vunpack.c.h.b16 %v519
        %v1674 = vunpack.c.l.b16 %v520
        %v1675 = vunpack.c.h.b16 %v520
        %v1676 = vunpack.c.l.b16 %v521
        %v1677 = vunpack.c.h.b16 %v521
        %v1678 = vunpack.c.l.b16 %v522
        %v1679 = vunpack.c.h.b16 %v522
        %v1680 = vunpack.c.l.b16 %v523
        %v1681 = vunpack.c.h.b16 %v523
        %v1682 = vunpack.c.l.b16 %v524
        %v1683 = vunpack.c.h.b16 %v524
        %v1684 = vunpack.c.l.b16 %v525
        %v1685 = vunpack.c.h.b16 %v525
        %v1686 = vunpack.c.l.b16 %v526
        %v1687 = vunpack.c.h.b16 %v526
        %v1688 = vunpack.c.l.b16 %v527
        %v1689 = vunpack.c.h.b16 %v527
        %v1690 = vunpack.c.l.b16 %v528
        %v1691 = vunpack.c.h.b16 %v528
        %v1692 = vunpack.c.l.b16 %v529
        %v1693 = vunpack.c.h.b16 %v529
        %v1694 = vunpack.c.l.b16 %v530
        %v1695 = vunpack.c.h.b16 %v530
        %v1696 = vunpack.c.l.b16 %v531
        %v1697 = vunpack.c.h.b16 %v531
        %v1698 = vunpack.c.l.b16 %v532
        %v1699 = vunpack.c.h.b16 %v532
        %v1700 = vunpack.c.l.b16 %v533
        %v1701 = vunpack.c.h.b16 %v533
        %v1702 = vunpack.c.l.b16 %v534
        %v1703 = vunpack.c.h.b16 %v534
        %v1704 = vunpack.c.l.b16 %v535
        %v1705 = vunpack.c.h.b16 %v535
        %v1706 = vunpack.c.l.b16 %v536
        %v1707 = vunpack.c.h.b16 %v536
        %v1708 = vunpack.c.l.b16 %v537
        %v1709 = vunpack.c.h.b16 %v537
        %v1710 = vunpack.c.l.b16 %v538
        %v1711 = vunpack.c.h.b16 %v538
        %v1712 = vunpack.c.l.b16 %v539
        %v1713 = vunpack.c.h.b16 %v539
        %v1714 = vunpack.c.l.b16 %v540
        %v1715 = vunpack.c.h.b16 %v540
        %v1716 = vunpack.c.l.b16 %v541
        %v1717 = vunpack.c.h.b16 %v541
        %v1718 = vunpack.c.l.b16 %v542
        %v1719 = vunpack.c.h.b16 %v542
        %v1720 = vunpack.c.l.b16 %v543
        %v1721 = vunpack.c.h.b16 %v543
        %v1722 = vunpack.c.l.b16 %v544
        %v1723 = vunpack.c.h.b16 %v544
        %v1724 = vunpack.c.l.b16 %v545
        %v1725 = vunpack.c.h.b16 %v545
        %v1726 = vunpack.c.l.b16 %v546
        %v1727 = vunpack.c.h.b16 %v546
        %v1728 = vunpack.c.l.b16 %v547
        %v1729 = vunpack.c.h.b16 %v547
        %v1730 = vunpack.c.l.b16 %v548
        %v1731 = vunpack.c.h.b16 %v548
        %v1732 = vunpack.c.l.b16 %v549
        %v1733 = vunpack.c.h.b16 %v549
        %v1734 = vunpack.c.l.b16 %v550
        %v1735 = vunpack.c.h.b16 %v550
        %v1736 = vunpack.c.l.b16 %v551
        %v1737 = vunpack.c.h.b16 %v551
        %v1738 = vunpack.c.l.b16 %v552
        %v1739 = vunpack.c.h.b16 %v552
        %v1740 = vunpack.c.l.b16 %v553
        %v1741 = vunpack.c.h.b16 %v553
        %v1742 = vunpack.c.l.b16 %v554
        %v1743 = vunpack.c.h.b16 %v554
        %v1744 = vunpack.c.l.b16 %v555
        %v1745 = vunpack.c.h.b16 %v555
        %v1746 = vunpack.c.l.b16 %v556
        %v1747 = vunpack.c.h.b16 %v556
        %v1748 = vunpack.c.l.b16 %v557
        %v1749 = vunpack.c.h.b16 %v557
        %v1750 = vunpack.c.l.b16 %v558
        %v1751 = vunpack.c.h.b16 %v558
        %v1752 = vunpack.c.l.b16 %v559
        %v1753 = vunpack.c.h.b16 %v559
        %v1754 = vunpack.c.l.b16 %v560
        %v1755 = vunpack.c.h.b16 %v560
        %v1756 = vunpack.c.l.b16 %v561
        %v1757 = vunpack.c.h.b16 %v561
        %v1758 = vunpack.c.l.b16 %v562
        %v1759 = vunpack.c.h.b16 %v562
        %v1760 = vunpack.c.l.b16 %v563
        %v1761 = vunpack.c.h.b16 %v563
        %v1762 = vunpack.c.l.b16 %v564
        %v1763 = vunpack.c.h.b16 %v564
        %v1764 = vunpack.c.l.b16 %v565
        %v1765 = vunpack.c.h.b16 %v565
        %v1766 = vunpack.c.l.b16 %v566
        %v1767 = vunpack.c.h.b16 %v566
        %v1768 = vunpack.c.l.b16 %v567
        %v1769 = vunpack.c.h.b16 %v567
        %v1770 = vunpack.c.l.b16 %v568
        %v1771 = vunpack.c.h.b16 %v568
        %v1772 = vunpack.c.l.b16 %v569
        %v1773 = vunpack.c.h.b16 %v569
        %v1774 = vunpack.c.l.b16 %v570
        %v1775 = vunpack.c.h.b16 %v570
        %v1776 = vunpack.c.l.b16 %v571
        %v1777 = vunpack.c.h.b16 %v571
        %v1778 = vunpack.c.l.b16 %v572
        %v1779 = vunpack.c.h.b16 %v572
        %v1780 = vunpack.c.l.b16 %v573
        %v1781 = vunpack.c.h.b16 %v573
        %v1782 = vunpack.c.l.b16 %v574
        %v1783 = vunpack.c.h.b16 %v574
        %v1784 = vunpack.c.l.b16 %v575
        %v1785 = vunpack.c.h.b16 %v575
        %v1786 = vunpack.c.l.b16 %v576
        %v1787 = vunpack.c.h.b16 %v576
        %v1788 = vunpack.c.l.b16 %v577
        %v1789 = vunpack.c.h.b16 %v577
        %v1790 = vunpack.c.l.b16 %v578
        %v1791 = vunpack.c.h.b16 %v578
        %v1792 = vunpack.c.l.b16 %v579
        %v1793 = vunpack.c.h.b16 %v579
        %v1794 = vunpack.c.l.b16 %v580
        %v1795 = vunpack.c.h.b16 %v580
        %v1796 = vunpack.c.l.b16 %v581
        %v1797 = vunpack.c.h.b16 %v581
        %v1798 = vunpack.c.l.b16 %v582
        %v1799 = vunpack.c.h.b16 %v582
        %v1800 = vunpack.c.l.b16 %v583
        %v1801 = vunpack.c.h.b16 %v583
        %v1802 = vunpack.c.l.b16 %v584
        %v1803 = vunpack.c.h.b16 %v584
        %v1804 = vunpack.c.l.b16 %v585
        %v1805 = vunpack.c.h.b16 %v585
        %v1806 = vunpack.c.l.b16 %v586
        %v1807 = vunpack.c.h.b16 %v586
        %v1808 = vunpack.c.l.b16 %v587
        %v1809 = vunpack.c.h.b16 %v587
        %v1810 = vunpack.c.l.b16 %v588
        %v1811 = vunpack.c.h.b16 %v588
        %v1812 = vunpack.c.l.b16 %v589
        %v1813 = vunpack.c.h.b16 %v589
        %v1814 = vunpack.c.l.b16 %v590
        %v1815 = vunpack.c.h.b16 %v590
        %v1816 = vunpack.c.l.b16 %v591
        %v1817 = vunpack.c.h.b16 %v591
        %v1818 = vunpack.c.l.b16 %v592
        %v1819 = vunpack.c.h.b16 %v592
        %v1820 = vunpack.c.l.b16 %v593
        %v1821 = vunpack.c.h.b16 %v593
        %v1822 = vunpack.c.l.b16 %v594
        %v1823 = vunpack.c.h.b16 %v594
        %v1824 = vunpack.c.l.b16 %v595
        %v1825 = vunpack.c.h.b16 %v595
        %v1826 = vpack.c.b16 %v1070, %v1058
        %v1827 = vpack.c.b16 %v1071, %v1059
        %v1828 = vpack.c.b16 %v1072, %v1060
        %v1829 = vpack.c.b16 %v1073, %v1061
        %v1830 = vpack.c.b16 %v1074, %v1062
        %v1831 = vpack.c.b16 %v1075, %v1063
        %v1832 = vpack.c.b16 %v1076, %v1064
        %v1833 = vpack.c.b16 %v1077, %v1065
        %v1834 = vpack.c.b16 %v1078, %v1066
        %v1835 = vpack.c.b16 %v1079, %v1067
        %v1836 = vpack.c.b16 %v1080, %v1068
        %v1837 = vpack.c.b16 %v1081, %v1069
        %v1838 = vpack.c.b16 %v1094, %v1082
        %v1839 = vpack.c.b16 %v1095, %v1083
        %v1840 = vpack.c.b16 %v1096, %v1084
        %v1841 = vpack.c.b16 %v1097, %v1085
        %v1842 = vpack.c.b16 %v1098, %v1086
        %v1843 = vpack.c.b16 %v1099, %v1087
        %v1844 = vpack.c.b16 %v1100, %v1088
        %v1845 = vpack.c.b16 %v1101, %v1089
        %v1846 = vpack.c.b16 %v1102, %v1090
        %v1847 = vpack.c.b16 %v1103, %v1091
        %v1848 = vpack.c.b16 %v1104, %v1092
        %v1849 = vpack.c.b16 %v1105, %v1093
        %v1850 = vpack.c.b16 %v1118, %v1106
        %v1851 = vpack.c.b16 %v1119, %v1107
        %v1852 = vpack.c.b16 %v1120, %v1108
        %v1853 = vpack.c.b16 %v1121, %v1109
        %v1854 = vpack.c.b16 %v1122, %v1110
        %v1855 = vpack.c.b16 %v1123, %v1111
        %v1856 = vpack.c.b16 %v1124, %v1112
        %v1857 = vpack.c.b16 %v1125, %v1113
        %v1858 = vpack.c.b16 %v1126, %v1114
        %v1859 = vpack.c.b16 %v1127, %v1115
        %v1860 = vpack.c.b16 %v1128, %v1116
        %v1861 = vpack.c.b16 %v1129, %v1117
        %v1862 = vpack.c.b16 %v1142, %v1130
        %v1863 = vpack.c.b16 %v1143, %v1131
        %v1864 = vpack.c.b16 %v1144, %v1132
        %v1865 = vpack.c.b16 %v1145, %v1133
        %v1866 = vpack.c.b16 %v1146, %v1134
        %v1867 = vpack.c.b16 %v1147, %v1135
        %v1868 = vpack.c.b16 %v1148, %v1136
        %v1869 = vpack.c.b16 %v1149, %v1137
        %v1870 = vpack.c.b16 %v1150, %v1138
        %v1871 = vpack.c.b16 %v1151, %v1139
        %v1872 = vpack.c.b16 %v1152, %v1140
        %v1873 = vpack.c.b16 %v1153, %v1141
        %v1874 = vpack.c.b16 %v1166, %v1154
        %v1875 = vpack.c.b16 %v1167, %v1155
        %v1876 = vpack.c.b16 %v1168, %v1156
        %v1877 = vpack.c.b16 %v1169, %v1157
        %v1878 = vpack.c.b16 %v1170, %v1158
        %v1879 = vpack.c.b16 %v1171, %v1159
        %v1880 = vpack.c.b16 %v1172, %v1160
        %v1881 = vpack.c.b16 %v1173, %v1161
        %v1882 = vpack.c.b16 %v1174, %v1162
        %v1883 = vpack.c.b16 %v1175, %v1163
        %v1884 = vpack.c.b16 %v1176, %v1164
        %v1885 = vpack.c.b16 %v1177, %v1165
        %v1886 = vpack.c.b16 %v1190, %v1178
        %v1887 = vpack.c.b16 %v1191, %v1179
        %v1888 = vpack.c.b16 %v1192, %v1180
        %v1889 = vpack.c.b16 %v1193, %v1181
        %v1890 = vpack.c.b16 %v1194, %v1182
        %v1891 = vpack.c.b16 %v1195, %v1183
        %v1892 = vpack.c.b16 %v1196, %v1184
        %v1893 = vpack.c.b16 %v1197, %v1185
        %v1894 = vpack.c.b16 %v1198, %v1186
        %v1895 = vpack.c.b16 %v1199, %v1187
        %v1896 = vpack.c.b16 %v1200, %v1188
        %v1897 = vpack.c.b16 %v1201, %v1189
        %v1898 = vpack.c.b16 %v1214, %v1202
        %v1899 = vpack.c.b16 %v1215, %v1203
        %v1900 = vpack.c.b16 %v1216, %v1204
        %v1901 = vpack.c.b16 %v1217, %v1205
        %v1902 = vpack.c.b16 %v1218, %v1206
        %v1903 = vpack.c.b16 %v1219, %v1207
        %v1904 = vpack.c.b16 %v1220, %v1208
        %v1905 = vpack.c.b16 %v1221, %v1209
        %v1906 = vpack.c.b16 %v1222, %v1210
        %v1907 = vpack.c.b16 %v1223, %v1211
        %v1908 = vpack.c.b16 %v1224, %v1212
        %v1909 = vpack.c.b16 %v1225, %v1213
        %v1910 = vpack.c.b16 %v1238, %v1226
        %v1911 = vpack.c.b16 %v1239, %v1227
        %v1912 = vpack.c.b16 %v1240, %v1228
        %v1913 = vpack.c.b16 %v1241, %v1229
        %v1914 = vpack.c.b16 %v1242, %v1230
        %v1915 = vpack.c.b16 %v1243, %v1231
        %v1916 = vpack.c.b16 %v1244, %v1232
        %v1917 = vpack.c.b16 %v1245, %v1233
        %v1918 = vpack.c.b16 %v1246, %v1234
        %v1919 = vpack.c.b16 %v1247, %v1235
        %v1920 = vpack.c.b16 %v1248, %v1236
        %v1921 = vpack.c.b16 %v1249, %v1237
        %v1922 = vpack.c.b16 %v1262, %v1250
        %v1923 = vpack.c.b16 %v1263, %v1251
        %v1924 = vpack.c.b16 %v1264, %v1252
        %v1925 = vpack.c.b16 %v1265, %v1253
        %v1926 = vpack.c.b16 %v1266, %v1254
        %v1927 = vpack.c.b16 %v1267, %v1255
        %v1928 = vpack.c.b16 %v1268, %v1256
        %v1929 = vpack.c.b16 %v1269, %v1257
        %v1930 = vpack.c.b16 %v1270, %v1258
        %v1931 = vpack.c.b16 %v1271, %v1259
        %v1932 = vpack.c.b16 %v1272, %v1260
        %v1933 = vpack.c.b16 %v1273, %v1261
        %v1934 = vpack.c.b16 %v1286, %v1274
        %v1935 = vpack.c.b16 %v1287, %v1275
        %v1936 = vpack.c.b16 %v1288, %v1276
        %v1937 = vpack.c.b16 %v1289, %v1277
        %v1938 = vpack.c.b16 %v1290, %v1278
        %v1939 = vpack.c.b16 %v1291, %v1279
        %v1940 = vpack.c.b16 %v1292, %v1280
        %v1941 = vpack.c.b16 %v1293, %v1281
        %v1942 = vpack.c.b16 %v1294, %v1282
        %v1943 = vpack.c.b16 %v1295, %v1283
        %v1944 = vpack.c.b16 %v1296, %v1284
        %v1945 = vpack.c.b16 %v1297, %v1285
        %v1946 = vpack.c.b16 %v1310, %v1298
        %v1947 = vpack.c.b16 %v1311, %v1299
        %v1948 = vpack.c.b16 %v1312, %v1300
        %v1949 = vpack.c.b16 %v1313, %v1301
        %v1950 = vpack.c.b16 %v1314, %v1302
        %v1951 = vpack.c.b16 %v1315, %v1303
        %v1952 = vpack.c.b16 %v1316, %v1304
        %v1953 = vpack.c.b16 %v1317, %v1305
        %v1954 = vpack.c.b16 %v1318, %v1306
        %v1955 = vpack.c.b16 %v1319, %v1307
        %v1956 = vpack.c.b16 %v1320, %v1308
        %v1957 = vpack.c.b16 %v1321, %v1309
        %v1958 = vpack.c.b16 %v1334, %v1322
        %v1959 = vpack.c.b16 %v1335, %v1323
        %v1960 = vpack.c.b16 %v1336, %v1324
        %v1961 = vpack.c.b16 %v1337, %v1325
        %v1962 = vpack.c.b16 %v1338, %v1326
        %v1963 = vpack.c.b16 %v1339, %v1327
        %v1964 = vpack.c.b16 %v1340, %v1328
        %v1965 = vpack.c.b16 %v1341, %v1329
        %v1966 = vpack.c.b16 %v1342, %v1330
        %v1967 = vpack.c.b16 %v1343, %v1331
        %v1968 = vpack.c.b16 %v1344, %v1332
        %v1969 = vpack.c.b16 %v1345, %v1333
        %v1970 = vpack.c.b16 %v1358, %v1346
        %v1971 = vpack.c.b16 %v1359, %v1347
        %v1972 = vpack.c.b16 %v1360, %v1348
        %v1973 = vpack.c.b16 %v1361, %v1349
        %v1974 = vpack.c.b16 %v1362, %v1350
        %v1975 = vpack.c.b16 %v1363, %v1351
        %v1976 = vpack.c.b16 %v1364, %v1352
        %v1977 = vpack.c.b16 %v1365, %v1353
        %v1978 = vpack.c.b16 %v1366, %v1354
        %v1979 = vpack.c.b16 %v1367, %v1355
        %v1980 = vpack.c.b16 %v1368, %v1356
        %v1981 = vpack.c.b16 %v1369, %v1357
        %v1982 = vpack.c.b16 %v1382, %v1370
        %v1983 = vpack.c.b16 %v1383, %v1371
        %v1984 = vpack.c.b16 %v1384, %v1372
        %v1985 = vpack.c.b16 %v1385, %v1373
        %v1986 = vpack.c.b16 %v1386, %v1374
        %v1987 = vpack.c.b16 %v1387, %v1375
        %v1988 = vpack.c.b16 %v1388, %v1376
        %v1989 = vpack.c.b16 %v1389, %v1377
        %v1990 = vpack.c.b16 %v1390, %v1378
        %v1991 = vpack.c.b16 %v1391, %v1379
        %v1992 = vpack.c.b16 %v1392, %v1380
        %v1993 = vpack.c.b16 %v1393, %v1381
        %v1994 = vpack.c.b16 %v1406, %v1394
        %v1995 = vpack.c.b16 %v1407, %v1395
        %v1996 = vpack.c.b16 %v1408, %v1396
        %v1997 = vpack.c.b16 %v1409, %v1397
        %v1998 = vpack.c.b16 %v1410, %v1398
        %v1999 = vpack.c.b16 %v1411, %v1399
        %v2000 = vpack.c.b16 %v1412, %v1400
        %v2001 = vpack.c.b16 %v1413, %v1401
        %v2002 = vpack.c.b16 %v1414, %v1402
        %v2003 = vpack.c.b16 %v1415, %v1403
        %v2004 = vpack.c.b16 %v1416, %v1404
        %v2005 = vpack.c.b16 %v1417, %v1405
        %v2006 = vpack.c.b16 %v1430, %v1418
        %v2007 = vpack.c.b16 %v1431, %v1419
        %v2008 = vpack.c.b16 %v1432, %v1420
        %v2009 = vpack.c.b16 %v1433, %v1421
        %v2010 = vpack.c.b16 %v1434, %v1422
        %v2011 = vpack.c.b16 %v1435, %v1423
        %v2012 = vpack.c.b16 %v1436, %v1424
        %v2013 = vpack.c.b16 %v1437, %v1425
        %v2014 = vpack.c.b16 %v1438, %v1426
        %v2015 = vpack.c.b16 %v1439, %v1427
        %v2016 = vpack.c.b16 %v1440, %v1428
        %v2017 = vpack.c.b16 %v1441, %v1429
        %v2018 = vpack.c.b16 %v1454, %v1442
        %v2019 = vpack.c.b16 %v1455, %v1443
        %v2020 = vpack.c.b16 %v1456, %v1444
        %v2021 = vpack.c.b16 %v1457, %v1445
        %v2022 = vpack.c.b16 %v1458, %v1446
        %v2023 = vpack.c.b16 %v1459, %v1447
        %v2024 = vpack.c.b16 %v1460, %v1448
        %v2025 = vpack.c.b16 %v1461, %v1449
        %v2026 = vpack.c.b16 %v1462, %v1450
        %v2027 = vpack.c.b16 %v1463, %v1451
        %v2028 = vpack.c.b16 %v1464, %v1452
        %v2029 = vpack.c.b16 %v1465, %v1453
        %v2030 = vpack.c.b16 %v1478, %v1466
        %v2031 = vpack.c.b16 %v1479, %v1467
        %v2032 = vpack.c.b16 %v1480, %v1468
        %v2033 = vpack.c.b16 %v1481, %v1469
        %v2034 = vpack.c.b16 %v1482, %v1470
        %v2035 = vpack.c.b16 %v1483, %v1471
        %v2036 = vpack.c.b16 %v1484, %v1472
        %v2037 = vpack.c.b16 %v1485, %v1473
        %v2038 = vpack.c.b16 %v1486, %v1474
        %v2039 = vpack.c.b16 %v1487, %v1475
        %v2040 = vpack.c.b16 %v1488, %v1476
        %v2041 = vpack.c.b16 %v1489, %v1477
        %v2042 = vpack.c.b16 %v1502, %v1490
        %v2043 = vpack.c.b16 %v1503, %v1491
        %v2044 = vpack.c.b16 %v1504, %v1492
        %v2045 = vpack.c.b16 %v1505, %v1493
        %v2046 = vpack.c.b16 %v1506, %v1494
        %v2047 = vpack.c.b16 %v1507, %v1495
        %v2048 = vpack.c.b16 %v1508, %v1496
        %v2049 = vpack.c.b16 %v1509, %v1497
        %v2050 = vpack.c.b16 %v1510, %v1498
        %v2051 = vpack.c.b16 %v1511, %v1499
        %v2052 = vpack.c.b16 %v1512, %v1500
        %v2053 = vpack.c.b16 %v1513, %v1501
        %v2054 = vpack.c.b16 %v1526, %v1514
        %v2055 = vpack.c.b16 %v1527, %v1515
        %v2056 = vpack.c.b16 %v1528, %v1516
        %v2057 = vpack.c.b16 %v1529, %v1517
        %v2058 = vpack.c.b16 %v1530, %v1518
        %v2059 = vpack.c.b16 %v1531, %v1519
        %v2060 = vpack.c.b16 %v1532, %v1520
        %v2061 = vpack.c.b16 %v1533, %v1521
        %v2062 = vpack.c.b16 %v1534, %v1522
        %v2063 = vpack.c.b16 %v1535, %v1523
        %v2064 = vpack.c.b16 %v1536, %v1524
        %v2065 = vpack.c.b16 %v1537, %v1525
        %v2066 = vpack.c.b16 %v1550, %v1538
        %v2067 = vpack.c.b16 %v1551, %v1539
        %v2068 = vpack.c.b16 %v1552, %v1540
        %v2069 = vpack.c.b16 %v1553, %v1541
        %v2070 = vpack.c.b16 %v1554, %v1542
        %v2071 = vpack.c.b16 %v1555, %v1543
        %v2072 = vpack.c.b16 %v1556, %v1544
        %v2073 = vpack.c.b16 %v1557, %v1545
        %v2074 = vpack.c.b16 %v1558, %v1546
        %v2075 = vpack.c.b16 %v1559, %v1547
        %v2076 = vpack.c.b16 %v1560, %v1548
        %v2077 = vpack.c.b16 %v1561, %v1549
        %v2078 = vpack.c.b16 %v1574, %v1562
        %v2079 = vpack.c.b16 %v1575, %v1563
        %v2080 = vpack.c.b16 %v1576, %v1564
        %v2081 = vpack.c.b16 %v1577, %v1565
        %v2082 = vpack.c.b16 %v1578, %v1566
        %v2083 = vpack.c.b16 %v1579, %v1567
        %v2084 = vpack.c.b16 %v1580, %v1568
        %v2085 = vpack.c.b16 %v1581, %v1569
        %v2086 = vpack.c.b16 %v1582, %v1570
        %v2087 = vpack.c.b16 %v1583, %v1571
        %v2088 = vpack.c.b16 %v1584, %v1572
        %v2089 = vpack.c.b16 %v1585, %v1573
        %v2090 = vpack.c.b16 %v1598, %v1586
        %v2091 = vpack.c.b16 %v1599, %v1587
        %v2092 = vpack.c.b16 %v1600, %v1588
        %v2093 = vpack.c.b16 %v1601, %v1589
        %v2094 = vpack.c.b16 %v1602, %v1590
        %v2095 = vpack.c.b16 %v1603, %v1591
        %v2096 = vpack.c.b16 %v1604, %v1592
        %v2097 = vpack.c.b16 %v1605, %v1593
        %v2098 = vpack.c.b16 %v1606, %v1594
        %v2099 = vpack.c.b16 %v1607, %v1595
        %v2100 = vpack.c.b16 %v1608, %v1596
        %v2101 = vpack.c.b16 %v1609, %v1597
        %v2102 = vpack.c.b16 %v1622, %v1610
        %v2103 = vpack.c.b16 %v1623, %v1611
        %v2104 = vpack.c.b16 %v1624, %v1612
        %v2105 = vpack.c.b16 %v1625, %v1613
        %v2106 = vpack.c.b16 %v1626, %v1614
        %v2107 = vpack.c.b16 %v1627, %v1615
        %v2108 = vpack.c.b16 %v1628, %v1616
        %v2109 = vpack.c.b16 %v1629, %v1617
        %v2110 = vpack.c.b16 %v1630, %v1618
        %v2111 = vpack.c.b16 %v1631, %v1619
        %v2112 = vpack.c.b16 %v1632, %v1620
        %v2113 = vpack.c.b16 %v1633, %v1621
        %v2114 = vpack.c.b16 %v1646, %v1634
        %v2115 = vpack.c.b16 %v1647, %v1635
        %v2116 = vpack.c.b16 %v1648, %v1636
        %v2117 = vpack.c.b16 %v1649, %v1637
        %v2118 = vpack.c.b16 %v1650, %v1638
        %v2119 = vpack.c.b16 %v1651, %v1639
        %v2120 = vpack.c.b16 %v1652, %v1640
        %v2121 = vpack.c.b16 %v1653, %v1641
        %v2122 = vpack.c.b16 %v1654, %v1642
        %v2123 = vpack.c.b16 %v1655, %v1643
        %v2124 = vpack.c.b16 %v1656, %v1644
        %v2125 = vpack.c.b16 %v1657, %v1645
        %v2126 = vpack.c.b16 %v1670, %v1658
        %v2127 = vpack.c.b16 %v1671, %v1659
        %v2128 = vpack.c.b16 %v1672, %v1660
        %v2129 = vpack.c.b16 %v1673, %v1661
        %v2130 = vpack.c.b16 %v1674, %v1662
        %v2131 = vpack.c.b16 %v1675, %v1663
        %v2132 = vpack.c.b16 %v1676, %v1664
        %v2133 = vpack.c.b16 %v1677, %v1665
        %v2134 = vpack.c.b16 %v1678, %v1666
        %v2135 = vpack.c.b16 %v1679, %v1667
        %v2136 = vpack.c.b16 %v1680, %v1668
        %v2137 = vpack.c.b16 %v1681, %v1669
        %v2138 = vpack.c.b16 %v1694, %v1682
        %v2139 = vpack.c.b16 %v1695, %v1683
        %v2140 = vpack.c.b16 %v1696, %v1684
        %v2141 = vpack.c.b16 %v1697, %v1685
        %v2142 = vpack.c.b16 %v1698, %v1686
        %v2143 = vpack.c.b16 %v1699, %v1687
        %v2144 = vpack.c.b16 %v1700, %v1688
        %v2145 = vpack.c.b16 %v1701, %v1689
        %v2146 = vpack.c.b16 %v1702, %v1690
        %v2147 = vpack.c.b16 %v1703, %v1691
        %v2148 = vpack.c.b16 %v1704, %v1692
        %v2149 = vpack.c.b16 %v1705, %v1693
        %v2150 = vpack.c.b16 %v1718, %v1706
        %v2151 = vpack.c.b16 %v1719, %v1707
        %v2152 = vpack.c.b16 %v1720, %v1708
        %v2153 = vpack.c.b16 %v1721, %v1709
        %v2154 = vpack.c.b16 %v1722, %v1710
        %v2155 = vpack.c.b16 %v1723, %v1711
        %v2156 = vpack.c.b16 %v1724, %v1712
        %v2157 = vpack.c.b16 %v1725, %v1713
        %v2158 = vpack.c.b16 %v1726, %v1714
        %v2159 = vpack.c.b16 %v1727, %v1715
        %v2160 = vpack.c.b16 %v1728, %v1716
        %v2161 = vpack.c.b16 %v1729, %v1717
        %v2162 = vpack.c.b16 %v1742, %v1730
        %v2163 = vpack.c.b16 %v1743, %v1731
        %v2164 = vpack.c.b16 %v1744, %v1732
        %v2165 = vpack.c.b16 %v1745, %v1733
        %v2166 = vpack.c.b16 %v1746, %v1734
        %v2167 = vpack.c.b16 %v1747, %v1735
        %v2168 = vpack.c.b16 %v1748, %v1736
        %v2169 = vpack.c.b16 %v1749, %v1737
        %v2170 = vpack.c.b16 %v1750, %v1738
        %v2171 = vpack.c.b16 %v1751, %v1739
        %v2172 = vpack.c.b16 %v1752, %v1740
        %v2173 = vpack.c.b16 %v1753, %v1741
        %v2174 = vpack.c.b16 %v1766, %v1754
        %v2175 = vpack.c.b16 %v1767, %v1755
        %v2176 = vpack.c.b16 %v1768, %v1756
        %v2177 = vpack.c.b16 %v1769, %v1757
        %v2178 = vpack.c.b16 %v1770, %v1758
        %v2179 = vpack.c.b16 %v1771, %v1759
        %v2180 = vpack.c.b16 %v1772, %v1760
        %v2181 = vpack.c.b16 %v1773, %v1761
        %v2182 = vpack.c.b16 %v1774, %v1762
        %v2183 = vpack.c.b16 %v1775, %v1763
        %v2184 = vpack.c.b16 %v1776, %v1764
        %v2185 = vpack.c.b16 %v1777, %v1765
        %v2186 = vpack.c.b16 %v1790, %v1778
        %v2187 = vpack.c.b16 %v1791, %v1779
        %v2188 = vpack.c.b16 %v1792, %v1780
        %v2189 = vpack.c.b16 %v1793, %v1781
        %v2190 = vpack.c.b16 %v1794, %v1782
        %v2191 = vpack.c.b16 %v1795, %v1783
        %v2192 = vpack.c.b16 %v1796, %v1784
        %v2193 = vpack.c.b16 %v1797, %v1785
        %v2194 = vpack.c.b16 %v1798, %v1786
        %v2195 = vpack.c.b16 %v1799, %v1787
        %v2196 = vpack.c.b16 %v1800, %v1788
        %v2197 = vpack.c.b16 %v1801, %v1789
        %v2198 = vpack.c.b16 %v1814, %v1802
        %v2199 = vpack.c.b16 %v1815, %v1803
        %v2200 = vpack.c.b16 %v1816, %v1804
        %v2201 = vpack.c.b16 %v1817, %v1805
        %v2202 = vpack.c.b16 %v1818, %v1806
        %v2203 = vpack.c.b16 %v1819, %v1807
        %v2204 = vpack.c.b16 %v1820, %v1808
        %v2205 = vpack.c.b16 %v1821, %v1809
        %v2206 = vpack.c.b16 %v1822, %v1810
        %v2207 = vpack.c.b16 %v1823, %v1811
        %v2208 = vpack.c.b16 %v1824, %v1812
        %v2209 = vpack.c.b16 %v1825, %v1813
        %2594 = vmatprep.subr.bf16.mxu0 %v1911
        %2595 = vmatpush1.bf16.msra.mxu0 %v1910
        %2596 = vmatprep.subr.bf16.mxu0 %v1899
        %2597 = vmatpush1.bf16.msra.mxu0 %v1898
        %2598 = vmatprep.subr.bf16.mxu0 %v1887
        %2599 = vmatpush1.bf16.msra.mxu0 %v1886
        %2600 = vmatprep.subr.bf16.mxu0 %v1875
        %2601 = vmatpush1.bf16.msra.mxu0 %v1874
        %2602 = vmatprep.subr.bf16.mxu0 %v1863
        %2603 = vmatpush1.bf16.msra.mxu0 %v1862
        %2604 = vmatprep.subr.bf16.mxu0 %v1851
        %2605 = vmatpush1.bf16.msra.mxu0 %v1850
        %2606 = vmatprep.subr.bf16.mxu0 %v1839
        %2607 = vmatpush1.bf16.msra.mxu0 %v1838
        %2608 = vmatprep.subr.bf16.mxu0 %v1827
        %2609 = vmatpush1.bf16.msra.mxu0 %v1826
        %2610 = vmatprep.subr.bf16.mxu0 %v2007
        %2611 = vmatpush2.bf16.msra.mxu0 %v2006
        %2612 = vmatprep.subr.bf16.mxu0 %v1995
        %2613 = vmatpush2.bf16.msra.mxu0 %v1994
        %2614 = vmatprep.subr.bf16.mxu0 %v1983
        %2615 = vmatpush2.bf16.msra.mxu0 %v1982
        %2616 = vmatprep.subr.bf16.mxu0 %v1971
        %2617 = vmatpush2.bf16.msra.mxu0 %v1970
        %2618 = vmatprep.subr.bf16.mxu0 %v1959
        %2619 = vmatpush2.bf16.msra.mxu0 %v1958
        %2620 = vmatprep.subr.bf16.mxu0 %v1947
        %2621 = vmatpush2.bf16.msra.mxu0 %v1946
        %2622 = vmatprep.subr.bf16.mxu0 %v1935
        %2623 = vmatpush2.bf16.msra.mxu0 %v1934
        %2624 = vmatprep.subr.bf16.mxu0 %v1923
        %2625 = vmatpush2.bf16.msra.mxu0 %v1922
        %2626 = vmatprep.mubr.bf16.mxu0 %v667
        %2627 = vmatmul.mubr.bf16.gmra.mxu0 %v666
        %v2628 = vpop.f32.mrf.mxu0
        %v2629 = vadd.f32 %v603, %v2628
        %v2630 = vpop.f32.mrf.mxu0
        %v2631 = vadd.f32 %v607, %v2630
        %v2632 = vpop.f32.mrf.mxu0
        %v2633 = vpop.f32.mrf.mxu0
        %2634 = vdwg.mxu0
        %2635 = vmatprep.subr.bf16.mxu0 %v2103
        %2636 = vmatpush1.bf16.msra.mxu0 %v2102
        %2637 = vmatprep.subr.bf16.mxu0 %v2091
        %2638 = vmatpush1.bf16.msra.mxu0 %v2090
        %2639 = vmatprep.subr.bf16.mxu0 %v2079
        %2640 = vmatpush1.bf16.msra.mxu0 %v2078
        %2641 = vmatprep.subr.bf16.mxu0 %v2067
        %2642 = vmatpush1.bf16.msra.mxu0 %v2066
        %2643 = vmatprep.subr.bf16.mxu0 %v2055
        %2644 = vmatpush1.bf16.msra.mxu0 %v2054
        %2645 = vmatprep.subr.bf16.mxu0 %v2043
        %2646 = vmatpush1.bf16.msra.mxu0 %v2042
        %2647 = vmatprep.subr.bf16.mxu0 %v2031
        %2648 = vmatpush1.bf16.msra.mxu0 %v2030
        %2649 = vmatprep.subr.bf16.mxu0 %v2019
        %2650 = vmatpush1.bf16.msra.mxu0 %v2018
        %2651 = vmatprep.subr.bf16.mxu0 %v2199
        %2652 = vmatpush2.bf16.msra.mxu0 %v2198
        %2653 = vmatprep.subr.bf16.mxu0 %v2187
        %2654 = vmatpush2.bf16.msra.mxu0 %v2186
        %2655 = vmatprep.subr.bf16.mxu0 %v2175
        %2656 = vmatpush2.bf16.msra.mxu0 %v2174
        %2657 = vmatprep.subr.bf16.mxu0 %v2163
        %2658 = vmatpush2.bf16.msra.mxu0 %v2162
        %2659 = vmatprep.subr.bf16.mxu0 %v2151
        %2660 = vmatpush2.bf16.msra.mxu0 %v2150
        %2661 = vmatprep.subr.bf16.mxu0 %v2139
        %2662 = vmatpush2.bf16.msra.mxu0 %v2138
        %2663 = vmatprep.subr.bf16.mxu0 %v2127
        %2664 = vmatpush2.bf16.msra.mxu0 %v2126
        %2665 = vmatprep.subr.bf16.mxu0 %v2115
        %2666 = vmatpush2.bf16.msra.mxu0 %v2114
        %2667 = vmatprep.mubr.bf16.mxu0 %v669
        %2668 = vmatmul.mubr.bf16.gmra.mxu0 %v668
        %v2669 = vpop.f32.mrf.mxu0
        %v2670 = vadd.f32 %v2629, %v2669
        %v2671 = vpop.f32.mrf.mxu0
        %v2672 = vadd.f32 %v2631, %v2671
        %v2673 = vpop.f32.mrf.mxu0
        %v2674 = vpop.f32.mrf.mxu0
        %2675 = vdwg.mxu0
        %2676 = vmatprep.subr.bf16.mxu0 %v1913
        %2677 = vmatpush1.bf16.msra.mxu0 %v1912
        %2678 = vmatprep.subr.bf16.mxu0 %v1901
        %2679 = vmatpush1.bf16.msra.mxu0 %v1900
        %2680 = vmatprep.subr.bf16.mxu0 %v1889
        %2681 = vmatpush1.bf16.msra.mxu0 %v1888
        %2682 = vmatprep.subr.bf16.mxu0 %v1877
        %2683 = vmatpush1.bf16.msra.mxu0 %v1876
        %2684 = vmatprep.subr.bf16.mxu0 %v1865
        %2685 = vmatpush1.bf16.msra.mxu0 %v1864
        %2686 = vmatprep.subr.bf16.mxu0 %v1853
        %2687 = vmatpush1.bf16.msra.mxu0 %v1852
        %2688 = vmatprep.subr.bf16.mxu0 %v1841
        %2689 = vmatpush1.bf16.msra.mxu0 %v1840
        %2690 = vmatprep.subr.bf16.mxu0 %v1829
        %2691 = vmatpush1.bf16.msra.mxu0 %v1828
        %2692 = vmatprep.subr.bf16.mxu0 %v2009
        %2693 = vmatpush2.bf16.msra.mxu0 %v2008
        %2694 = vmatprep.subr.bf16.mxu0 %v1997
        %2695 = vmatpush2.bf16.msra.mxu0 %v1996
        %2696 = vmatprep.subr.bf16.mxu0 %v1985
        %2697 = vmatpush2.bf16.msra.mxu0 %v1984
        %2698 = vmatprep.subr.bf16.mxu0 %v1973
        %2699 = vmatpush2.bf16.msra.mxu0 %v1972
        %2700 = vmatprep.subr.bf16.mxu0 %v1961
        %2701 = vmatpush2.bf16.msra.mxu0 %v1960
        %2702 = vmatprep.subr.bf16.mxu0 %v1949
        %2703 = vmatpush2.bf16.msra.mxu0 %v1948
        %2704 = vmatprep.subr.bf16.mxu0 %v1937
        %2705 = vmatpush2.bf16.msra.mxu0 %v1936
        %2706 = vmatprep.subr.bf16.mxu0 %v1925
        %2707 = vmatpush2.bf16.msra.mxu0 %v1924
        %2708 = vmatprep.mubr.bf16.mxu0 %v667
        %2709 = vmatmul.mubr.bf16.gmra.mxu0 %v666
        %v2710 = vpop.f32.mrf.mxu0
        %v2711 = vadd.f32 %v611, %v2710
        %v2712 = vpop.f32.mrf.mxu0
        %v2713 = vadd.f32 %v615, %v2712
        %v2714 = vpop.f32.mrf.mxu0
        %v2715 = vpop.f32.mrf.mxu0
        %2716 = vdwg.mxu0
        %2717 = vmatprep.subr.bf16.mxu0 %v2105
        %2718 = vmatpush1.bf16.msra.mxu0 %v2104
        %2719 = vmatprep.subr.bf16.mxu0 %v2093
        %2720 = vmatpush1.bf16.msra.mxu0 %v2092
        %2721 = vmatprep.subr.bf16.mxu0 %v2081
        %2722 = vmatpush1.bf16.msra.mxu0 %v2080
        %2723 = vmatprep.subr.bf16.mxu0 %v2069
        %2724 = vmatpush1.bf16.msra.mxu0 %v2068
        %2725 = vmatprep.subr.bf16.mxu0 %v2057
        %2726 = vmatpush1.bf16.msra.mxu0 %v2056
        %2727 = vmatprep.subr.bf16.mxu0 %v2045
        %2728 = vmatpush1.bf16.msra.mxu0 %v2044
        %2729 = vmatprep.subr.bf16.mxu0 %v2033
        %2730 = vmatpush1.bf16.msra.mxu0 %v2032
        %2731 = vmatprep.subr.bf16.mxu0 %v2021
        %2732 = vmatpush1.bf16.msra.mxu0 %v2020
        %2733 = vmatprep.subr.bf16.mxu0 %v2201
        %2734 = vmatpush2.bf16.msra.mxu0 %v2200
        %2735 = vmatprep.subr.bf16.mxu0 %v2189
        %2736 = vmatpush2.bf16.msra.mxu0 %v2188
        %2737 = vmatprep.subr.bf16.mxu0 %v2177
        %2738 = vmatpush2.bf16.msra.mxu0 %v2176
        %2739 = vmatprep.subr.bf16.mxu0 %v2165
        %2740 = vmatpush2.bf16.msra.mxu0 %v2164
        %2741 = vmatprep.subr.bf16.mxu0 %v2153
        %2742 = vmatpush2.bf16.msra.mxu0 %v2152
        %2743 = vmatprep.subr.bf16.mxu0 %v2141
        %2744 = vmatpush2.bf16.msra.mxu0 %v2140
        %2745 = vmatprep.subr.bf16.mxu0 %v2129
        %2746 = vmatpush2.bf16.msra.mxu0 %v2128
        %2747 = vmatprep.subr.bf16.mxu0 %v2117
        %2748 = vmatpush2.bf16.msra.mxu0 %v2116
        %2749 = vmatprep.mubr.bf16.mxu0 %v669
        %2750 = vmatmul.mubr.bf16.gmra.mxu0 %v668
        %v2751 = vpop.f32.mrf.mxu0
        %v2752 = vadd.f32 %v2711, %v2751
        %v2753 = vpop.f32.mrf.mxu0
        %v2754 = vadd.f32 %v2713, %v2753
        %v2755 = vpop.f32.mrf.mxu0
        %v2756 = vpop.f32.mrf.mxu0
        %2757 = vdwg.mxu0
        %2758 = vmatprep.subr.bf16.mxu0 %v1915
        %2759 = vmatpush1.bf16.msra.mxu0 %v1914
        %2760 = vmatprep.subr.bf16.mxu0 %v1903
        %2761 = vmatpush1.bf16.msra.mxu0 %v1902
        %2762 = vmatprep.subr.bf16.mxu0 %v1891
        %2763 = vmatpush1.bf16.msra.mxu0 %v1890
        %2764 = vmatprep.subr.bf16.mxu0 %v1879
        %2765 = vmatpush1.bf16.msra.mxu0 %v1878
        %2766 = vmatprep.subr.bf16.mxu0 %v1867
        %2767 = vmatpush1.bf16.msra.mxu0 %v1866
        %2768 = vmatprep.subr.bf16.mxu0 %v1855
        %2769 = vmatpush1.bf16.msra.mxu0 %v1854
        %2770 = vmatprep.subr.bf16.mxu0 %v1843
        %2771 = vmatpush1.bf16.msra.mxu0 %v1842
        %2772 = vmatprep.subr.bf16.mxu0 %v1831
        %2773 = vmatpush1.bf16.msra.mxu0 %v1830
        %2774 = vmatprep.subr.bf16.mxu0 %v2011
        %2775 = vmatpush2.bf16.msra.mxu0 %v2010
        %2776 = vmatprep.subr.bf16.mxu0 %v1999
        %2777 = vmatpush2.bf16.msra.mxu0 %v1998
        %2778 = vmatprep.subr.bf16.mxu0 %v1987
        %2779 = vmatpush2.bf16.msra.mxu0 %v1986
        %2780 = vmatprep.subr.bf16.mxu0 %v1975
        %2781 = vmatpush2.bf16.msra.mxu0 %v1974
        %2782 = vmatprep.subr.bf16.mxu0 %v1963
        %2783 = vmatpush2.bf16.msra.mxu0 %v1962
        %2784 = vmatprep.subr.bf16.mxu0 %v1951
        %2785 = vmatpush2.bf16.msra.mxu0 %v1950
        %2786 = vmatprep.subr.bf16.mxu0 %v1939
        %2787 = vmatpush2.bf16.msra.mxu0 %v1938
        %2788 = vmatprep.subr.bf16.mxu0 %v1927
        %2789 = vmatpush2.bf16.msra.mxu0 %v1926
        %2790 = vmatprep.mubr.bf16.mxu0 %v667
        %2791 = vmatmul.mubr.bf16.gmra.mxu0 %v666
        %v2792 = vpop.f32.mrf.mxu0
        %v2793 = vadd.f32 %v619, %v2792
        %v2794 = vpop.f32.mrf.mxu0
        %v2795 = vadd.f32 %v623, %v2794
        %v2796 = vpop.f32.mrf.mxu0
        %v2797 = vpop.f32.mrf.mxu0
        %2798 = vdwg.mxu0
        %2799 = vmatprep.subr.bf16.mxu0 %v2107
        %2800 = vmatpush1.bf16.msra.mxu0 %v2106
        %2801 = vmatprep.subr.bf16.mxu0 %v2095
        %2802 = vmatpush1.bf16.msra.mxu0 %v2094
        %2803 = vmatprep.subr.bf16.mxu0 %v2083
        %2804 = vmatpush1.bf16.msra.mxu0 %v2082
        %2805 = vmatprep.subr.bf16.mxu0 %v2071
        %2806 = vmatpush1.bf16.msra.mxu0 %v2070
        %2807 = vmatprep.subr.bf16.mxu0 %v2059
        %2808 = vmatpush1.bf16.msra.mxu0 %v2058
        %2809 = vmatprep.subr.bf16.mxu0 %v2047
        %2810 = vmatpush1.bf16.msra.mxu0 %v2046
        %2811 = vmatprep.subr.bf16.mxu0 %v2035
        %2812 = vmatpush1.bf16.msra.mxu0 %v2034
        %2813 = vmatprep.subr.bf16.mxu0 %v2023
        %2814 = vmatpush1.bf16.msra.mxu0 %v2022
        %2815 = vmatprep.subr.bf16.mxu0 %v2203
        %2816 = vmatpush2.bf16.msra.mxu0 %v2202
        %2817 = vmatprep.subr.bf16.mxu0 %v2191
        %2818 = vmatpush2.bf16.msra.mxu0 %v2190
        %2819 = vmatprep.subr.bf16.mxu0 %v2179
        %2820 = vmatpush2.bf16.msra.mxu0 %v2178
        %2821 = vmatprep.subr.bf16.mxu0 %v2167
        %2822 = vmatpush2.bf16.msra.mxu0 %v2166
        %2823 = vmatprep.subr.bf16.mxu0 %v2155
        %2824 = vmatpush2.bf16.msra.mxu0 %v2154
        %2825 = vmatprep.subr.bf16.mxu0 %v2143
        %2826 = vmatpush2.bf16.msra.mxu0 %v2142
        %2827 = vmatprep.subr.bf16.mxu0 %v2131
        %2828 = vmatpush2.bf16.msra.mxu0 %v2130
        %2829 = vmatprep.subr.bf16.mxu0 %v2119
        %2830 = vmatpush2.bf16.msra.mxu0 %v2118
        %2831 = vmatprep.mubr.bf16.mxu0 %v669
        %2832 = vmatmul.mubr.bf16.gmra.mxu0 %v668
        %v2833 = vpop.f32.mrf.mxu0
        %v2834 = vadd.f32 %v2793, %v2833
        %v2835 = vpop.f32.mrf.mxu0
        %v2836 = vadd.f32 %v2795, %v2835
        %v2837 = vpop.f32.mrf.mxu0
        %v2838 = vpop.f32.mrf.mxu0
        %2839 = vdwg.mxu0
        %2840 = vmatprep.subr.bf16.mxu0 %v1917
        %2841 = vmatpush1.bf16.msra.mxu0 %v1916
        %2842 = vmatprep.subr.bf16.mxu0 %v1905
        %2843 = vmatpush1.bf16.msra.mxu0 %v1904
        %2844 = vmatprep.subr.bf16.mxu0 %v1893
        %2845 = vmatpush1.bf16.msra.mxu0 %v1892
        %2846 = vmatprep.subr.bf16.mxu0 %v1881
        %2847 = vmatpush1.bf16.msra.mxu0 %v1880
        %2848 = vmatprep.subr.bf16.mxu0 %v1869
        %2849 = vmatpush1.bf16.msra.mxu0 %v1868
        %2850 = vmatprep.subr.bf16.mxu0 %v1857
        %2851 = vmatpush1.bf16.msra.mxu0 %v1856
        %2852 = vmatprep.subr.bf16.mxu0 %v1845
        %2853 = vmatpush1.bf16.msra.mxu0 %v1844
        %2854 = vmatprep.subr.bf16.mxu0 %v1833
        %2855 = vmatpush1.bf16.msra.mxu0 %v1832
        %2856 = vmatprep.subr.bf16.mxu0 %v2013
        %2857 = vmatpush2.bf16.msra.mxu0 %v2012
        %2858 = vmatprep.subr.bf16.mxu0 %v2001
        %2859 = vmatpush2.bf16.msra.mxu0 %v2000
        %2860 = vmatprep.subr.bf16.mxu0 %v1989
        %2861 = vmatpush2.bf16.msra.mxu0 %v1988
        %2862 = vmatprep.subr.bf16.mxu0 %v1977
        %2863 = vmatpush2.bf16.msra.mxu0 %v1976
        %2864 = vmatprep.subr.bf16.mxu0 %v1965
        %2865 = vmatpush2.bf16.msra.mxu0 %v1964
        %2866 = vmatprep.subr.bf16.mxu0 %v1953
        %2867 = vmatpush2.bf16.msra.mxu0 %v1952
        %2868 = vmatprep.subr.bf16.mxu0 %v1941
        %2869 = vmatpush2.bf16.msra.mxu0 %v1940
        %2870 = vmatprep.subr.bf16.mxu0 %v1929
        %2871 = vmatpush2.bf16.msra.mxu0 %v1928
        %2872 = vmatprep.mubr.bf16.mxu0 %v667
        %2873 = vmatmul.mubr.bf16.gmra.mxu0 %v666
        %v2874 = vpop.f32.mrf.mxu0
        %v2875 = vadd.f32 %v627, %v2874
        %v2876 = vpop.f32.mrf.mxu0
        %v2877 = vadd.f32 %v631, %v2876
        %v2878 = vpop.f32.mrf.mxu0
        %v2879 = vpop.f32.mrf.mxu0
        %2880 = vdwg.mxu0
        %2881 = vmatprep.subr.bf16.mxu0 %v2109
        %2882 = vmatpush1.bf16.msra.mxu0 %v2108
        %2883 = vmatprep.subr.bf16.mxu0 %v2097
        %2884 = vmatpush1.bf16.msra.mxu0 %v2096
        %2885 = vmatprep.subr.bf16.mxu0 %v2085
        %2886 = vmatpush1.bf16.msra.mxu0 %v2084
        %2887 = vmatprep.subr.bf16.mxu0 %v2073
        %2888 = vmatpush1.bf16.msra.mxu0 %v2072
        %2889 = vmatprep.subr.bf16.mxu0 %v2061
        %2890 = vmatpush1.bf16.msra.mxu0 %v2060
        %2891 = vmatprep.subr.bf16.mxu0 %v2049
        %2892 = vmatpush1.bf16.msra.mxu0 %v2048
        %2893 = vmatprep.subr.bf16.mxu0 %v2037
        %2894 = vmatpush1.bf16.msra.mxu0 %v2036
        %2895 = vmatprep.subr.bf16.mxu0 %v2025
        %2896 = vmatpush1.bf16.msra.mxu0 %v2024
        %2897 = vmatprep.subr.bf16.mxu0 %v2205
        %2898 = vmatpush2.bf16.msra.mxu0 %v2204
        %2899 = vmatprep.subr.bf16.mxu0 %v2193
        %2900 = vmatpush2.bf16.msra.mxu0 %v2192
        %2901 = vmatprep.subr.bf16.mxu0 %v2181
        %2902 = vmatpush2.bf16.msra.mxu0 %v2180
        %2903 = vmatprep.subr.bf16.mxu0 %v2169
        %2904 = vmatpush2.bf16.msra.mxu0 %v2168
        %2905 = vmatprep.subr.bf16.mxu0 %v2157
        %2906 = vmatpush2.bf16.msra.mxu0 %v2156
        %2907 = vmatprep.subr.bf16.mxu0 %v2145
        %2908 = vmatpush2.bf16.msra.mxu0 %v2144
        %2909 = vmatprep.subr.bf16.mxu0 %v2133
        %2910 = vmatpush2.bf16.msra.mxu0 %v2132
        %2911 = vmatprep.subr.bf16.mxu0 %v2121
        %2912 = vmatpush2.bf16.msra.mxu0 %v2120
        %2913 = vmatprep.mubr.bf16.mxu0 %v669
        %2914 = vmatmul.mubr.bf16.gmra.mxu0 %v668
        %v2915 = vpop.f32.mrf.mxu0
        %v2916 = vadd.f32 %v2875, %v2915
        %v2917 = vpop.f32.mrf.mxu0
        %v2918 = vadd.f32 %v2877, %v2917
        %v2919 = vpop.f32.mrf.mxu0
        %v2920 = vpop.f32.mrf.mxu0
        %2921 = vdwg.mxu0
        %2922 = vmatprep.subr.bf16.mxu0 %v1919
        %2923 = vmatpush1.bf16.msra.mxu0 %v1918
        %2924 = vmatprep.subr.bf16.mxu0 %v1907
        %2925 = vmatpush1.bf16.msra.mxu0 %v1906
        %2926 = vmatprep.subr.bf16.mxu0 %v1895
        %2927 = vmatpush1.bf16.msra.mxu0 %v1894
        %2928 = vmatprep.subr.bf16.mxu0 %v1883
        %2929 = vmatpush1.bf16.msra.mxu0 %v1882
        %2930 = vmatprep.subr.bf16.mxu0 %v1871
        %2931 = vmatpush1.bf16.msra.mxu0 %v1870
        %2932 = vmatprep.subr.bf16.mxu0 %v1859
        %2933 = vmatpush1.bf16.msra.mxu0 %v1858
        %2934 = vmatprep.subr.bf16.mxu0 %v1847
        %2935 = vmatpush1.bf16.msra.mxu0 %v1846
        %2936 = vmatprep.subr.bf16.mxu0 %v1835
        %2937 = vmatpush1.bf16.msra.mxu0 %v1834
        %2938 = vmatprep.subr.bf16.mxu0 %v2015
        %2939 = vmatpush2.bf16.msra.mxu0 %v2014
        %2940 = vmatprep.subr.bf16.mxu0 %v2003
        %2941 = vmatpush2.bf16.msra.mxu0 %v2002
        %2942 = vmatprep.subr.bf16.mxu0 %v1991
        %2943 = vmatpush2.bf16.msra.mxu0 %v1990
        %2944 = vmatprep.subr.bf16.mxu0 %v1979
        %2945 = vmatpush2.bf16.msra.mxu0 %v1978
        %2946 = vmatprep.subr.bf16.mxu0 %v1967
        %2947 = vmatpush2.bf16.msra.mxu0 %v1966
        %2948 = vmatprep.subr.bf16.mxu0 %v1955
        %2949 = vmatpush2.bf16.msra.mxu0 %v1954
        %2950 = vmatprep.subr.bf16.mxu0 %v1943
        %2951 = vmatpush2.bf16.msra.mxu0 %v1942
        %2952 = vmatprep.subr.bf16.mxu0 %v1931
        %2953 = vmatpush2.bf16.msra.mxu0 %v1930
        %2954 = vmatprep.mubr.bf16.mxu0 %v667
        %2955 = vmatmul.mubr.bf16.gmra.mxu0 %v666
        %v2956 = vpop.f32.mrf.mxu0
        %v2957 = vadd.f32 %v635, %v2956
        %v2958 = vpop.f32.mrf.mxu0
        %v2959 = vadd.f32 %v639, %v2958
        %v2960 = vpop.f32.mrf.mxu0
        %v2961 = vpop.f32.mrf.mxu0
        %2962 = vdwg.mxu0
        %2963 = vmatprep.subr.bf16.mxu0 %v2111
        %2964 = vmatpush1.bf16.msra.mxu0 %v2110
        %2965 = vmatprep.subr.bf16.mxu0 %v2099
        %2966 = vmatpush1.bf16.msra.mxu0 %v2098
        %2967 = vmatprep.subr.bf16.mxu0 %v2087
        %2968 = vmatpush1.bf16.msra.mxu0 %v2086
        %2969 = vmatprep.subr.bf16.mxu0 %v2075
        %2970 = vmatpush1.bf16.msra.mxu0 %v2074
        %2971 = vmatprep.subr.bf16.mxu0 %v2063
        %2972 = vmatpush1.bf16.msra.mxu0 %v2062
        %2973 = vmatprep.subr.bf16.mxu0 %v2051
        %2974 = vmatpush1.bf16.msra.mxu0 %v2050
        %2975 = vmatprep.subr.bf16.mxu0 %v2039
        %2976 = vmatpush1.bf16.msra.mxu0 %v2038
        %2977 = vmatprep.subr.bf16.mxu0 %v2027
        %2978 = vmatpush1.bf16.msra.mxu0 %v2026
        %2979 = vmatprep.subr.bf16.mxu0 %v2207
        %2980 = vmatpush2.bf16.msra.mxu0 %v2206
        %2981 = vmatprep.subr.bf16.mxu0 %v2195
        %2982 = vmatpush2.bf16.msra.mxu0 %v2194
        %2983 = vmatprep.subr.bf16.mxu0 %v2183
        %2984 = vmatpush2.bf16.msra.mxu0 %v2182
        %2985 = vmatprep.subr.bf16.mxu0 %v2171
        %2986 = vmatpush2.bf16.msra.mxu0 %v2170
        %2987 = vmatprep.subr.bf16.mxu0 %v2159
        %2988 = vmatpush2.bf16.msra.mxu0 %v2158
        %2989 = vmatprep.subr.bf16.mxu0 %v2147
        %2990 = vmatpush2.bf16.msra.mxu0 %v2146
        %2991 = vmatprep.subr.bf16.mxu0 %v2135
        %2992 = vmatpush2.bf16.msra.mxu0 %v2134
        %2993 = vmatprep.subr.bf16.mxu0 %v2123
        %2994 = vmatpush2.bf16.msra.mxu0 %v2122
        %2995 = vmatprep.mubr.bf16.mxu0 %v669
        %2996 = vmatmul.mubr.bf16.gmra.mxu0 %v668
        %v2997 = vpop.f32.mrf.mxu0
        %v2998 = vadd.f32 %v2957, %v2997
        %v2999 = vpop.f32.mrf.mxu0
        %v3000 = vadd.f32 %v2959, %v2999
        %v3001 = vpop.f32.mrf.mxu0
        %v3002 = vpop.f32.mrf.mxu0
        %3003 = vdwg.mxu0
        %3004 = vmatprep.subr.bf16.mxu0 %v1921
        %3005 = vmatpush1.bf16.msra.mxu0 %v1920
        %3006 = vmatprep.subr.bf16.mxu0 %v1909
        %3007 = vmatpush1.bf16.msra.mxu0 %v1908
        %3008 = vmatprep.subr.bf16.mxu0 %v1897
        %3009 = vmatpush1.bf16.msra.mxu0 %v1896
        %3010 = vmatprep.subr.bf16.mxu0 %v1885
        %3011 = vmatpush1.bf16.msra.mxu0 %v1884
        %3012 = vmatprep.subr.bf16.mxu0 %v1873
        %3013 = vmatpush1.bf16.msra.mxu0 %v1872
        %3014 = vmatprep.subr.bf16.mxu0 %v1861
        %3015 = vmatpush1.bf16.msra.mxu0 %v1860
        %3016 = vmatprep.subr.bf16.mxu0 %v1849
        %3017 = vmatpush1.bf16.msra.mxu0 %v1848
        %3018 = vmatprep.subr.bf16.mxu0 %v1837
        %3019 = vmatpush1.bf16.msra.mxu0 %v1836
        %3020 = vmatprep.subr.bf16.mxu0 %v2017
        %3021 = vmatpush2.bf16.msra.mxu0 %v2016
        %3022 = vmatprep.subr.bf16.mxu0 %v2005
        %3023 = vmatpush2.bf16.msra.mxu0 %v2004
        %3024 = vmatprep.subr.bf16.mxu0 %v1993
        %3025 = vmatpush2.bf16.msra.mxu0 %v1992
        %3026 = vmatprep.subr.bf16.mxu0 %v1981
        %3027 = vmatpush2.bf16.msra.mxu0 %v1980
        %3028 = vmatprep.subr.bf16.mxu0 %v1969
        %3029 = vmatpush2.bf16.msra.mxu0 %v1968
        %3030 = vmatprep.subr.bf16.mxu0 %v1957
        %3031 = vmatpush2.bf16.msra.mxu0 %v1956
        %3032 = vmatprep.subr.bf16.mxu0 %v1945
        %3033 = vmatpush2.bf16.msra.mxu0 %v1944
        %3034 = vmatprep.subr.bf16.mxu0 %v1933
        %3035 = vmatpush2.bf16.msra.mxu0 %v1932
        %3036 = vmatprep.mubr.bf16.mxu0 %v667
        %3037 = vmatmul.mubr.bf16.gmra.mxu0 %v666
        %v3038 = vpop.f32.mrf.mxu0
        %v3039 = vadd.f32 %v643, %v3038
        %v3040 = vpop.f32.mrf.mxu0
        %v3041 = vadd.f32 %v647, %v3040
        %v3042 = vpop.f32.mrf.mxu0
        %v3043 = vpop.f32.mrf.mxu0
        %3044 = vdwg.mxu0
        %3045 = vmatprep.subr.bf16.mxu0 %v2113
        %3046 = vmatpush1.bf16.msra.mxu0 %v2112
        %3047 = vmatprep.subr.bf16.mxu0 %v2101
        %3048 = vmatpush1.bf16.msra.mxu0 %v2100
        %3049 = vmatprep.subr.bf16.mxu0 %v2089
        %3050 = vmatpush1.bf16.msra.mxu0 %v2088
        %3051 = vmatprep.subr.bf16.mxu0 %v2077
        %3052 = vmatpush1.bf16.msra.mxu0 %v2076
        %3053 = vmatprep.subr.bf16.mxu0 %v2065
        %3054 = vmatpush1.bf16.msra.mxu0 %v2064
        %3055 = vmatprep.subr.bf16.mxu0 %v2053
        %3056 = vmatpush1.bf16.msra.mxu0 %v2052
        %3057 = vmatprep.subr.bf16.mxu0 %v2041
        %3058 = vmatpush1.bf16.msra.mxu0 %v2040
        %3059 = vmatprep.subr.bf16.mxu0 %v2029
        %3060 = vmatpush1.bf16.msra.mxu0 %v2028
        %3061 = vmatprep.subr.bf16.mxu0 %v2209
        %3062 = vmatpush2.bf16.msra.mxu0 %v2208
        %3063 = vmatprep.subr.bf16.mxu0 %v2197
        %3064 = vmatpush2.bf16.msra.mxu0 %v2196
        %3065 = vmatprep.subr.bf16.mxu0 %v2185
        %3066 = vmatpush2.bf16.msra.mxu0 %v2184
        %3067 = vmatprep.subr.bf16.mxu0 %v2173
        %3068 = vmatpush2.bf16.msra.mxu0 %v2172
        %3069 = vmatprep.subr.bf16.mxu0 %v2161
        %3070 = vmatpush2.bf16.msra.mxu0 %v2160
        %3071 = vmatprep.subr.bf16.mxu0 %v2149
        %3072 = vmatpush2.bf16.msra.mxu0 %v2148
        %3073 = vmatprep.subr.bf16.mxu0 %v2137
        %3074 = vmatpush2.bf16.msra.mxu0 %v2136
        %3075 = vmatprep.subr.bf16.mxu0 %v2125
        %3076 = vmatpush2.bf16.msra.mxu0 %v2124
        %3077 = vmatprep.mubr.bf16.mxu0 %v669
        %3078 = vmatmul.mubr.bf16.gmra.mxu0 %v668
        %v3079 = vpop.f32.mrf.mxu0
        %v3080 = vadd.f32 %v3039, %v3079
        %v3081 = vpop.f32.mrf.mxu0
        %v3082 = vadd.f32 %v3041, %v3081
        %v3083 = vpop.f32.mrf.mxu0
        %v3084 = vpop.f32.mrf.mxu0
        %3085 = vdwg.mxu0
        %3086 = vst [vmem:[%s208] sm:$0xff] %v2998
        %3087 = vst [vmem:[%s208 + $0x8] sm:$0xff] %v3000
        %3088 = vst [vmem:[%s208 + $0x10] sm:$0xff] %v3080
        %3089 = vst [vmem:[%s208 + $0x18] sm:$0xff] %v3082
        %v3090 = vpack.c.bf16 %v2670, %v2670
        %v3091 = vpack.c.bf16 %v2834, %v2834
        %vm3092 = vcmask 523264
        %v3094 = vsel %vm3092, %v3090, 0
        %v3097 = vsel %vm3092, %v3091, 0
        %3099 = vmatprep.subr.bf16.mxu0 0
        %3100 = vmatpush1.bf16.xpose.msra.mxu0 0
        %3101 = vmatprep.subr.bf16.mxu0 0
        %3102 = vmatpush1.bf16.xpose.msra.mxu0 0
        %3103 = vmatprep.subr.bf16.mxu0 0
        %3104 = vmatpush1.bf16.xpose.msra.mxu0 0
        %3105 = vmatprep.subr.bf16.mxu0 0
        %3106 = vmatpush1.bf16.xpose.msra.mxu0 0
        %3107 = vmatprep.subr.bf16.mxu0 0
        %3108 = vmatpush1.bf16.xpose.msra.mxu0 0
        %3109 = vmatprep.subr.bf16.mxu0 0
        %3110 = vmatpush1.bf16.xpose.msra.mxu0 0
        %3111 = vmatprep.subr.bf16.mxu0 0
        %3112 = vmatpush1.bf16.xpose.msra.mxu0 0
        %3113 = vmatprep.subr.bf16.mxu0 0
        %3114 = vmatpush1.bf16.xpose.msra.mxu0 %v3097
        %3115 = vmatprep.subr.bf16.mxu0 0
        %3116 = vmatpush2.bf16.xpose.msra.mxu0 0
        %3117 = vmatprep.subr.bf16.mxu0 0
        %3118 = vmatpush2.bf16.xpose.msra.mxu0 0
        %3119 = vmatprep.subr.bf16.mxu0 0
        %3120 = vmatpush2.bf16.xpose.msra.mxu0 0
        %3121 = vmatprep.subr.bf16.mxu0 0
        %3122 = vmatpush2.bf16.xpose.msra.mxu0 0
        %3123 = vmatprep.subr.bf16.mxu0 0
        %3124 = vmatpush2.bf16.xpose.msra.mxu0 0
        %3125 = vmatprep.subr.bf16.mxu0 0
        %3126 = vmatpush2.bf16.xpose.msra.mxu0 0
        %3127 = vmatprep.subr.bf16.mxu0 0
        %3128 = vmatpush2.bf16.xpose.msra.mxu0 0
        %3129 = vmatprep.subr.bf16.mxu0 0
        %3130 = vmatpush2.bf16.xpose.msra.mxu0 0
        %3131 = vmatprep.mubr.bf16.mxu0 0
        %3132 = vmatmul.mubr.bf16.gmra.mxu0 %v3094
        %v3133 = vpop.f32.mrf.mxu0
        %v3134 = vadd.f32 0.0, %v3133
        %v3135 = vpop.f32.mrf.mxu0
        %v3136 = vpop.f32.mrf.mxu0
        %v3137 = vpop.f32.mrf.mxu0
        %3138 = vdwg.mxu0
        %vm3139 = vcmask 64512
        %3140 = vst.msk [vmem:[%s191] sm:$0xff] %vm3139, %v3134
        %3142 = vrot.lane.b32.xlu0 %v3090, 64
        %v3143 = vpop.permute.xlu0 %3142
        %3145 = vrot.lane.b32.xlu0 %v3091, 64
        %v3146 = vpop.permute.xlu0 %3145
        %v3148 = vsel %vm3092, %v3143, 0
        %v3151 = vsel %vm3092, %v3146, 0
        %3153 = vmatprep.subr.bf16.mxu0 0
        %3154 = vmatpush1.bf16.xpose.msra.mxu0 0
        %3155 = vmatprep.subr.bf16.mxu0 0
        %3156 = vmatpush1.bf16.xpose.msra.mxu0 0
        %3157 = vmatprep.subr.bf16.mxu0 0
        %3158 = vmatpush1.bf16.xpose.msra.mxu0 0
        %3159 = vmatprep.subr.bf16.mxu0 0
        %3160 = vmatpush1.bf16.xpose.msra.mxu0 0
        %3161 = vmatprep.subr.bf16.mxu0 0
        %3162 = vmatpush1.bf16.xpose.msra.mxu0 0
        %3163 = vmatprep.subr.bf16.mxu0 0
        %3164 = vmatpush1.bf16.xpose.msra.mxu0 0
        %3165 = vmatprep.subr.bf16.mxu0 0
        %3166 = vmatpush1.bf16.xpose.msra.mxu0 0
        %3167 = vmatprep.subr.bf16.mxu0 0
        %3168 = vmatpush1.bf16.xpose.msra.mxu0 %v3151
        %3169 = vmatprep.subr.bf16.mxu0 0
        %3170 = vmatpush2.bf16.xpose.msra.mxu0 0
        %3171 = vmatprep.subr.bf16.mxu0 0
        %3172 = vmatpush2.bf16.xpose.msra.mxu0 0
        %3173 = vmatprep.subr.bf16.mxu0 0
        %3174 = vmatpush2.bf16.xpose.msra.mxu0 0
        %3175 = vmatprep.subr.bf16.mxu0 0
        %3176 = vmatpush2.bf16.xpose.msra.mxu0 0
        %3177 = vmatprep.subr.bf16.mxu0 0
        %3178 = vmatpush2.bf16.xpose.msra.mxu0 0
        %3179 = vmatprep.subr.bf16.mxu0 0
        %3180 = vmatpush2.bf16.xpose.msra.mxu0 0
        %3181 = vmatprep.subr.bf16.mxu0 0
        %3182 = vmatpush2.bf16.xpose.msra.mxu0 0
        %3183 = vmatprep.subr.bf16.mxu0 0
        %3184 = vmatpush2.bf16.xpose.msra.mxu0 0
        %3185 = vmatprep.mubr.bf16.mxu0 0
        %3186 = vmatmul.mubr.bf16.gmra.mxu0 %v3148
        %v3187 = vpop.f32.mrf.mxu0
        %v3188 = vadd.f32 0.0, %v3187
        %v3189 = vpop.f32.mrf.mxu0
        %v3190 = vpop.f32.mrf.mxu0
        %v3191 = vpop.f32.mrf.mxu0
        %3192 = vdwg.mxu0
        %s3193 = scalar_lea.vmem %s191, 8 [#allocation2]
        %3194 = vst.msk [vmem:[%s3193] sm:$0xff] %vm3139, %v3188
        %v3195 = vpack.c.bf16 %v2672, %v2672
        %v3196 = vpack.c.bf16 %v2836, %v2836
        %v3198 = vsel %vm3092, %v3195, 0
        %v3201 = vsel %vm3092, %v3196, 0
        %3203 = vmatprep.subr.bf16.mxu0 0
        %3204 = vmatpush1.bf16.xpose.msra.mxu0 0
        %3205 = vmatprep.subr.bf16.mxu0 0
        %3206 = vmatpush1.bf16.xpose.msra.mxu0 0
        %3207 = vmatprep.subr.bf16.mxu0 0
        %3208 = vmatpush1.bf16.xpose.msra.mxu0 0
        %3209 = vmatprep.subr.bf16.mxu0 0
        %3210 = vmatpush1.bf16.xpose.msra.mxu0 0
        %3211 = vmatprep.subr.bf16.mxu0 0
        %3212 = vmatpush1.bf16.xpose.msra.mxu0 0
        %3213 = vmatprep.subr.bf16.mxu0 0
        %3214 = vmatpush1.bf16.xpose.msra.mxu0 0
        %3215 = vmatprep.subr.bf16.mxu0 0
        %3216 = vmatpush1.bf16.xpose.msra.mxu0 0
        %3217 = vmatprep.subr.bf16.mxu0 0
        %3218 = vmatpush1.bf16.xpose.msra.mxu0 %v3201
        %3219 = vmatprep.subr.bf16.mxu0 0
        %3220 = vmatpush2.bf16.xpose.msra.mxu0 0
        %3221 = vmatprep.subr.bf16.mxu0 0
        %3222 = vmatpush2.bf16.xpose.msra.mxu0 0
        %3223 = vmatprep.subr.bf16.mxu0 0
        %3224 = vmatpush2.bf16.xpose.msra.mxu0 0
        %3225 = vmatprep.subr.bf16.mxu0 0
        %3226 = vmatpush2.bf16.xpose.msra.mxu0 0
        %3227 = vmatprep.subr.bf16.mxu0 0
        %3228 = vmatpush2.bf16.xpose.msra.mxu0 0
        %3229 = vmatprep.subr.bf16.mxu0 0
        %3230 = vmatpush2.bf16.xpose.msra.mxu0 0
        %3231 = vmatprep.subr.bf16.mxu0 0
        %3232 = vmatpush2.bf16.xpose.msra.mxu0 0
        %3233 = vmatprep.subr.bf16.mxu0 0
        %3234 = vmatpush2.bf16.xpose.msra.mxu0 0
        %3235 = vmatprep.mubr.bf16.mxu0 0
        %3236 = vmatmul.mubr.bf16.gmra.mxu0 %v3198
        %v3237 = vpop.f32.mrf.mxu0
        %v3238 = vadd.f32 0.0, %v3237
        %v3239 = vpop.f32.mrf.mxu0
        %v3240 = vpop.f32.mrf.mxu0
        %v3241 = vpop.f32.mrf.mxu0
        %3242 = vdwg.mxu0
        %s3243 = scalar_lea.vmem %s191, 16 [#allocation2]
        %3244 = vst.msk [vmem:[%s3243] sm:$0xff] %vm3139, %v3238
        %3246 = vrot.lane.b32.xlu0 %v3195, 64
        %v3247 = vpop.permute.xlu0 %3246
        %3249 = vrot.lane.b32.xlu0 %v3196, 64
        %v3250 = vpop.permute.xlu0 %3249
        %v3252 = vsel %vm3092, %v3247, 0
        %v3255 = vsel %vm3092, %v3250, 0
        %3257 = vmatprep.subr.bf16.mxu0 0
        %3258 = vmatpush1.bf16.xpose.msra.mxu0 0
        %3259 = vmatprep.subr.bf16.mxu0 0
        %3260 = vmatpush1.bf16.xpose.msra.mxu0 0
        %3261 = vmatprep.subr.bf16.mxu0 0
        %3262 = vmatpush1.bf16.xpose.msra.mxu0 0
        %3263 = vmatprep.subr.bf16.mxu0 0
        %3264 = vmatpush1.bf16.xpose.msra.mxu0 0
        %3265 = vmatprep.subr.bf16.mxu0 0
        %3266 = vmatpush1.bf16.xpose.msra.mxu0 0
        %3267 = vmatprep.subr.bf16.mxu0 0
        %3268 = vmatpush1.bf16.xpose.msra.mxu0 0
        %3269 = vmatprep.subr.bf16.mxu0 0
        %3270 = vmatpush1.bf16.xpose.msra.mxu0 0
        %3271 = vmatprep.subr.bf16.mxu0 0
        %3272 = vmatpush1.bf16.xpose.msra.mxu0 %v3255
        %3273 = vmatprep.subr.bf16.mxu0 0
        %3274 = vmatpush2.bf16.xpose.msra.mxu0 0
        %3275 = vmatprep.subr.bf16.mxu0 0
        %3276 = vmatpush2.bf16.xpose.msra.mxu0 0
        %3277 = vmatprep.subr.bf16.mxu0 0
        %3278 = vmatpush2.bf16.xpose.msra.mxu0 0
        %3279 = vmatprep.subr.bf16.mxu0 0
        %3280 = vmatpush2.bf16.xpose.msra.mxu0 0
        %3281 = vmatprep.subr.bf16.mxu0 0
        %3282 = vmatpush2.bf16.xpose.msra.mxu0 0
        %3283 = vmatprep.subr.bf16.mxu0 0
        %3284 = vmatpush2.bf16.xpose.msra.mxu0 0
        %3285 = vmatprep.subr.bf16.mxu0 0
        %3286 = vmatpush2.bf16.xpose.msra.mxu0 0
        %3287 = vmatprep.subr.bf16.mxu0 0
        %3288 = vmatpush2.bf16.xpose.msra.mxu0 0
        %3289 = vmatprep.mubr.bf16.mxu0 0
        %3290 = vmatmul.mubr.bf16.gmra.mxu0 %v3252
        %v3291 = vpop.f32.mrf.mxu0
        %v3292 = vadd.f32 0.0, %v3291
        %v3293 = vpop.f32.mrf.mxu0
        %v3294 = vpop.f32.mrf.mxu0
        %v3295 = vpop.f32.mrf.mxu0
        %3296 = vdwg.mxu0
        %s3297 = scalar_lea.vmem %s191, 24 [#allocation2]
        %3298 = vst.msk [vmem:[%s3297] sm:$0xff] %vm3139, %v3292
        %v3299 = vpack.c.bf16 %v2752, %v2752
        %v3300 = vpack.c.bf16 %v2916, %v2916
        %v3302 = vsel %vm3092, %v3299, 0
        %v3305 = vsel %vm3092, %v3300, 0
        %3307 = vmatprep.subr.bf16.mxu0 0
        %3308 = vmatpush1.bf16.xpose.msra.mxu0 0
        %3309 = vmatprep.subr.bf16.mxu0 0
        %3310 = vmatpush1.bf16.xpose.msra.mxu0 0
        %3311 = vmatprep.subr.bf16.mxu0 0
        %3312 = vmatpush1.bf16.xpose.msra.mxu0 0
        %3313 = vmatprep.subr.bf16.mxu0 0
        %3314 = vmatpush1.bf16.xpose.msra.mxu0 0
        %3315 = vmatprep.subr.bf16.mxu0 0
        %3316 = vmatpush1.bf16.xpose.msra.mxu0 0
        %3317 = vmatprep.subr.bf16.mxu0 0
        %3318 = vmatpush1.bf16.xpose.msra.mxu0 0
        %3319 = vmatprep.subr.bf16.mxu0 0
        %3320 = vmatpush1.bf16.xpose.msra.mxu0 0
        %3321 = vmatprep.subr.bf16.mxu0 0
        %3322 = vmatpush1.bf16.xpose.msra.mxu0 %v3305
        %3323 = vmatprep.subr.bf16.mxu0 0
        %3324 = vmatpush2.bf16.xpose.msra.mxu0 0
        %3325 = vmatprep.subr.bf16.mxu0 0
        %3326 = vmatpush2.bf16.xpose.msra.mxu0 0
        %3327 = vmatprep.subr.bf16.mxu0 0
        %3328 = vmatpush2.bf16.xpose.msra.mxu0 0
        %3329 = vmatprep.subr.bf16.mxu0 0
        %3330 = vmatpush2.bf16.xpose.msra.mxu0 0
        %3331 = vmatprep.subr.bf16.mxu0 0
        %3332 = vmatpush2.bf16.xpose.msra.mxu0 0
        %3333 = vmatprep.subr.bf16.mxu0 0
        %3334 = vmatpush2.bf16.xpose.msra.mxu0 0
        %3335 = vmatprep.subr.bf16.mxu0 0
        %3336 = vmatpush2.bf16.xpose.msra.mxu0 0
        %3337 = vmatprep.subr.bf16.mxu0 0
        %3338 = vmatpush2.bf16.xpose.msra.mxu0 0
        %3339 = vmatprep.mubr.bf16.mxu0 0
        %3340 = vmatmul.mubr.bf16.gmra.mxu0 %v3302
        %v3341 = vpop.f32.mrf.mxu0
        %v3342 = vadd.f32 0.0, %v3341
        %v3343 = vpop.f32.mrf.mxu0
        %v3344 = vpop.f32.mrf.mxu0
        %v3345 = vpop.f32.mrf.mxu0
        %3346 = vdwg.mxu0
        %s3347 = scalar_lea.vmem %s191, 32 [#allocation2]
        %3348 = vst.msk [vmem:[%s3347] sm:$0xff] %vm3139, %v3342
        %3350 = vrot.lane.b32.xlu0 %v3299, 64
        %v3351 = vpop.permute.xlu0 %3350
        %3353 = vrot.lane.b32.xlu0 %v3300, 64
        %v3354 = vpop.permute.xlu0 %3353
        %v3356 = vsel %vm3092, %v3351, 0
        %v3359 = vsel %vm3092, %v3354, 0
        %3361 = vmatprep.subr.bf16.mxu0 0
        %3362 = vmatpush1.bf16.xpose.msra.mxu0 0
        %3363 = vmatprep.subr.bf16.mxu0 0
        %3364 = vmatpush1.bf16.xpose.msra.mxu0 0
        %3365 = vmatprep.subr.bf16.mxu0 0
        %3366 = vmatpush1.bf16.xpose.msra.mxu0 0
        %3367 = vmatprep.subr.bf16.mxu0 0
        %3368 = vmatpush1.bf16.xpose.msra.mxu0 0
        %3369 = vmatprep.subr.bf16.mxu0 0
        %3370 = vmatpush1.bf16.xpose.msra.mxu0 0
        %3371 = vmatprep.subr.bf16.mxu0 0
        %3372 = vmatpush1.bf16.xpose.msra.mxu0 0
        %3373 = vmatprep.subr.bf16.mxu0 0
        %3374 = vmatpush1.bf16.xpose.msra.mxu0 0
        %3375 = vmatprep.subr.bf16.mxu0 0
        %3376 = vmatpush1.bf16.xpose.msra.mxu0 %v3359
        %3377 = vmatprep.subr.bf16.mxu0 0
        %3378 = vmatpush2.bf16.xpose.msra.mxu0 0
        %3379 = vmatprep.subr.bf16.mxu0 0
        %3380 = vmatpush2.bf16.xpose.msra.mxu0 0
        %3381 = vmatprep.subr.bf16.mxu0 0
        %3382 = vmatpush2.bf16.xpose.msra.mxu0 0
        %3383 = vmatprep.subr.bf16.mxu0 0
        %3384 = vmatpush2.bf16.xpose.msra.mxu0 0
        %3385 = vmatprep.subr.bf16.mxu0 0
        %3386 = vmatpush2.bf16.xpose.msra.mxu0 0
        %3387 = vmatprep.subr.bf16.mxu0 0
        %3388 = vmatpush2.bf16.xpose.msra.mxu0 0
        %3389 = vmatprep.subr.bf16.mxu0 0
        %3390 = vmatpush2.bf16.xpose.msra.mxu0 0
        %3391 = vmatprep.subr.bf16.mxu0 0
        %3392 = vmatpush2.bf16.xpose.msra.mxu0 0
        %3393 = vmatprep.mubr.bf16.mxu0 0
        %3394 = vmatmul.mubr.bf16.gmra.mxu0 %v3356
        %v3395 = vpop.f32.mrf.mxu0
        %v3396 = vadd.f32 0.0, %v3395
        %v3397 = vpop.f32.mrf.mxu0
        %v3398 = vpop.f32.mrf.mxu0
        %v3399 = vpop.f32.mrf.mxu0
        %3400 = vdwg.mxu0
        %s3401 = scalar_lea.vmem %s191, 40 [#allocation2]
        %3402 = vst.msk [vmem:[%s3401] sm:$0xff] %vm3139, %v3396
        %v3403 = vpack.c.bf16 %v2754, %v2754
        %v3404 = vpack.c.bf16 %v2918, %v2918
        %v3406 = vsel %vm3092, %v3403, 0
        %v3409 = vsel %vm3092, %v3404, 0
        %3411 = vmatprep.subr.bf16.mxu0 0
        %3412 = vmatpush1.bf16.xpose.msra.mxu0 0
        %3413 = vmatprep.subr.bf16.mxu0 0
        %3414 = vmatpush1.bf16.xpose.msra.mxu0 0
        %3415 = vmatprep.subr.bf16.mxu0 0
        %3416 = vmatpush1.bf16.xpose.msra.mxu0 0
        %3417 = vmatprep.subr.bf16.mxu0 0
        %3418 = vmatpush1.bf16.xpose.msra.mxu0 0
        %3419 = vmatprep.subr.bf16.mxu0 0
        %3420 = vmatpush1.bf16.xpose.msra.mxu0 0
        %3421 = vmatprep.subr.bf16.mxu0 0
        %3422 = vmatpush1.bf16.xpose.msra.mxu0 0
        %3423 = vmatprep.subr.bf16.mxu0 0
        %3424 = vmatpush1.bf16.xpose.msra.mxu0 0
        %3425 = vmatprep.subr.bf16.mxu0 0
        %3426 = vmatpush1.bf16.xpose.msra.mxu0 %v3409
        %3427 = vmatprep.subr.bf16.mxu0 0
        %3428 = vmatpush2.bf16.xpose.msra.mxu0 0
        %3429 = vmatprep.subr.bf16.mxu0 0
        %3430 = vmatpush2.bf16.xpose.msra.mxu0 0
        %3431 = vmatprep.subr.bf16.mxu0 0
        %3432 = vmatpush2.bf16.xpose.msra.mxu0 0
        %3433 = vmatprep.subr.bf16.mxu0 0
        %3434 = vmatpush2.bf16.xpose.msra.mxu0 0
        %3435 = vmatprep.subr.bf16.mxu0 0
        %3436 = vmatpush2.bf16.xpose.msra.mxu0 0
        %3437 = vmatprep.subr.bf16.mxu0 0
        %3438 = vmatpush2.bf16.xpose.msra.mxu0 0
        %3439 = vmatprep.subr.bf16.mxu0 0
        %3440 = vmatpush2.bf16.xpose.msra.mxu0 0
        %3441 = vmatprep.subr.bf16.mxu0 0
        %3442 = vmatpush2.bf16.xpose.msra.mxu0 0
        %3443 = vmatprep.mubr.bf16.mxu0 0
        %3444 = vmatmul.mubr.bf16.gmra.mxu0 %v3406
        %v3445 = vpop.f32.mrf.mxu0
        %v3446 = vadd.f32 0.0, %v3445
        %v3447 = vpop.f32.mrf.mxu0
        %v3448 = vpop.f32.mrf.mxu0
        %v3449 = vpop.f32.mrf.mxu0
        %3450 = vdwg.mxu0
        %s3451 = scalar_lea.vmem %s191, 48 [#allocation2]
        %3452 = vst.msk [vmem:[%s3451] sm:$0xff] %vm3139, %v3446
        %3454 = vrot.lane.b32.xlu0 %v3403, 64
        %v3455 = vpop.permute.xlu0 %3454
        %3457 = vrot.lane.b32.xlu0 %v3404, 64
        %v3458 = vpop.permute.xlu0 %3457
        %v3460 = vsel %vm3092, %v3455, 0
        %v3463 = vsel %vm3092, %v3458, 0
        %3465 = vmatprep.subr.bf16.mxu0 0
        %3466 = vmatpush1.bf16.xpose.msra.mxu0 0
        %3467 = vmatprep.subr.bf16.mxu0 0
        %3468 = vmatpush1.bf16.xpose.msra.mxu0 0
        %3469 = vmatprep.subr.bf16.mxu0 0
        %3470 = vmatpush1.bf16.xpose.msra.mxu0 0
        %3471 = vmatprep.subr.bf16.mxu0 0
        %3472 = vmatpush1.bf16.xpose.msra.mxu0 0
        %3473 = vmatprep.subr.bf16.mxu0 0
        %3474 = vmatpush1.bf16.xpose.msra.mxu0 0
        %3475 = vmatprep.subr.bf16.mxu0 0
        %3476 = vmatpush1.bf16.xpose.msra.mxu0 0
        %3477 = vmatprep.subr.bf16.mxu0 0
        %3478 = vmatpush1.bf16.xpose.msra.mxu0 0
        %3479 = vmatprep.subr.bf16.mxu0 0
        %3480 = vmatpush1.bf16.xpose.msra.mxu0 %v3463
        %3481 = vmatprep.subr.bf16.mxu0 0
        %3482 = vmatpush2.bf16.xpose.msra.mxu0 0
        %3483 = vmatprep.subr.bf16.mxu0 0
        %3484 = vmatpush2.bf16.xpose.msra.mxu0 0
        %3485 = vmatprep.subr.bf16.mxu0 0
        %3486 = vmatpush2.bf16.xpose.msra.mxu0 0
        %3487 = vmatprep.subr.bf16.mxu0 0
        %3488 = vmatpush2.bf16.xpose.msra.mxu0 0
        %3489 = vmatprep.subr.bf16.mxu0 0
        %3490 = vmatpush2.bf16.xpose.msra.mxu0 0
        %3491 = vmatprep.subr.bf16.mxu0 0
        %3492 = vmatpush2.bf16.xpose.msra.mxu0 0
        %3493 = vmatprep.subr.bf16.mxu0 0
        %3494 = vmatpush2.bf16.xpose.msra.mxu0 0
        %3495 = vmatprep.subr.bf16.mxu0 0
        %3496 = vmatpush2.bf16.xpose.msra.mxu0 0
        %3497 = vmatprep.mubr.bf16.mxu0 0
        %3498 = vmatmul.mubr.bf16.gmra.mxu0 %v3460
        %v3499 = vpop.f32.mrf.mxu0
        %v3500 = vadd.f32 0.0, %v3499
        %v3501 = vpop.f32.mrf.mxu0
        %v3502 = vpop.f32.mrf.mxu0
        %v3503 = vpop.f32.mrf.mxu0
        %3504 = vdwg.mxu0
        %s3505 = scalar_lea.vmem %s191, 56 [#allocation2]
        %3506 = vst.msk [vmem:[%s3505] sm:$0xff] %vm3139, %v3500
        %s3507 = sand.u32 %s95, 1
        %s3508 = scalar_lea.sflag [#allocation3], %s3507
        %s3509 = sand.u32 %s95, 1
        %s3510 = smul.addr %s3509, 64
        %s3511 = scalar_lea.vmem [#allocation2], %s3510
        %p3512 = scmp.lt.s32.totalorder %s19, 1
        %s3513 = scalar_select %p3512, %s19, 1
        %s3514 = smul.addr %s3513, 4
        %s3515 = smul.addr %s3514, 8
        %s3516 = scalar_lea.vmem %s4, %s3515
        // Predicated region
        $region33: #{partial_t5_forward.1} parent=31 // pred_check
          %p3517 = pneg %p105
        $region34: #{partial_t5_forward.1} parent=31 // pred_check_branch
          %3519 = sbr.rel (%p3517) target = $region36
        $region35: #{partial_t5_forward.1} parent=31 // pred_region
          %s3521 = ssub.s32 1024, 1024
          %3522 = vsyncadd %s3508, %s3521
          %s3523 = smul.addr %s19, 8
          %s3524 = smul.addr %s3523, 128
          %s3525 = scalar_lea.hbm %s3, %s3524
          %s3526 = sshll.u32 %s3511, 4
          %s3527 = int_to_ptr.vmem [resolvable:$true] %s3526
          %3532 = dma.vmem_to_hbm [thread:$0]  %s3527, 1024, %s3525, %s3508, 128, 128, 8
        $region36: #{partial_t5_forward.1} parent=31 // pred_fallthru
          _
        // Predicated region
        $region37: #{partial_t5_forward.1} parent=31 // pred_check
          %p3533 = pneg %p131
        $region38: #{partial_t5_forward.1} parent=31 // pred_check_branch
          %3535 = sbr.rel (%p3533) target = $region40
        $region39: #{partial_t5_forward.1} parent=31 // pred_region
          _
        $region40: #{partial_t5_forward.1} parent=31 // pred_fallthru
          _
      $region32: #{partial_t5_forward.1} parent=5 // pred_fallthru
        _
      %p3536 = scmp.le.s32.totalorder 2, %s14
      // Predicated region
      $region41: #{partial_t5_forward.1} parent=5 // pred_check
        %p3537 = pneg %p3536
      $region42: #{partial_t5_forward.1} parent=5 // pred_check_branch
        %3539 = sbr.rel (%p3537) target = $region44
      $region43: #{partial_t5_forward.1} parent=5 // pred_region
        %s3540 = ssub.s32 %s14, 2
        // Predicated region
        $region45: #{partial_t5_forward.1} parent=43 // pred_check
          %p3541 = pneg %p111
        $region46: #{partial_t5_forward.1} parent=43 // pred_check_branch
          %3543 = sbr.rel (%p3541) target = $region48
        $region47: #{partial_t5_forward.1} parent=43 // pred_region
          %s3544 = sand.u32 %s96, 1
          %s3545 = scalar_lea.sflag [#allocation3], %s3544
          %s3546 = sand.u32 %s96, 1
          %s3547 = smul.addr %s3546, 64
          %s3548 = scalar_lea.vmem [#allocation2], %s3547
          %3549 = dma.done %s3545, 1024
        $region48: #{partial_t5_forward.1} parent=43 // pred_fallthru
          _
        // Predicated region
        $region49: #{partial_t5_forward.1} parent=43 // pred_check
          %p3550 = pneg %p137
        $region50: #{partial_t5_forward.1} parent=43 // pred_check_branch
          %3552 = sbr.rel (%p3550) target = $region52
        $region51: #{partial_t5_forward.1} parent=43 // pred_region
          %p3553 = scmp.lt.s32.totalorder %s20, 1
          %s3554 = scalar_select %p3553, %s20, 1
          %s3555 = smul.addr %s3554, 4
          %s3556 = smul.addr %s3555, 8
          %s3557 = scalar_lea.vmem %s4, %s3556
        $region52: #{partial_t5_forward.1} parent=43 // pred_fallthru
          _
      $region44: #{partial_t5_forward.1} parent=5 // pred_fallthru
        _
    $region6: #{partial_t5_forward.1} parent=1 // loop_footer
      %s18 = sadd.s32 1, %s14
    $region7: #{partial_t5_forward.1} parent=1 // loop_footer_branch
      %13 = sbr.rel target = $region3
    $region8: #{partial_t5_forward.1} parent=1 // loop_exit
      _
    %3558 = vsyncpa [#allocation3], 1
    %s3559 = scalar_lea.sflag [#allocation3], 1
    %3560 = vsyncpa %s3559, 1

</llo_original>
